<compile_context>
chip_gen: v7x
topology: tpu7x:2x2x1
jax: 0.10.0
libtpu: 0.0.40
codegen_flags: <defaults>
</compile_context>

<pallas_src>
import functools

import jax
import jax.numpy as jnp
from jax.experimental import pallas as pl
from jax.experimental.pallas import tpu as pltpu


# ----------------------------------------------------------------------------
# Small helpers
# ----------------------------------------------------------------------------
def _pick_row_tile(out_h, out_w, c, budget_bytes=512 * 1024):
    """Largest divisor of out_h whose f32 row-tile stays under the byte budget."""
    best = 1
    for d in range(1, out_h + 1):
        if out_h % d == 0 and d * out_w * c * 4 <= budget_bytes:
            best = d
    return best


_VMEM_CAP = None


def _vmem_cap_bytes():
    global _VMEM_CAP
    if _VMEM_CAP is None:
        try:
            _VMEM_CAP = int(pltpu.get_tpu_info().vmem_capacity_bytes)
        except Exception:  # conservative fallback (v7x-sized)
            _VMEM_CAP = 64 << 20
    return _VMEM_CAP


def _vmem_limit(*nbytes):
    """Explicit scoped-VMEM budget: 2x (double buffering) + slack, clamped to
    ~3/4 of physical VMEM of the chip we run on (≈96 MiB v5e/v6e, ≈48 MiB v7x)."""
    cap = (_vmem_cap_bytes() * 3) // 4
    est = 2 * sum(int(b) for b in nbytes) + (4 << 20)
    return int(min(max(est, 16 << 20), cap))


# ----------------------------------------------------------------------------
# Conv (+ partial BN stats) kernel — used for conv1 (strided) and the 1x1
# projection shortcut.  The wrapper pre-pads and stride-phase-splits the input
# so every in-kernel tap access is a contiguous slice and only needed outputs
# hit the MXU.  The whole phased sample stays VMEM-resident across the row-tile
# axis; the output and the per-tile channel (sum, sumsq) partials are row-tiled
# and pipelined.
# ----------------------------------------------------------------------------
def _conv_stats_kernel(x_ref, w_ref, o_ref, st_ref, *scratch,
                       k, s, pb, h2, tho, wo, cout):
    t = pl.program_id(1)
    r0 = pl.multiple_of(t * tho, tho)              # first output row of this tile
    cin = x_ref.shape[-1]
    acc_ref = scratch[0] if scratch else None

    total = None
    for kh in range(k):
        qa, a = kh // s, kh % s
        row_acc = None
        for kw in range(k):
            qb, b = kw // s, kw % s
            row0 = (a * pb + b) * h2 + qa          # static offset into phase stack
            patch = x_ref[pl.ds(row0 + r0, tho), pl.ds(qb, wo), :]    # (tho,wo,cin)
            v = jnp.dot(patch.reshape(tho * wo, cin), w_ref[kh, kw],
                        preferred_element_type=jnp.float32)
            row_acc = v if row_acc is None else row_acc + v
        # One accumulator round trip per kh (not per tap); last kh stays local.
        if acc_ref is None:                        # k == 1 (1x1 shortcut conv)
            total = row_acc if total is None else total + row_acc
        elif kh == 0:
            acc_ref[...] = row_acc
        elif kh == k - 1:
            total = acc_ref[...] + row_acc
        else:
            acc_ref[...] += row_acc

    o_ref[...] = total.reshape(tho, wo, cout).astype(o_ref.dtype)
    # Per-tile per-channel partial sums for training-mode BatchNorm (f32).
    st_ref[0:1, :] = jnp.sum(total, axis=0, keepdims=True)
    st_ref[1:2, :] = jnp.sum(total * total, axis=0, keepdims=True)


def conv2d_bn_stats(x, w, *, stride, padding, out_dtype):
    """Conv2d (no bias) on NHWC input, returning (y, per-tile BN stat partials).

    x: (N, H, W, Cin), w: (k, k, Cin, Cout) HWIO.
    Returns y (N, HO, WO, Cout) `out_dtype` and stats (N, T, 2, Cout) f32.
    """
    n, h, w_in, cin = x.shape
    k = w.shape[0]
    cout = w.shape[3]
    s = stride

    hp, wp = h + 2 * padding, w_in + 2 * padding
    out_h = (hp - k) // s + 1
    out_w = (wp - k) // s + 1

    if padding:
        x = jnp.pad(x, ((0, 0), (padding, padding), (padding, padding), (0, 0)))

    if s == 1:
        pb = 1
        h2, w2 = hp, wp
        xph = x
    else:
        # Stride-phase split so in-kernel accesses are contiguous slices.
        pa = pb = min(s, k)
        h2, w2 = -(-hp // s), -(-wp // s)
        xph = jnp.pad(x, ((0, 0), (0, h2 * s - hp), (0, w2 * s - wp), (0, 0)))
        xph = jnp.concatenate(
            [xph[:, a::s, b::s, :] for a in range(pa) for b in range(pb)], axis=1)

    nrows = xph.shape[1]
    tho = _pick_row_tile(out_h, out_w, cout)
    n_t = out_h // tho

    kern = functools.partial(_conv_stats_kernel, k=k, s=s, pb=pb, h2=h2,
                             tho=tho, wo=out_w, cout=cout)
    isz = jnp.dtype(x.dtype).itemsize
    vmem = _vmem_limit(nrows * w2 * cin * isz,
                       k * k * cin * cout * isz,
                       tho * out_w * cout * isz,
                       tho * out_w * cout * 4)

    y, st = pl.pallas_call(
        kern,
        grid=(n, n_t),
        in_specs=[
            # Whole (phased) sample resident in VMEM; re-DMA'd only when the
            # batch index changes, never per row tile.
            # TODO(synk): switch to halo-tiled row windows (manual DMA) once
            # nrows*w2*cin no longer fits comfortably in v7x's 64 MiB VMEM.
            pl.BlockSpec((None, nrows, w2, cin), lambda i, t: (i, 0, 0, 0)),
            pl.BlockSpec((k, k, cin, cout), lambda i, t: (0, 0, 0, 0)),
        ],
        out_specs=[
            pl.BlockSpec((None, tho, out_w, cout), lambda i, t: (i, t, 0, 0)),
            pl.BlockSpec((None, None, 2, cout), lambda i, t: (i, t, 0, 0)),
        ],
        out_shape=[
            jax.ShapeDtypeStruct((n, out_h, out_w, cout), out_dtype),
            jax.ShapeDtypeStruct((n, n_t, 2, cout), jnp.float32),
        ],
        scratch_shapes=([pltpu.VMEM((tho * out_w, cout), jnp.float32)]
                        if k > 1 else []),
        compiler_params=pltpu.CompilerParams(
            # Batch axis is split across TensorCores; the row-tile axis stays on
            # one core so the resident input sample is not duplicated.
            dimension_semantics=("parallel", "arbitrary"),
            vmem_limit_bytes=vmem),
    )(xph, w)
    return y, st


# ----------------------------------------------------------------------------
# conv2 with fused BN1 + ReLU + zero-padding prologue (+ BN2 stat partials).
# The activated, padded plane is built ONCE per sample (at row-tile 0) into a
# VMEM scratch — the intermediate activation never makes an HBM round trip.
# ----------------------------------------------------------------------------
def _conv_fused_kernel(y_ref, w_ref, sc_ref, sh_ref, o_ref, st_ref,
                       a_ref, acc_ref, *, k, pad, tho, ho, wo, ow, cout):
    t = pl.program_id(1)
    c = y_ref.shape[-1]

    @pl.when(t == 0)
    def _():
        # Build relu(bn1(y1)), zero-padded, once per batch sample (VMEM only).
        a_ref[...] = jnp.zeros_like(a_ref)
        sc = sc_ref[...].reshape(1, 1, c)
        sh = sh_ref[...].reshape(1, 1, c)
        # Elementwise math in f32 (fast VPU path on all generations), then cast
        # once to the bf16 MXU feed dtype.
        act = jnp.maximum(y_ref[...].astype(jnp.float32) * sc + sh, 0.0)
        a_ref[pl.ds(pad, ho), pl.ds(pad, wo), :] = act.astype(a_ref.dtype)

    r0 = pl.multiple_of(t * tho, tho)
    total = None
    for kh in range(k):
        row_acc = None
        for kw in range(k):
            patch = a_ref[pl.ds(r0 + kh, tho), pl.ds(kw, ow), :]      # (tho,ow,c)
            v = jnp.dot(patch.reshape(tho * ow, c), w_ref[kh, kw],
                        preferred_element_type=jnp.float32)
            row_acc = v if row_acc is None else row_acc + v
        if k == 1:
            total = row_acc
        elif kh == 0:
            acc_ref[...] = row_acc
        elif kh == k - 1:
            total = acc_ref[...] + row_acc
        else:
            acc_ref[...] += row_acc

    o_ref[...] = total.reshape(tho, ow, cout).astype(o_ref.dtype)
    st_ref[0:1, :] = jnp.sum(total, axis=0, keepdims=True)
    st_ref[1:2, :] = jnp.sum(total * total, axis=0, keepdims=True)


def conv2_fused_bn_stats(y, w, scale, shift, *, padding, out_dtype):
    """Stride-1 conv over relu(y*scale + shift), zero-padded by `padding`, with
    the BN+ReLU+pad prologue fused into the conv kernel."""
    n, ho, wo, c = y.shape
    k = w.shape[0]
    cout = w.shape[3]
    hp, wp = ho + 2 * padding, wo + 2 * padding
    oh, ow = hp - k + 1, wp - k + 1
    tho = _pick_row_tile(oh, ow, cout)
    n_t = oh // tho

    kern = functools.partial(_conv_fused_kernel, k=k, pad=padding, tho=tho,
                             ho=ho, wo=wo, ow=ow, cout=cout)
    isz = jnp.dtype(y.dtype).itemsize
    vmem = _vmem_limit(ho * wo * c * isz,          # resident input sample
                       k * k * c * cout * isz,     # weights
                       tho * ow * cout * isz,      # output tile
                       hp * wp * c * isz,          # activated padded plane
                       tho * ow * cout * 4)        # f32 accumulator

    y2, st = pl.pallas_call(
        kern,
        grid=(n, n_t),
        in_specs=[
            pl.BlockSpec((None, ho, wo, c), lambda i, t: (i, 0, 0, 0)),
            pl.BlockSpec((k, k, c, cout), lambda i, t: (0, 0, 0, 0)),
            pl.BlockSpec((1, c), lambda i, t: (0, 0)),
            pl.BlockSpec((1, c), lambda i, t: (0, 0)),
        ],
        out_specs=[
            pl.BlockSpec((None, tho, ow, cout), lambda i, t: (i, t, 0, 0)),
            pl.BlockSpec((None, None, 2, cout), lambda i, t: (i, t, 0, 0)),
        ],
        out_shape=[
            jax.ShapeDtypeStruct((n, oh, ow, cout), out_dtype),
            jax.ShapeDtypeStruct((n, n_t, 2, cout), jnp.float32),
        ],
        scratch_shapes=[pltpu.VMEM((hp, wp, c), y.dtype),
                        pltpu.VMEM((tho * ow, cout), jnp.float32)],
        compiler_params=pltpu.CompilerParams(
            # Row-tile axis is "arbitrary": the activated plane is built once
            # per sample at t == 0 and reused by later tiles on the same core.
            dimension_semantics=("parallel", "arbitrary"),
            vmem_limit_bytes=vmem),
    )(y, w, scale, shift)
    return y2, st


def _bn_coeffs(stats, gamma, beta, count, eps=1e-5):
    """Finalize training-mode BN (biased variance) from per-tile (sum, sumsq)
    partials into per-channel scale/shift (tiny XLA glue, shape (1, C))."""
    tot = jnp.sum(stats, axis=(0, 1))                       # (2, C) f32
    mean = tot[0] / count
    var = jnp.maximum(tot[1] / count - mean * mean, 0.0)
    scale = gamma.astype(jnp.float32) * jax.lax.rsqrt(var + eps)
    shift = beta.astype(jnp.float32) - mean * scale
    return scale[None, :], shift[None, :]


# ----------------------------------------------------------------------------
# Fused epilogue: BN2 + shortcut-BN + residual add + final ReLU in one pass.
# ----------------------------------------------------------------------------
def _add_bn_relu_kernel(y_ref, r_ref, sc2_ref, sh2_ref, scs_ref, shs_ref, o_ref):
    c = y_ref.shape[-1]
    y = (y_ref[...].astype(jnp.float32) * sc2_ref[...].reshape(1, 1, c)
         + sh2_ref[...].reshape(1, 1, c))
    r = (r_ref[...].astype(jnp.float32) * scs_ref[...].reshape(1, 1, c)
         + shs_ref[...].reshape(1, 1, c))
    o_ref[...] = jnp.maximum(y + r, 0.0).astype(o_ref.dtype)


def add_bn_relu(y, resid, sc2, sh2, scs, shs, out_dtype=jnp.float32):
    n, ho, wo, c = y.shape
    tho = _pick_row_tile(ho, wo, c, budget_bytes=1 << 20)
    n_t = ho // tho
    act = pl.BlockSpec((None, tho, wo, c), lambda i, t: (i, t, 0, 0))
    coeff = pl.BlockSpec((1, c), lambda i, t: (0, 0))
    isz = jnp.dtype(y.dtype).itemsize
    vmem = _vmem_limit(2 * tho * wo * c * isz, tho * wo * c * 4, 4 * c * 4)
    return pl.pallas_call(
        _add_bn_relu_kernel,
        grid=(n, n_t),
        in_specs=[act, act, coeff, coeff, coeff, coeff],
        out_specs=act,
        out_shape=jax.ShapeDtypeStruct((n, ho, wo, c), out_dtype),
        compiler_params=pltpu.CompilerParams(
            dimension_semantics=("parallel", "parallel"),
            vmem_limit_bytes=vmem),
    )(y, resid, sc2, sh2, scs, shs)


# ----------------------------------------------------------------------------
# BasicBlock forward (PyTorch NCHW in / NCHW out).
# ----------------------------------------------------------------------------
def basic_block_forward(x_nchw, params, stride, use_bf16=True):
    cdt = jnp.bfloat16 if use_bf16 else jnp.float32
    x = jnp.transpose(x_nchw, (0, 2, 3, 1)).astype(cdt)              # NCHW -> NHWC
    n, _, _, cin = x.shape

    w1 = params['w1'].astype(cdt)                                    # cast once
    w2 = params['w2'].astype(cdt)
    cout = w1.shape[3]
    p1 = w1.shape[0] // 3                                            # calc_padding
    p2 = w2.shape[0] // 3

    if params.get('w_sc') is None and (cin != cout or stride != 1):
        raise ValueError("identity shortcut requires Cin == Cout and stride == 1")

    # conv1 (strided) + BN1 partial stats
    y1, st1 = conv2d_bn_stats(x, w1, stride=stride, padding=p1, out_dtype=cdt)
    ho1, wo1 = y1.shape[1], y1.shape[2]
    sc1, sh1 = _bn_coeffs(st1, params['g1'], params['b1'], n * ho1 * wo1)

    # conv2 (stride 1) with BN1+ReLU+zero-pad fused into its prologue + BN2 stats
    y2, st2 = conv2_fused_bn_stats(y1, w2, sc1, sh1, padding=p2, out_dtype=cdt)
    ho2, wo2 = y2.shape[1], y2.shape[2]
    sc2, sh2 = _bn_coeffs(st2, params['g2'], params['b2'], n * ho2 * wo2)

    # shortcut branch
    if params.get('w_sc') is not None:                               # projection
        wsc = params['w_sc'].astype(cdt)
        s_arr, st_s = conv2d_bn_stats(x, wsc, stride=stride, padding=0,
                                      out_dtype=cdt)
        scs, shs = _bn_coeffs(st_s, params['g_sc'], params['b_sc'],
                              n * s_arr.shape[1] * s_arr.shape[2])
    else:                                                            # identity
        s_arr = x
        scs = jnp.ones((1, cout), jnp.float32)
        shs = jnp.zeros((1, cout), jnp.float32)

    # BN2 + shortcut-BN + residual add + final ReLU, fused into one pass
    out = add_bn_relu(y2, s_arr, sc2, sh2, scs, shs, out_dtype=jnp.float32)
    # TODO(synk): pack the 3 kw taps into one K=3*Cin MXU contraction and pad C
    # to a lane-dense multiple of 128 for small-channel early layers.
    return jnp.transpose(out, (0, 3, 1, 2))                          # NHWC -> NCHW


# ----------------------------------------------------------------------------
# Pure-JAX reference.  With compute_dtype=bfloat16 it mirrors the kernel's
# quantization points (bf16 conv inputs / intermediates, f32 accumulation,
# f32 batch-norm statistics).
# ----------------------------------------------------------------------------
def reference_forward(x_nchw, params, stride, compute_dtype=jnp.float32):
    dn = ('NCHW', 'OIHW', 'NCHW')
    cdt = compute_dtype
    prec = 'highest' if cdt == jnp.float32 else None

    def conv(x, w_hwio, s, p):
        w = jnp.transpose(w_hwio, (3, 2, 0, 1)).astype(cdt)          # HWIO -> OIHW
        y = jax.lax.conv_general_dilated(
            x.astype(cdt), w, (s, s), [(p, p), (p, p)], dimension_numbers=dn,
            precision=prec, preferred_element_type=jnp.float32)
        return y.astype(cdt).astype(jnp.float32)

    def bn(y, g, b, eps=1e-5):
        mean = jnp.mean(y, axis=(0, 2, 3), keepdims=True)
        var = jnp.mean((y - mean) ** 2, axis=(0, 2, 3), keepdims=True)
        return ((y - mean) * jax.lax.rsqrt(var + eps) * g.reshape(1, -1, 1, 1)
                + b.reshape(1, -1, 1, 1))

    p1 = params['w1'].shape[0] // 3
    p2 = params['w2'].shape[0] // 3
    x = x_nchw.astype(jnp.float32)
    y = jax.nn.relu(bn(conv(x, params['w1'], stride, p1),
                       params['g1'], params['b1']))
    y = bn(conv(y, params['w2'], 1, p2), params['g2'], params['b2'])
    if params.get('w_sc') is not None:
        s = bn(conv(x, params['w_sc'], stride, 0),
               params['g_sc'], params['b_sc'])
    else:
        s = x.astype(cdt).astype(jnp.float32)
    return jax.nn.relu(y + s)


if __name__ == "__main__":
    fwd = jax.jit(basic_block_forward, static_argnames=("stride", "use_bf16"))

    # ---- test 1: projection shortcut (Cin != Cout), stride 2, bf16 MXU path ----
    N, Cin, H, W = 2, 4, 16, 16
    Cout, stride = 8, 2
    ks = jax.random.split(jax.random.PRNGKey(0), 10)
    x = jax.random.normal(ks[0], (N, Cin, H, W), jnp.float32)
    params = {
        'w1': 0.1 * jax.random.normal(ks[1], (3, 3, Cin, Cout), jnp.float32),
        'g1': 1.0 + 0.1 * jax.random.normal(ks[2], (Cout,), jnp.float32),
        'b1': 0.1 * jax.random.normal(ks[3], (Cout,), jnp.float32),
        'w2': 0.1 * jax.random.normal(ks[4], (3, 3, Cout, Cout), jnp.float32),
        'g2': 1.0 + 0.1 * jax.random.normal(ks[5], (Cout,), jnp.float32),
        'b2': 0.1 * jax.random.normal(ks[6], (Cout,), jnp.float32),
        'w_sc': 0.1 * jax.random.normal(ks[7], (1, 1, Cin, Cout), jnp.float32),
        'g_sc': 1.0 + 0.1 * jax.random.normal(ks[8], (Cout,), jnp.float32),
        'b_sc': 0.1 * jax.random.normal(ks[9], (Cout,), jnp.float32),
    }
    out = jax.block_until_ready(fwd(x, params, stride=stride))       # bf16 default
    ref = reference_forward(x, params, stride, compute_dtype=jnp.bfloat16)
    assert out.shape == ref.shape, (out.shape, ref.shape)
    err = float(jnp.max(jnp.abs(out - ref)))
    assert err < 6e-2, f"bf16-path max abs err too large: {err}"

    # ---- test 2: identity shortcut (Cin == Cout), stride 1, f32 path ----
    C2 = 8
    ks2 = jax.random.split(jax.random.PRNGKey(1), 7)
    x2 = jax.random.normal(ks2[0], (N, C2, H, W), jnp.float32)
    params2 = {
        'w1': 0.1 * jax.random.normal(ks2[1], (3, 3, C2, C2), jnp.float32),
        'g1': 1.0 + 0.1 * jax.random.normal(ks2[2], (C2,), jnp.float32),
        'b1': 0.1 * jax.random.normal(ks2[3], (C2,), jnp.float32),
        'w2': 0.1 * jax.random.normal(ks2[4], (3, 3, C2, C2), jnp.float32),
        'g2': 1.0 + 0.1 * jax.random.normal(ks2[5], (C2,), jnp.float32),
        'b2': 0.1 * jax.random.normal(ks2[6], (C2,), jnp.float32),
        'w_sc': None, 'g_sc': None, 'b_sc': None,
    }
    out2 = jax.block_until_ready(fwd(x2, params2, stride=1, use_bf16=False))
    ref2 = reference_forward(x2, params2, 1, compute_dtype=jnp.float32)
    assert out2.shape == ref2.shape, (out2.shape, ref2.shape)
    err2 = float(jnp.max(jnp.abs(out2 - ref2)))
    assert err2 < 3e-2, f"f32-path max abs err too large: {err2}"

    print("KERNEL_OK")
</pallas_src>

<mosaic_0001>
module attributes {stable_mosaic.version = 11 : i64} {
  func.func @_conv_stats_kernel(%arg0: i32, %arg1: i32, %arg2: memref<1x8x8x4xbf16, #tpu.memory_space<vmem>>, %arg3: memref<1x1x4x8xbf16, #tpu.memory_space<vmem>>, %arg4: memref<1x8x8x8xbf16, #tpu.memory_space<vmem>>, %arg5: memref<1x1x2x8xf32, #tpu.memory_space<vmem>>) attributes {dimension_semantics = [#tpu.dimension_semantics<parallel>, #tpu.dimension_semantics<arbitrary>], iteration_bounds = array<i64: 2, 1>, scalar_prefetch = 0 : i64, scratch_operands = 0 : i64, tpu.core_type = #tpu.core_type<tc>, window_params = [{transform_indices = @transform_0, window_bounds = array<i64: 1, 8, 8, 4>}, {pipeline_mode = #tpu.pipeline_mode<synchronous>, transform_indices = @transform_1, window_bounds = array<i64: 1, 1, 4, 8>}, {transform_indices = @transform_2, window_bounds = array<i64: 1, 8, 8, 8>}, {transform_indices = @transform_3, window_bounds = array<i64: 1, 1, 2, 8>}]} {
    %c8_i32 = arith.constant 8 : i32
    %0 = arith.muli %arg1, %c8_i32 : i32
    %1 = tpu.assume_multiple %0, 8 : i32
    %c0_i32 = arith.constant 0 : i32
    %2 = arith.addi %c0_i32, %1 : i32
    %c0 = arith.constant 0 : index
    %3 = arith.index_cast %2 : i32 to index
    %c0_0 = arith.constant 0 : index
    %c0_1 = arith.constant 0 : index
    %4 = vector.load %arg2[%c0, %3, %c0_0, %c0_1] : memref<1x8x8x4xbf16, #tpu.memory_space<vmem>>, vector<1x8x8x4xbf16>
    %5 = vector.shape_cast %4 : vector<1x8x8x4xbf16> to vector<8x8x4xbf16>
    %6 = vector.shape_cast %5 : vector<8x8x4xbf16> to vector<64x4xbf16>
    %c0_2 = arith.constant 0 : index
    %c0_3 = arith.constant 0 : index
    %c0_4 = arith.constant 0 : index
    %c0_5 = arith.constant 0 : index
    %7 = vector.load %arg3[%c0_2, %c0_3, %c0_4, %c0_5] : memref<1x1x4x8xbf16, #tpu.memory_space<vmem>>, vector<1x1x4x8xbf16>
    %8 = vector.shape_cast %7 : vector<1x1x4x8xbf16> to vector<4x8xbf16>
    %cst = arith.constant dense<0.000000e+00> : vector<64x8xf32>
    %9 = tpu.matmul %6, %8, %cst {dimension_numbers = #tpu.dot_dimension_numbers<[1], [0], [0], [1], [0, 0, 1, 1], [], []>} : vector<64x4xbf16>, vector<4x8xbf16>, vector<64x8xf32> -> vector<64x8xf32>
    %10 = vector.shape_cast %9 : vector<64x8xf32> to vector<8x8x8xf32>
    %11 = arith.truncf %10 : vector<8x8x8xf32> to vector<8x8x8xbf16>
    %c0_6 = arith.constant 0 : index
    %c0_7 = arith.constant 0 : index
    %c0_8 = arith.constant 0 : index
    %c0_9 = arith.constant 0 : index
    %12 = vector.load %arg4[%c0_6, %c0_7, %c0_8, %c0_9] : memref<1x8x8x8xbf16, #tpu.memory_space<vmem>>, vector<1x8x8x8xbf16>
    %13 = vector.shape_cast %12 : vector<1x8x8x8xbf16> to vector<8x8x8xbf16>
    %14 = vector.shape_cast %11 : vector<8x8x8xbf16> to vector<1x8x8x8xbf16>
    tpu.vector_store %arg4[%c0_6, %c0_7, %c0_8, %c0_9], %14 {strides = array<i32>} : memref<1x8x8x8xbf16, #tpu.memory_space<vmem>>, vector<1x8x8x8xbf16>,
    %cst_10 = arith.constant dense<0.000000e+00> : vector<8xf32>
    %15 = vector.multi_reduction <add>, %9, %cst_10 [0] : vector<64x8xf32> to vector<8xf32>
    %16 = vector.shape_cast %15 : vector<8xf32> to vector<1x8xf32>
    %c0_11 = arith.constant 0 : index
    %c0_12 = arith.constant 0 : index
    %c0_13 = arith.constant 0 : index
    %c0_14 = arith.constant 0 : index
    %17 = vector.load %arg5[%c0_11, %c0_12, %c0_13, %c0_14] : memref<1x1x2x8xf32, #tpu.memory_space<vmem>>, vector<1x1x1x8xf32>
    %18 = vector.shape_cast %17 : vector<1x1x1x8xf32> to vector<1x8xf32>
    %19 = vector.shape_cast %16 : vector<1x8xf32> to vector<1x1x1x8xf32>
    tpu.vector_store %arg5[%c0_11, %c0_12, %c0_13, %c0_14], %19 {strides = array<i32>} : memref<1x1x2x8xf32, #tpu.memory_space<vmem>>, vector<1x1x1x8xf32>,
    %20 = arith.mulf %9, %9 : vector<64x8xf32>
    %cst_15 = arith.constant dense<0.000000e+00> : vector<8xf32>
    %21 = vector.multi_reduction <add>, %20, %cst_15 [0] : vector<64x8xf32> to vector<8xf32>
    %22 = vector.shape_cast %21 : vector<8xf32> to vector<1x8xf32>
    %c0_16 = arith.constant 0 : index
    %c0_17 = arith.constant 0 : index
    %c1 = arith.constant 1 : index
    %c0_18 = arith.constant 0 : index
    %23 = vector.load %arg5[%c0_16, %c0_17, %c1, %c0_18] : memref<1x1x2x8xf32, #tpu.memory_space<vmem>>, vector<1x1x1x8xf32>
    %24 = vector.shape_cast %23 : vector<1x1x1x8xf32> to vector<1x8xf32>
    %25 = vector.shape_cast %22 : vector<1x8xf32> to vector<1x1x1x8xf32>
    tpu.vector_store %arg5[%c0_16, %c0_17, %c1, %c0_18], %25 {strides = array<i32>} : memref<1x1x2x8xf32, #tpu.memory_space<vmem>>, vector<1x1x1x8xf32>,
    return
  }
  func.func @transform_0(%arg0: i32, %arg1: i32) -> (i32, i32, i32, i32) {
    %c0_i32 = arith.constant 0 : i32
    %c0_i32_0 = arith.constant 0 : i32
    %c0_i32_1 = arith.constant 0 : i32
    %c0_i32_2 = arith.constant 0 : i32
    return %arg0, %c0_i32, %c0_i32_0, %c0_i32_1 : i32, i32, i32, i32
  }
  func.func @transform_1(%arg0: i32, %arg1: i32) -> (i32, i32, i32, i32) {
    %c0_i32 = arith.constant 0 : i32
    %c0_i32_0 = arith.constant 0 : i32
    %c0_i32_1 = arith.constant 0 : i32
    %c0_i32_2 = arith.constant 0 : i32
    %c0_i32_3 = arith.constant 0 : i32
    return %c0_i32, %c0_i32_0, %c0_i32_1, %c0_i32_2 : i32, i32, i32, i32
  }
  func.func @transform_2(%arg0: i32, %arg1: i32) -> (i32, i32, i32, i32) {
    %c0_i32 = arith.constant 0 : i32
    %c0_i32_0 = arith.constant 0 : i32
    %c0_i32_1 = arith.constant 0 : i32
    return %arg0, %arg1, %c0_i32, %c0_i32_0 : i32, i32, i32, i32
  }
  func.func @transform_3(%arg0: i32, %arg1: i32) -> (i32, i32, i32, i32) {
    %c0_i32 = arith.constant 0 : i32
    %c0_i32_0 = arith.constant 0 : i32
    %c0_i32_1 = arith.constant 0 : i32
    return %arg0, %arg1, %c0_i32, %c0_i32_0 : i32, i32, i32, i32
  }
}

module attributes {stable_mosaic.version = 11 : i64} {
  func.func @_conv_stats_kernel(%arg0: i32, %arg1: i32, %arg2: memref<1x36x9x4xbf16, #tpu.memory_space<vmem>>, %arg3: memref<3x3x4x8xbf16, #tpu.memory_space<vmem>>, %arg4: memref<1x8x8x8xbf16, #tpu.memory_space<vmem>>, %arg5: memref<1x1x2x8xf32, #tpu.memory_space<vmem>>, %arg6: memref<64x8xf32, #tpu.memory_space<vmem>>) attributes {dimension_semantics = [#tpu.dimension_semantics<parallel>, #tpu.dimension_semantics<arbitrary>], iteration_bounds = array<i64: 2, 1>, scalar_prefetch = 0 : i64, scratch_operands = 1 : i64, tpu.core_type = #tpu.core_type<tc>, window_params = [{transform_indices = @transform_0, window_bounds = array<i64: 1, 36, 9, 4>}, {pipeline_mode = #tpu.pipeline_mode<synchronous>, transform_indices = @transform_1, window_bounds = array<i64: 3, 3, 4, 8>}, {transform_indices = @transform_2, window_bounds = array<i64: 1, 8, 8, 8>}, {transform_indices = @transform_3, window_bounds = array<i64: 1, 1, 2, 8>}]} {
    %c8_i32 = arith.constant 8 : i32
    %0 = arith.muli %arg1, %c8_i32 : i32
    %1 = tpu.assume_multiple %0, 8 : i32
    %c0_i32 = arith.constant 0 : i32
    %2 = arith.addi %c0_i32, %1 : i32
    %c0 = arith.constant 0 : index
    %3 = arith.index_cast %2 : i32 to index
    %c0_0 = arith.constant 0 : index
    %c0_1 = arith.constant 0 : index
    %4 = vector.load %arg2[%c0, %3, %c0_0, %c0_1] : memref<1x36x9x4xbf16, #tpu.memory_space<vmem>>, vector<1x8x8x4xbf16>
    %5 = vector.shape_cast %4 : vector<1x8x8x4xbf16> to vector<8x8x4xbf16>
    %6 = vector.shape_cast %5 : vector<8x8x4xbf16> to vector<64x4xbf16>
    %c0_2 = arith.constant 0 : index
    %c0_3 = arith.constant 0 : index
    %c0_4 = arith.constant 0 : index
    %c0_5 = arith.constant 0 : index
    %7 = vector.load %arg3[%c0_2, %c0_3, %c0_4, %c0_5] : memref<3x3x4x8xbf16, #tpu.memory_space<vmem>>, vector<1x1x4x8xbf16>
    %8 = vector.shape_cast %7 : vector<1x1x4x8xbf16> to vector<4x8xbf16>
    %cst = arith.constant dense<0.000000e+00> : vector<64x8xf32>
    %9 = tpu.matmul %6, %8, %cst {dimension_numbers = #tpu.dot_dimension_numbers<[1], [0], [0], [1], [0, 0, 1, 1], [], []>} : vector<64x4xbf16>, vector<4x8xbf16>, vector<64x8xf32> -> vector<64x8xf32>
    %c9_i32 = arith.constant 9 : i32
    %10 = arith.addi %c9_i32, %1 : i32
    %c0_6 = arith.constant 0 : index
    %11 = arith.index_cast %10 : i32 to index
    %c0_7 = arith.constant 0 : index
    %c0_8 = arith.constant 0 : index
    %12 = vector.load %arg2[%c0_6, %11, %c0_7, %c0_8] : memref<1x36x9x4xbf16, #tpu.memory_space<vmem>>, vector<1x8x8x4xbf16>
    %13 = vector.shape_cast %12 : vector<1x8x8x4xbf16> to vector<8x8x4xbf16>
    %14 = vector.shape_cast %13 : vector<8x8x4xbf16> to vector<64x4xbf16>
    %c0_9 = arith.constant 0 : index
    %c1 = arith.constant 1 : index
    %c0_10 = arith.constant 0 : index
    %c0_11 = arith.constant 0 : index
    %15 = vector.load %arg3[%c0_9, %c1, %c0_10, %c0_11] : memref<3x3x4x8xbf16, #tpu.memory_space<vmem>>, vector<1x1x4x8xbf16>
    %16 = vector.shape_cast %15 : vector<1x1x4x8xbf16> to vector<4x8xbf16>
    %cst_12 = arith.constant dense<0.000000e+00> : vector<64x8xf32>
    %17 = tpu.matmul %14, %16, %cst_12 {dimension_numbers = #tpu.dot_dimension_numbers<[1], [0], [0], [1], [0, 0, 1, 1], [], []>} : vector<64x4xbf16>, vector<4x8xbf16>, vector<64x8xf32> -> vector<64x8xf32>
    %18 = arith.addf %9, %17 : vector<64x8xf32>
    %c0_i32_13 = arith.constant 0 : i32
    %19 = arith.addi %c0_i32_13, %1 : i32
    %c0_14 = arith.constant 0 : index
    %20 = arith.index_cast %19 : i32 to index
    %c1_15 = arith.constant 1 : index
    %c0_16 = arith.constant 0 : index
    %21 = vector.load %arg2[%c0_14, %20, %c1_15, %c0_16] : memref<1x36x9x4xbf16, #tpu.memory_space<vmem>>, vector<1x8x8x4xbf16>
    %22 = vector.shape_cast %21 : vector<1x8x8x4xbf16> to vector<8x8x4xbf16>
    %23 = vector.shape_cast %22 : vector<8x8x4xbf16> to vector<64x4xbf16>
    %c0_17 = arith.constant 0 : index
    %c2 = arith.constant 2 : index
    %c0_18 = arith.constant 0 : index
    %c0_19 = arith.constant 0 : index
    %24 = vector.load %arg3[%c0_17, %c2, %c0_18, %c0_19] : memref<3x3x4x8xbf16, #tpu.memory_space<vmem>>, vector<1x1x4x8xbf16>
    %25 = vector.shape_cast %24 : vector<1x1x4x8xbf16> to vector<4x8xbf16>
    %cst_20 = arith.constant dense<0.000000e+00> : vector<64x8xf32>
    %26 = tpu.matmul %23, %25, %cst_20 {dimension_numbers = #tpu.dot_dimension_numbers<[1], [0], [0], [1], [0, 0, 1, 1], [], []>} : vector<64x4xbf16>, vector<4x8xbf16>, vector<64x8xf32> -> vector<64x8xf32>
    %27 = arith.addf %18, %26 : vector<64x8xf32>
    %c0_21 = arith.constant 0 : index
    %c0_22 = arith.constant 0 : index
    %28 = vector.load %arg6[%c0_21, %c0_22] : memref<64x8xf32, #tpu.memory_space<vmem>>, vector<64x8xf32>
    tpu.vector_store %arg6[%c0_21, %c0_22], %27 {strides = array<i32>} : memref<64x8xf32, #tpu.memory_space<vmem>>, vector<64x8xf32>,
    %c18_i32 = arith.constant 18 : i32
    %29 = arith.addi %c18_i32, %1 : i32
    %c0_23 = arith.constant 0 : index
    %30 = arith.index_cast %29 : i32 to index
    %c0_24 = arith.constant 0 : index
    %c0_25 = arith.constant 0 : index
    %31 = vector.load %arg2[%c0_23, %30, %c0_24, %c0_25] : memref<1x36x9x4xbf16, #tpu.memory_space<vmem>>, vector<1x8x8x4xbf16>
    %32 = vector.shape_cast %31 : vector<1x8x8x4xbf16> to vector<8x8x4xbf16>
    %33 = vector.shape_cast %32 : vector<8x8x4xbf16> to vector<64x4xbf16>
    %c1_26 = arith.constant 1 : index
    %c0_27 = arith.constant 0 : index
    %c0_28 = arith.constant 0 : index
    %c0_29 = arith.constant 0 : index
    %34 = vector.load %arg3[%c1_26, %c0_27, %c0_28, %c0_29] : memref<3x3x4x8xbf16, #tpu.memory_space<vmem>>, vector<1x1x4x8xbf16>
    %35 = vector.shape_cast %34 : vector<1x1x4x8xbf16> to vector<4x8xbf16>
    %cst_30 = arith.constant dense<0.000000e+00> : vector<64x8xf32>
    %36 = tpu.matmul %33, %35, %cst_30 {dimension_numbers = #tpu.dot_dimension_numbers<[1], [0], [0], [1], [0, 0, 1, 1], [], []>} : vector<64x4xbf16>, vector<4x8xbf16>, vector<64x8xf32> -> vector<64x8xf32>
    %c27_i32 = arith.constant 27 : i32
    %37 = arith.addi %c27_i32, %1 : i32
    %c0_31 = arith.constant 0 : index
    %38 = arith.index_cast %37 : i32 to index
    %c0_32 = arith.constant 0 : index
    %c0_33 = arith.constant 0 : index
    %39 = vector.load %arg2[%c0_31, %38, %c0_32, %c0_33] : memref<1x36x9x4xbf16, #tpu.memory_space<vmem>>, vector<1x8x8x4xbf16>
    %40 = vector.shape_cast %39 : vector<1x8x8x4xbf16> to vector<8x8x4xbf16>
    %41 = vector.shape_cast %40 : vector<8x8x4xbf16> to vector<64x4xbf16>
    %c1_34 = arith.constant 1 : index
    %c1_35 = arith.constant 1 : index
    %c0_36 = arith.constant 0 : index
    %c0_37 = arith.constant 0 : index
    %42 = vector.load %arg3[%c1_34, %c1_35, %c0_36, %c0_37] : memref<3x3x4x8xbf16, #tpu.memory_space<vmem>>, vector<1x1x4x8xbf16>
    %43 = vector.shape_cast %42 : vector<1x1x4x8xbf16> to vector<4x8xbf16>
    %cst_38 = arith.constant dense<0.000000e+00> : vector<64x8xf32>
    %44 = tpu.matmul %41, %43, %cst_38 {dimension_numbers = #tpu.dot_dimension_numbers<[1], [0], [0], [1], [0, 0, 1, 1], [], []>} : vector<64x4xbf16>, vector<4x8xbf16>, vector<64x8xf32> -> vector<64x8xf32>
    %45 = arith.addf %36, %44 : vector<64x8xf32>
    %c18_i32_39 = arith.constant 18 : i32
    %46 = arith.addi %c18_i32_39, %1 : i32
    %c0_40 = arith.constant 0 : index
    %47 = arith.index_cast %46 : i32 to index
    %c1_41 = arith.constant 1 : index
    %c0_42 = arith.constant 0 : index
    %48 = vector.load %arg2[%c0_40, %47, %c1_41, %c0_42] : memref<1x36x9x4xbf16, #tpu.memory_space<vmem>>, vector<1x8x8x4xbf16>
    %49 = vector.shape_cast %48 : vector<1x8x8x4xbf16> to vector<8x8x4xbf16>
    %50 = vector.shape_cast %49 : vector<8x8x4xbf16> to vector<64x4xbf16>
    %c1_43 = arith.constant 1 : index
    %c2_44 = arith.constant 2 : index
    %c0_45 = arith.constant 0 : index
    %c0_46 = arith.constant 0 : index
    %51 = vector.load %arg3[%c1_43, %c2_44, %c0_45, %c0_46] : memref<3x3x4x8xbf16, #tpu.memory_space<vmem>>, vector<1x1x4x8xbf16>
    %52 = vector.shape_cast %51 : vector<1x1x4x8xbf16> to vector<4x8xbf16>
    %cst_47 = arith.constant dense<0.000000e+00> : vector<64x8xf32>
    %53 = tpu.matmul %50, %52, %cst_47 {dimension_numbers = #tpu.dot_dimension_numbers<[1], [0], [0], [1], [0, 0, 1, 1], [], []>} : vector<64x4xbf16>, vector<4x8xbf16>, vector<64x8xf32> -> vector<64x8xf32>
    %54 = arith.addf %45, %53 : vector<64x8xf32>
    %c0_48 = arith.constant 0 : index
    %c0_49 = arith.constant 0 : index
    %55 = vector.load %arg6[%c0_48, %c0_49] : memref<64x8xf32, #tpu.memory_space<vmem>>, vector<64x8xf32>
    %56 = arith.addf %55, %54 : vector<64x8xf32>
    %c0_50 = arith.constant 0 : index
    %c0_51 = arith.constant 0 : index
    %57 = vector.load %arg6[%c0_50, %c0_51] : memref<64x8xf32, #tpu.memory_space<vmem>>, vector<64x8xf32>
    tpu.vector_store %arg6[%c0_50, %c0_51], %56 {strides = array<i32>} : memref<64x8xf32, #tpu.memory_space<vmem>>, vector<64x8xf32>,
    %c1_i32 = arith.constant 1 : i32
    %58 = arith.addi %c1_i32, %1 : i32
    %c0_52 = arith.constant 0 : index
    %59 = arith.index_cast %58 : i32 to index
    %c0_53 = arith.constant 0 : index
    %c0_54 = arith.constant 0 : index
    %60 = vector.load %arg2[%c0_52, %59, %c0_53, %c0_54] : memref<1x36x9x4xbf16, #tpu.memory_space<vmem>>, vector<1x8x8x4xbf16>
    %61 = vector.shape_cast %60 : vector<1x8x8x4xbf16> to vector<8x8x4xbf16>
    %62 = vector.shape_cast %61 : vector<8x8x4xbf16> to vector<64x4xbf16>
    %c2_55 = arith.constant 2 : index
    %c0_56 = arith.constant 0 : index
    %c0_57 = arith.constant 0 : index
    %c0_58 = arith.constant 0 : index
    %63 = vector.load %arg3[%c2_55, %c0_56, %c0_57, %c0_58] : memref<3x3x4x8xbf16, #tpu.memory_space<vmem>>, vector<1x1x4x8xbf16>
    %64 = vector.shape_cast %63 : vector<1x1x4x8xbf16> to vector<4x8xbf16>
    %cst_59 = arith.constant dense<0.000000e+00> : vector<64x8xf32>
    %65 = tpu.matmul %62, %64, %cst_59 {dimension_numbers = #tpu.dot_dimension_numbers<[1], [0], [0], [1], [0, 0, 1, 1], [], []>} : vector<64x4xbf16>, vector<4x8xbf16>, vector<64x8xf32> -> vector<64x8xf32>
    %c10_i32 = arith.constant 10 : i32
    %66 = arith.addi %c10_i32, %1 : i32
    %c0_60 = arith.constant 0 : index
    %67 = arith.index_cast %66 : i32 to index
    %c0_61 = arith.constant 0 : index
    %c0_62 = arith.constant 0 : index
    %68 = vector.load %arg2[%c0_60, %67, %c0_61, %c0_62] : memref<1x36x9x4xbf16, #tpu.memory_space<vmem>>, vector<1x8x8x4xbf16>
    %69 = vector.shape_cast %68 : vector<1x8x8x4xbf16> to vector<8x8x4xbf16>
    %70 = vector.shape_cast %69 : vector<8x8x4xbf16> to vector<64x4xbf16>
    %c2_63 = arith.constant 2 : index
    %c1_64 = arith.constant 1 : index
    %c0_65 = arith.constant 0 : index
    %c0_66 = arith.constant 0 : index
    %71 = vector.load %arg3[%c2_63, %c1_64, %c0_65, %c0_66] : memref<3x3x4x8xbf16, #tpu.memory_space<vmem>>, vector<1x1x4x8xbf16>
    %72 = vector.shape_cast %71 : vector<1x1x4x8xbf16> to vector<4x8xbf16>
    %cst_67 = arith.constant dense<0.000000e+00> : vector<64x8xf32>
    %73 = tpu.matmul %70, %72, %cst_67 {dimension_numbers = #tpu.dot_dimension_numbers<[1], [0], [0], [1], [0, 0, 1, 1], [], []>} : vector<64x4xbf16>, vector<4x8xbf16>, vector<64x8xf32> -> vector<64x8xf32>
    %74 = arith.addf %65, %73 : vector<64x8xf32>
    %c1_i32_68 = arith.constant 1 : i32
    %75 = arith.addi %c1_i32_68, %1 : i32
    %c0_69 = arith.constant 0 : index
    %76 = arith.index_cast %75 : i32 to index
    %c1_70 = arith.constant 1 : index
    %c0_71 = arith.constant 0 : index
    %77 = vector.load %arg2[%c0_69, %76, %c1_70, %c0_71] : memref<1x36x9x4xbf16, #tpu.memory_space<vmem>>, vector<1x8x8x4xbf16>
    %78 = vector.shape_cast %77 : vector<1x8x8x4xbf16> to vector<8x8x4xbf16>
    %79 = vector.shape_cast %78 : vector<8x8x4xbf16> to vector<64x4xbf16>
    %c2_72 = arith.constant 2 : index
    %c2_73 = arith.constant 2 : index
    %c0_74 = arith.constant 0 : index
    %c0_75 = arith.constant 0 : index
    %80 = vector.load %arg3[%c2_72, %c2_73, %c0_74, %c0_75] : memref<3x3x4x8xbf16, #tpu.memory_space<vmem>>, vector<1x1x4x8xbf16>
    %81 = vector.shape_cast %80 : vector<1x1x4x8xbf16> to vector<4x8xbf16>
    %cst_76 = arith.constant dense<0.000000e+00> : vector<64x8xf32>
    %82 = tpu.matmul %79, %81, %cst_76 {dimension_numbers = #tpu.dot_dimension_numbers<[1], [0], [0], [1], [0, 0, 1, 1], [], []>} : vector<64x4xbf16>, vector<4x8xbf16>, vector<64x8xf32> -> vector<64x8xf32>
    %83 = arith.addf %74, %82 : vector<64x8xf32>
    %c0_77 = arith.constant 0 : index
    %c0_78 = arith.constant 0 : index
    %84 = vector.load %arg6[%c0_77, %c0_78] : memref<64x8xf32, #tpu.memory_space<vmem>>, vector<64x8xf32>
    %85 = arith.addf %84, %83 : vector<64x8xf32>
    %86 = vector.shape_cast %85 : vector<64x8xf32> to vector<8x8x8xf32>
    %87 = arith.truncf %86 : vector<8x8x8xf32> to vector<8x8x8xbf16>
    %c0_79 = arith.constant 0 : index
    %c0_80 = arith.constant 0 : index
    %c0_81 = arith.constant 0 : index
    %c0_82 = arith.constant 0 : index
    %88 = vector.load %arg4[%c0_79, %c0_80, %c0_81, %c0_82] : memref<1x8x8x8xbf16, #tpu.memory_space<vmem>>, vector<1x8x8x8xbf16>
    %89 = vector.shape_cast %88 : vector<1x8x8x8xbf16> to vector<8x8x8xbf16>
    %90 = vector.shape_cast %87 : vector<8x8x8xbf16> to vector<1x8x8x8xbf16>
    tpu.vector_store %arg4[%c0_79, %c0_80, %c0_81, %c0_82], %90 {strides = array<i32>} : memref<1x8x8x8xbf16, #tpu.memory_space<vmem>>, vector<1x8x8x8xbf16>,
    %cst_83 = arith.constant dense<0.000000e+00> : vector<8xf32>
    %91 = vector.multi_reduction <add>, %85, %cst_83 [0] : vector<64x8xf32> to vector<8xf32>
    %92 = vector.shape_cast %91 : vector<8xf32> to vector<1x8xf32>
    %c0_84 = arith.constant 0 : index
    %c0_85 = arith.constant 0 : index
    %c0_86 = arith.constant 0 : index
    %c0_87 = arith.constant 0 : index
    %93 = vector.load %arg5[%c0_84, %c0_85, %c0_86, %c0_87] : memref<1x1x2x8xf32, #tpu.memory_space<vmem>>, vector<1x1x1x8xf32>
    %94 = vector.shape_cast %93 : vector<1x1x1x8xf32> to vector<1x8xf32>
    %95 = vector.shape_cast %92 : vector<1x8xf32> to vector<1x1x1x8xf32>
    tpu.vector_store %arg5[%c0_84, %c0_85, %c0_86, %c0_87], %95 {strides = array<i32>} : memref<1x1x2x8xf32, #tpu.memory_space<vmem>>, vector<1x1x1x8xf32>,
    %96 = arith.mulf %85, %85 : vector<64x8xf32>
    %cst_88 = arith.constant dense<0.000000e+00> : vector<8xf32>
    %97 = vector.multi_reduction <add>, %96, %cst_88 [0] : vector<64x8xf32> to vector<8xf32>
    %98 = vector.shape_cast %97 : vector<8xf32> to vector<1x8xf32>
    %c0_89 = arith.constant 0 : index
    %c0_90 = arith.constant 0 : index
    %c1_91 = arith.constant 1 : index
    %c0_92 = arith.constant 0 : index
    %99 = vector.load %arg5[%c0_89, %c0_90, %c1_91, %c0_92] : memref<1x1x2x8xf32, #tpu.memory_space<vmem>>, vector<1x1x1x8xf32>
    %100 = vector.shape_cast %99 : vector<1x1x1x8xf32> to vector<1x8xf32>
    %101 = vector.shape_cast %98 : vector<1x8xf32> to vector<1x1x1x8xf32>
    tpu.vector_store %arg5[%c0_89, %c0_90, %c1_91, %c0_92], %101 {strides = array<i32>} : memref<1x1x2x8xf32, #tpu.memory_space<vmem>>, vector<1x1x1x8xf32>,
    return
  }
  func.func @transform_0(%arg0: i32, %arg1: i32) -> (i32, i32, i32, i32) {
    %c0_i32 = arith.constant 0 : i32
    %c0_i32_0 = arith.constant 0 : i32
    %c0_i32_1 = arith.constant 0 : i32
    %c0_i32_2 = arith.constant 0 : i32
    return %arg0, %c0_i32, %c0_i32_0, %c0_i32_1 : i32, i32, i32, i32
  }
  func.func @transform_1(%arg0: i32, %arg1: i32) -> (i32, i32, i32, i32) {
    %c0_i32 = arith.constant 0 : i32
    %c0_i32_0 = arith.constant 0 : i32
    %c0_i32_1 = arith.constant 0 : i32
    %c0_i32_2 = arith.constant 0 : i32
    %c0_i32_3 = arith.constant 0 : i32
    return %c0_i32, %c0_i32_0, %c0_i32_1, %c0_i32_2 : i32, i32, i32, i32
  }
  func.func @transform_2(%arg0: i32, %arg1: i32) -> (i32, i32, i32, i32) {
    %c0_i32 = arith.constant 0 : i32
    %c0_i32_0 = arith.constant 0 : i32
    %c0_i32_1 = arith.constant 0 : i32
    return %arg0, %arg1, %c0_i32, %c0_i32_0 : i32, i32, i32, i32
  }
  func.func @transform_3(%arg0: i32, %arg1: i32) -> (i32, i32, i32, i32) {
    %c0_i32 = arith.constant 0 : i32
    %c0_i32_0 = arith.constant 0 : i32
    %c0_i32_1 = arith.constant 0 : i32
    return %arg0, %arg1, %c0_i32, %c0_i32_0 : i32, i32, i32, i32
  }
}

module attributes {stable_mosaic.version = 11 : i64} {
  func.func @_conv_fused_kernel(%arg0: i32, %arg1: i32, %arg2: memref<1x8x8x8xbf16, #tpu.memory_space<vmem>>, %arg3: memref<3x3x8x8xbf16, #tpu.memory_space<vmem>>, %arg4: memref<1x8xf32, #tpu.memory_space<vmem>>, %arg5: memref<1x8xf32, #tpu.memory_space<vmem>>, %arg6: memref<1x8x8x8xbf16, #tpu.memory_space<vmem>>, %arg7: memref<1x1x2x8xf32, #tpu.memory_space<vmem>>, %arg8: memref<10x10x8xbf16, #tpu.memory_space<vmem>>, %arg9: memref<64x8xf32, #tpu.memory_space<vmem>>) attributes {dimension_semantics = [#tpu.dimension_semantics<parallel>, #tpu.dimension_semantics<arbitrary>], iteration_bounds = array<i64: 2, 1>, scalar_prefetch = 0 : i64, scratch_operands = 2 : i64, tpu.core_type = #tpu.core_type<tc>, window_params = [{transform_indices = @transform_0, window_bounds = array<i64: 1, 8, 8, 8>}, {pipeline_mode = #tpu.pipeline_mode<synchronous>, transform_indices = @transform_1, window_bounds = array<i64: 3, 3, 8, 8>}, {pipeline_mode = #tpu.pipeline_mode<synchronous>, transform_indices = @transform_2, window_bounds = array<i64: 1, 8>}, {pipeline_mode = #tpu.pipeline_mode<synchronous>, transform_indices = @transform_3, window_bounds = array<i64: 1, 8>}, {transform_indices = @transform_4, window_bounds = array<i64: 1, 8, 8, 8>}, {transform_indices = @transform_5, window_bounds = array<i64: 1, 1, 2, 8>}]} {
    %c0_i32 = arith.constant 0 : i32
    %0 = arith.cmpi eq, %arg1, %c0_i32 : i32
    %1 = arith.extui %0 : i1 to i32
    %c0_i32_0 = arith.constant 0 : i32
    %2 = arith.cmpi ne, %1, %c0_i32_0 : i32
    scf.if %2 {
      %cst_89 = arith.constant 0.000000e+00 : bf16
      %96 = vector.broadcast %cst_89 : bf16 to vector<10x10x8xbf16>
      %c0_90 = arith.constant 0 : index
      %c0_91 = arith.constant 0 : index
      %c0_92 = arith.constant 0 : index
      %97 = vector.load %arg8[%c0_90, %c0_91, %c0_92] : memref<10x10x8xbf16, #tpu.memory_space<vmem>>, vector<10x10x8xbf16>
      tpu.vector_store %arg8[%c0_90, %c0_91, %c0_92], %96 {strides = array<i32>} : memref<10x10x8xbf16, #tpu.memory_space<vmem>>, vector<10x10x8xbf16>,
      %c0_93 = arith.constant 0 : index
      %c0_94 = arith.constant 0 : index
      %98 = vector.load %arg4[%c0_93, %c0_94] : memref<1x8xf32, #tpu.memory_space<vmem>>, vector<1x8xf32>
      %99 = vector.shape_cast %98 : vector<1x8xf32> to vector<1x1x8xf32>
      %c0_95 = arith.constant 0 : index
      %c0_96 = arith.constant 0 : index
      %100 = vector.load %arg5[%c0_95, %c0_96] : memref<1x8xf32, #tpu.memory_space<vmem>>, vector<1x8xf32>
      %101 = vector.shape_cast %100 : vector<1x8xf32> to vector<1x1x8xf32>
      %c0_97 = arith.constant 0 : index
      %c0_98 = arith.constant 0 : index
      %c0_99 = arith.constant 0 : index
      %c0_100 = arith.constant 0 : index
      %102 = vector.load %arg2[%c0_97, %c0_98, %c0_99, %c0_100] : memref<1x8x8x8xbf16, #tpu.memory_space<vmem>>, vector<1x8x8x8xbf16>
      %103 = vector.shape_cast %102 : vector<1x8x8x8xbf16> to vector<8x8x8xbf16>
      %104 = arith.extf %103 : vector<8x8x8xbf16> to vector<8x8x8xf32>
      %105 = vector.broadcast %99 : vector<1x1x8xf32> to vector<8x8x8xf32>
      %106 = arith.mulf %104, %105 : vector<8x8x8xf32>
      %107 = vector.broadcast %101 : vector<1x1x8xf32> to vector<8x8x8xf32>
      %108 = arith.addf %106, %107 : vector<8x8x8xf32>
      %cst_101 = arith.constant 0.000000e+00 : f32
      %109 = vector.broadcast %cst_101 : f32 to vector<8x8x8xf32>
      %110 = arith.maximumf %108, %109 : vector<8x8x8xf32>
      %111 = arith.truncf %110 : vector<8x8x8xf32> to vector<8x8x8xbf16>
      %c1_102 = arith.constant 1 : index
      %c1_103 = arith.constant 1 : index
      %c0_104 = arith.constant 0 : index
      %112 = vector.load %arg8[%c1_102, %c1_103, %c0_104] : memref<10x10x8xbf16, #tpu.memory_space<vmem>>, vector<8x8x8xbf16>
      tpu.vector_store %arg8[%c1_102, %c1_103, %c0_104], %111 {strides = array<i32>} : memref<10x10x8xbf16, #tpu.memory_space<vmem>>, vector<8x8x8xbf16>,
    } else {
    }
    %c8_i32 = arith.constant 8 : i32
    %3 = arith.muli %arg1, %c8_i32 : i32
    %4 = tpu.assume_multiple %3, 8 : i32
    %c0_i32_1 = arith.constant 0 : i32
    %5 = arith.addi %4, %c0_i32_1 : i32
    %6 = arith.index_cast %5 : i32 to index
    %c0 = arith.constant 0 : index
    %c0_2 = arith.constant 0 : index
    %7 = vector.load %arg8[%6, %c0, %c0_2] : memref<10x10x8xbf16, #tpu.memory_space<vmem>>, vector<8x8x8xbf16>
    %8 = vector.shape_cast %7 : vector<8x8x8xbf16> to vector<64x8xbf16>
    %c0_3 = arith.constant 0 : index
    %c0_4 = arith.constant 0 : index
    %c0_5 = arith.constant 0 : index
    %c0_6 = arith.constant 0 : index
    %9 = vector.load %arg3[%c0_3, %c0_4, %c0_5, %c0_6] : memref<3x3x8x8xbf16, #tpu.memory_space<vmem>>, vector<1x1x8x8xbf16>
    %10 = vector.shape_cast %9 : vector<1x1x8x8xbf16> to vector<8x8xbf16>
    %cst = arith.constant dense<0.000000e+00> : vector<64x8xf32>
    %11 = tpu.matmul %8, %10, %cst {dimension_numbers = #tpu.dot_dimension_numbers<[1], [0], [0], [1], [0, 0, 1, 1], [], []>} : vector<64x8xbf16>, vector<8x8xbf16>, vector<64x8xf32> -> vector<64x8xf32>
    %c0_i32_7 = arith.constant 0 : i32
    %12 = arith.addi %4, %c0_i32_7 : i32
    %13 = arith.index_cast %12 : i32 to index
    %c1 = arith.constant 1 : index
    %c0_8 = arith.constant 0 : index
    %14 = vector.load %arg8[%13, %c1, %c0_8] : memref<10x10x8xbf16, #tpu.memory_space<vmem>>, vector<8x8x8xbf16>
    %15 = vector.shape_cast %14 : vector<8x8x8xbf16> to vector<64x8xbf16>
    %c0_9 = arith.constant 0 : index
    %c1_10 = arith.constant 1 : index
    %c0_11 = arith.constant 0 : index
    %c0_12 = arith.constant 0 : index
    %16 = vector.load %arg3[%c0_9, %c1_10, %c0_11, %c0_12] : memref<3x3x8x8xbf16, #tpu.memory_space<vmem>>, vector<1x1x8x8xbf16>
    %17 = vector.shape_cast %16 : vector<1x1x8x8xbf16> to vector<8x8xbf16>
    %cst_13 = arith.constant dense<0.000000e+00> : vector<64x8xf32>
    %18 = tpu.matmul %15, %17, %cst_13 {dimension_numbers = #tpu.dot_dimension_numbers<[1], [0], [0], [1], [0, 0, 1, 1], [], []>} : vector<64x8xbf16>, vector<8x8xbf16>, vector<64x8xf32> -> vector<64x8xf32>
    %19 = arith.addf %11, %18 : vector<64x8xf32>
    %c0_i32_14 = arith.constant 0 : i32
    %20 = arith.addi %4, %c0_i32_14 : i32
    %21 = arith.index_cast %20 : i32 to index
    %c2 = arith.constant 2 : index
    %c0_15 = arith.constant 0 : index
    %22 = vector.load %arg8[%21, %c2, %c0_15] : memref<10x10x8xbf16, #tpu.memory_space<vmem>>, vector<8x8x8xbf16>
    %23 = vector.shape_cast %22 : vector<8x8x8xbf16> to vector<64x8xbf16>
    %c0_16 = arith.constant 0 : index
    %c2_17 = arith.constant 2 : index
    %c0_18 = arith.constant 0 : index
    %c0_19 = arith.constant 0 : index
    %24 = vector.load %arg3[%c0_16, %c2_17, %c0_18, %c0_19] : memref<3x3x8x8xbf16, #tpu.memory_space<vmem>>, vector<1x1x8x8xbf16>
    %25 = vector.shape_cast %24 : vector<1x1x8x8xbf16> to vector<8x8xbf16>
    %cst_20 = arith.constant dense<0.000000e+00> : vector<64x8xf32>
    %26 = tpu.matmul %23, %25, %cst_20 {dimension_numbers = #tpu.dot_dimension_numbers<[1], [0], [0], [1], [0, 0, 1, 1], [], []>} : vector<64x8xbf16>, vector<8x8xbf16>, vector<64x8xf32> -> vector<64x8xf32>
    %27 = arith.addf %19, %26 : vector<64x8xf32>
    %c0_21 = arith.constant 0 : index
    %c0_22 = arith.constant 0 : index
    %28 = vector.load %arg9[%c0_21, %c0_22] : memref<64x8xf32, #tpu.memory_space<vmem>>, vector<64x8xf32>
    tpu.vector_store %arg9[%c0_21, %c0_22], %27 {strides = array<i32>} : memref<64x8xf32, #tpu.memory_space<vmem>>, vector<64x8xf32>,
    %c1_i32 = arith.constant 1 : i32
    %29 = arith.addi %4, %c1_i32 : i32
    %30 = arith.index_cast %29 : i32 to index
    %c0_23 = arith.constant 0 : index
    %c0_24 = arith.constant 0 : index
    %31 = vector.load %arg8[%30, %c0_23, %c0_24] : memref<10x10x8xbf16, #tpu.memory_space<vmem>>, vector<8x8x8xbf16>
    %32 = vector.shape_cast %31 : vector<8x8x8xbf16> to vector<64x8xbf16>
    %c1_25 = arith.constant 1 : index
    %c0_26 = arith.constant 0 : index
    %c0_27 = arith.constant 0 : index
    %c0_28 = arith.constant 0 : index
    %33 = vector.load %arg3[%c1_25, %c0_26, %c0_27, %c0_28] : memref<3x3x8x8xbf16, #tpu.memory_space<vmem>>, vector<1x1x8x8xbf16>
    %34 = vector.shape_cast %33 : vector<1x1x8x8xbf16> to vector<8x8xbf16>
    %cst_29 = arith.constant dense<0.000000e+00> : vector<64x8xf32>
    %35 = tpu.matmul %32, %34, %cst_29 {dimension_numbers = #tpu.dot_dimension_numbers<[1], [0], [0], [1], [0, 0, 1, 1], [], []>} : vector<64x8xbf16>, vector<8x8xbf16>, vector<64x8xf32> -> vector<64x8xf32>
    %c1_i32_30 = arith.constant 1 : i32
    %36 = arith.addi %4, %c1_i32_30 : i32
    %37 = arith.index_cast %36 : i32 to index
    %c1_31 = arith.constant 1 : index
    %c0_32 = arith.constant 0 : index
    %38 = vector.load %arg8[%37, %c1_31, %c0_32] : memref<10x10x8xbf16, #tpu.memory_space<vmem>>, vector<8x8x8xbf16>
    %39 = vector.shape_cast %38 : vector<8x8x8xbf16> to vector<64x8xbf16>
    %c1_33 = arith.constant 1 : index
    %c1_34 = arith.constant 1 : index
    %c0_35 = arith.constant 0 : index
    %c0_36 = arith.constant 0 : index
    %40 = vector.load %arg3[%c1_33, %c1_34, %c0_35, %c0_36] : memref<3x3x8x8xbf16, #tpu.memory_space<vmem>>, vector<1x1x8x8xbf16>
    %41 = vector.shape_cast %40 : vector<1x1x8x8xbf16> to vector<8x8xbf16>
    %cst_37 = arith.constant dense<0.000000e+00> : vector<64x8xf32>
    %42 = tpu.matmul %39, %41, %cst_37 {dimension_numbers = #tpu.dot_dimension_numbers<[1], [0], [0], [1], [0, 0, 1, 1], [], []>} : vector<64x8xbf16>, vector<8x8xbf16>, vector<64x8xf32> -> vector<64x8xf32>
    %43 = arith.addf %35, %42 : vector<64x8xf32>
    %c1_i32_38 = arith.constant 1 : i32
    %44 = arith.addi %4, %c1_i32_38 : i32
    %45 = arith.index_cast %44 : i32 to index
    %c2_39 = arith.constant 2 : index
    %c0_40 = arith.constant 0 : index
    %46 = vector.load %arg8[%45, %c2_39, %c0_40] : memref<10x10x8xbf16, #tpu.memory_space<vmem>>, vector<8x8x8xbf16>
    %47 = vector.shape_cast %46 : vector<8x8x8xbf16> to vector<64x8xbf16>
    %c1_41 = arith.constant 1 : index
    %c2_42 = arith.constant 2 : index
    %c0_43 = arith.constant 0 : index
    %c0_44 = arith.constant 0 : index
    %48 = vector.load %arg3[%c1_41, %c2_42, %c0_43, %c0_44] : memref<3x3x8x8xbf16, #tpu.memory_space<vmem>>, vector<1x1x8x8xbf16>
    %49 = vector.shape_cast %48 : vector<1x1x8x8xbf16> to vector<8x8xbf16>
    %cst_45 = arith.constant dense<0.000000e+00> : vector<64x8xf32>
    %50 = tpu.matmul %47, %49, %cst_45 {dimension_numbers = #tpu.dot_dimension_numbers<[1], [0], [0], [1], [0, 0, 1, 1], [], []>} : vector<64x8xbf16>, vector<8x8xbf16>, vector<64x8xf32> -> vector<64x8xf32>
    %51 = arith.addf %43, %50 : vector<64x8xf32>
    %c0_46 = arith.constant 0 : index
    %c0_47 = arith.constant 0 : index
    %52 = vector.load %arg9[%c0_46, %c0_47] : memref<64x8xf32, #tpu.memory_space<vmem>>, vector<64x8xf32>
    %53 = arith.addf %52, %51 : vector<64x8xf32>
    %c0_48 = arith.constant 0 : index
    %c0_49 = arith.constant 0 : index
    %54 = vector.load %arg9[%c0_48, %c0_49] : memref<64x8xf32, #tpu.memory_space<vmem>>, vector<64x8xf32>
    tpu.vector_store %arg9[%c0_48, %c0_49], %53 {strides = array<i32>} : memref<64x8xf32, #tpu.memory_space<vmem>>, vector<64x8xf32>,
    %c2_i32 = arith.constant 2 : i32
    %55 = arith.addi %4, %c2_i32 : i32
    %56 = arith.index_cast %55 : i32 to index
    %c0_50 = arith.constant 0 : index
    %c0_51 = arith.constant 0 : index
    %57 = vector.load %arg8[%56, %c0_50, %c0_51] : memref<10x10x8xbf16, #tpu.memory_space<vmem>>, vector<8x8x8xbf16>
    %58 = vector.shape_cast %57 : vector<8x8x8xbf16> to vector<64x8xbf16>
    %c2_52 = arith.constant 2 : index
    %c0_53 = arith.constant 0 : index
    %c0_54 = arith.constant 0 : index
    %c0_55 = arith.constant 0 : index
    %59 = vector.load %arg3[%c2_52, %c0_53, %c0_54, %c0_55] : memref<3x3x8x8xbf16, #tpu.memory_space<vmem>>, vector<1x1x8x8xbf16>
    %60 = vector.shape_cast %59 : vector<1x1x8x8xbf16> to vector<8x8xbf16>
    %cst_56 = arith.constant dense<0.000000e+00> : vector<64x8xf32>
    %61 = tpu.matmul %58, %60, %cst_56 {dimension_numbers = #tpu.dot_dimension_numbers<[1], [0], [0], [1], [0, 0, 1, 1], [], []>} : vector<64x8xbf16>, vector<8x8xbf16>, vector<64x8xf32> -> vector<64x8xf32>
    %c2_i32_57 = arith.constant 2 : i32
    %62 = arith.addi %4, %c2_i32_57 : i32
    %63 = arith.index_cast %62 : i32 to index
    %c1_58 = arith.constant 1 : index
    %c0_59 = arith.constant 0 : index
    %64 = vector.load %arg8[%63, %c1_58, %c0_59] : memref<10x10x8xbf16, #tpu.memory_space<vmem>>, vector<8x8x8xbf16>
    %65 = vector.shape_cast %64 : vector<8x8x8xbf16> to vector<64x8xbf16>
    %c2_60 = arith.constant 2 : index
    %c1_61 = arith.constant 1 : index
    %c0_62 = arith.constant 0 : index
    %c0_63 = arith.constant 0 : index
    %66 = vector.load %arg3[%c2_60, %c1_61, %c0_62, %c0_63] : memref<3x3x8x8xbf16, #tpu.memory_space<vmem>>, vector<1x1x8x8xbf16>
    %67 = vector.shape_cast %66 : vector<1x1x8x8xbf16> to vector<8x8xbf16>
    %cst_64 = arith.constant dense<0.000000e+00> : vector<64x8xf32>
    %68 = tpu.matmul %65, %67, %cst_64 {dimension_numbers = #tpu.dot_dimension_numbers<[1], [0], [0], [1], [0, 0, 1, 1], [], []>} : vector<64x8xbf16>, vector<8x8xbf16>, vector<64x8xf32> -> vector<64x8xf32>
    %69 = arith.addf %61, %68 : vector<64x8xf32>
    %c2_i32_65 = arith.constant 2 : i32
    %70 = arith.addi %4, %c2_i32_65 : i32
    %71 = arith.index_cast %70 : i32 to index
    %c2_66 = arith.constant 2 : index
    %c0_67 = arith.constant 0 : index
    %72 = vector.load %arg8[%71, %c2_66, %c0_67] : memref<10x10x8xbf16, #tpu.memory_space<vmem>>, vector<8x8x8xbf16>
    %73 = vector.shape_cast %72 : vector<8x8x8xbf16> to vector<64x8xbf16>
    %c2_68 = arith.constant 2 : index
    %c2_69 = arith.constant 2 : index
    %c0_70 = arith.constant 0 : index
    %c0_71 = arith.constant 0 : index
    %74 = vector.load %arg3[%c2_68, %c2_69, %c0_70, %c0_71] : memref<3x3x8x8xbf16, #tpu.memory_space<vmem>>, vector<1x1x8x8xbf16>
    %75 = vector.shape_cast %74 : vector<1x1x8x8xbf16> to vector<8x8xbf16>
    %cst_72 = arith.constant dense<0.000000e+00> : vector<64x8xf32>
    %76 = tpu.matmul %73, %75, %cst_72 {dimension_numbers = #tpu.dot_dimension_numbers<[1], [0], [0], [1], [0, 0, 1, 1], [], []>} : vector<64x8xbf16>, vector<8x8xbf16>, vector<64x8xf32> -> vector<64x8xf32>
    %77 = arith.addf %69, %76 : vector<64x8xf32>
    %c0_73 = arith.constant 0 : index
    %c0_74 = arith.constant 0 : index
    %78 = vector.load %arg9[%c0_73, %c0_74] : memref<64x8xf32, #tpu.memory_space<vmem>>, vector<64x8xf32>
    %79 = arith.addf %78, %77 : vector<64x8xf32>
    %80 = vector.shape_cast %79 : vector<64x8xf32> to vector<8x8x8xf32>
    %81 = arith.truncf %80 : vector<8x8x8xf32> to vector<8x8x8xbf16>
    %c0_75 = arith.constant 0 : index
    %c0_76 = arith.constant 0 : index
    %c0_77 = arith.constant 0 : index
    %c0_78 = arith.constant 0 : index
    %82 = vector.load %arg6[%c0_75, %c0_76, %c0_77, %c0_78] : memref<1x8x8x8xbf16, #tpu.memory_space<vmem>>, vector<1x8x8x8xbf16>
    %83 = vector.shape_cast %82 : vector<1x8x8x8xbf16> to vector<8x8x8xbf16>
    %84 = vector.shape_cast %81 : vector<8x8x8xbf16> to vector<1x8x8x8xbf16>
    tpu.vector_store %arg6[%c0_75, %c0_76, %c0_77, %c0_78], %84 {strides = array<i32>} : memref<1x8x8x8xbf16, #tpu.memory_space<vmem>>, vector<1x8x8x8xbf16>,
    %cst_79 = arith.constant dense<0.000000e+00> : vector<8xf32>
    %85 = vector.multi_reduction <add>, %79, %cst_79 [0] : vector<64x8xf32> to vector<8xf32>
    %86 = vector.shape_cast %85 : vector<8xf32> to vector<1x8xf32>
    %c0_80 = arith.constant 0 : index
    %c0_81 = arith.constant 0 : index
    %c0_82 = arith.constant 0 : index
    %c0_83 = arith.constant 0 : index
    %87 = vector.load %arg7[%c0_80, %c0_81, %c0_82, %c0_83] : memref<1x1x2x8xf32, #tpu.memory_space<vmem>>, vector<1x1x1x8xf32>
    %88 = vector.shape_cast %87 : vector<1x1x1x8xf32> to vector<1x8xf32>
    %89 = vector.shape_cast %86 : vector<1x8xf32> to vector<1x1x1x8xf32>
    tpu.vector_store %arg7[%c0_80, %c0_81, %c0_82, %c0_83], %89 {strides = array<i32>} : memref<1x1x2x8xf32, #tpu.memory_space<vmem>>, vector<1x1x1x8xf32>,
    %90 = arith.mulf %79, %79 : vector<64x8xf32>
    %cst_84 = arith.constant dense<0.000000e+00> : vector<8xf32>
    %91 = vector.multi_reduction <add>, %90, %cst_84 [0] : vector<64x8xf32> to vector<8xf32>
    %92 = vector.shape_cast %91 : vector<8xf32> to vector<1x8xf32>
    %c0_85 = arith.constant 0 : index
    %c0_86 = arith.constant 0 : index
    %c1_87 = arith.constant 1 : index
    %c0_88 = arith.constant 0 : index
    %93 = vector.load %arg7[%c0_85, %c0_86, %c1_87, %c0_88] : memref<1x1x2x8xf32, #tpu.memory_space<vmem>>, vector<1x1x1x8xf32>
    %94 = vector.shape_cast %93 : vector<1x1x1x8xf32> to vector<1x8xf32>
    %95 = vector.shape_cast %92 : vector<1x8xf32> to vector<1x1x1x8xf32>
    tpu.vector_store %arg7[%c0_85, %c0_86, %c1_87, %c0_88], %95 {strides = array<i32>} : memref<1x1x2x8xf32, #tpu.memory_space<vmem>>, vector<1x1x1x8xf32>,
    return
  }
  func.func @transform_0(%arg0: i32, %arg1: i32) -> (i32, i32, i32, i32) {
    %c0_i32 = arith.constant 0 : i32
    %c0_i32_0 = arith.constant 0 : i32
    %c0_i32_1 = arith.constant 0 : i32
    %c0_i32_2 = arith.constant 0 : i32
    return %arg0, %c0_i32, %c0_i32_0, %c0_i32_1 : i32, i32, i32, i32
  }
  func.func @transform_1(%arg0: i32, %arg1: i32) -> (i32, i32, i32, i32) {
    %c0_i32 = arith.constant 0 : i32
    %c0_i32_0 = arith.constant 0 : i32
    %c0_i32_1 = arith.constant 0 : i32
    %c0_i32_2 = arith.constant 0 : i32
    %c0_i32_3 = arith.constant 0 : i32
    return %c0_i32, %c0_i32_0, %c0_i32_1, %c0_i32_2 : i32, i32, i32, i32
  }
  func.func @transform_2(%arg0: i32, %arg1: i32) -> (i32, i32) {
    %c0_i32 = arith.constant 0 : i32
    %c0_i32_0 = arith.constant 0 : i32
    %c0_i32_1 = arith.constant 0 : i32
    return %c0_i32, %c0_i32_0 : i32, i32
  }
  func.func @transform_3(%arg0: i32, %arg1: i32) -> (i32, i32) {
    %c0_i32 = arith.constant 0 : i32
    %c0_i32_0 = arith.constant 0 : i32
    %c0_i32_1 = arith.constant 0 : i32
    return %c0_i32, %c0_i32_0 : i32, i32
  }
  func.func @transform_4(%arg0: i32, %arg1: i32) -> (i32, i32, i32, i32) {
    %c0_i32 = arith.constant 0 : i32
    %c0_i32_0 = arith.constant 0 : i32
    %c0_i32_1 = arith.constant 0 : i32
    return %arg0, %arg1, %c0_i32, %c0_i32_0 : i32, i32, i32, i32
  }
  func.func @transform_5(%arg0: i32, %arg1: i32) -> (i32, i32, i32, i32) {
    %c0_i32 = arith.constant 0 : i32
    %c0_i32_0 = arith.constant 0 : i32
    %c0_i32_1 = arith.constant 0 : i32
    return %arg0, %arg1, %c0_i32, %c0_i32_0 : i32, i32, i32, i32
  }
}

module attributes {stable_mosaic.version = 11 : i64} {
  func.func @_add_bn_relu_kernel(%arg0: i32, %arg1: i32, %arg2: memref<1x8x8x8xbf16, #tpu.memory_space<vmem>>, %arg3: memref<1x8x8x8xbf16, #tpu.memory_space<vmem>>, %arg4: memref<1x8xf32, #tpu.memory_space<vmem>>, %arg5: memref<1x8xf32, #tpu.memory_space<vmem>>, %arg6: memref<1x8xf32, #tpu.memory_space<vmem>>, %arg7: memref<1x8xf32, #tpu.memory_space<vmem>>, %arg8: memref<1x8x8x8xf32, #tpu.memory_space<vmem>>) attributes {dimension_semantics = [#tpu.dimension_semantics<parallel>, #tpu.dimension_semantics<parallel>], iteration_bounds = array<i64: 2, 1>, scalar_prefetch = 0 : i64, scratch_operands = 0 : i64, tpu.core_type = #tpu.core_type<tc>, window_params = [{transform_indices = @transform_0, window_bounds = array<i64: 1, 8, 8, 8>}, {transform_indices = @transform_1, window_bounds = array<i64: 1, 8, 8, 8>}, {pipeline_mode = #tpu.pipeline_mode<synchronous>, transform_indices = @transform_2, window_bounds = array<i64: 1, 8>}, {pipeline_mode = #tpu.pipeline_mode<synchronous>, transform_indices = @transform_3, window_bounds = array<i64: 1, 8>}, {pipeline_mode = #tpu.pipeline_mode<synchronous>, transform_indices = @transform_4, window_bounds = array<i64: 1, 8>}, {pipeline_mode = #tpu.pipeline_mode<synchronous>, transform_indices = @transform_5, window_bounds = array<i64: 1, 8>}, {transform_indices = @transform_6, window_bounds = array<i64: 1, 8, 8, 8>}]} {
    %c0 = arith.constant 0 : index
    %c0_0 = arith.constant 0 : index
    %c0_1 = arith.constant 0 : index
    %c0_2 = arith.constant 0 : index
    %0 = vector.load %arg2[%c0, %c0_0, %c0_1, %c0_2] : memref<1x8x8x8xbf16, #tpu.memory_space<vmem>>, vector<1x8x8x8xbf16>
    %1 = vector.shape_cast %0 : vector<1x8x8x8xbf16> to vector<8x8x8xbf16>
    %2 = arith.extf %1 : vector<8x8x8xbf16> to vector<8x8x8xf32>
    %c0_3 = arith.constant 0 : index
    %c0_4 = arith.constant 0 : index
    %3 = vector.load %arg4[%c0_3, %c0_4] : memref<1x8xf32, #tpu.memory_space<vmem>>, vector<1x8xf32>
    %4 = vector.shape_cast %3 : vector<1x8xf32> to vector<1x1x8xf32>
    %5 = vector.broadcast %4 : vector<1x1x8xf32> to vector<8x8x8xf32>
    %6 = arith.mulf %2, %5 : vector<8x8x8xf32>
    %c0_5 = arith.constant 0 : index
    %c0_6 = arith.constant 0 : index
    %7 = vector.load %arg5[%c0_5, %c0_6] : memref<1x8xf32, #tpu.memory_space<vmem>>, vector<1x8xf32>
    %8 = vector.shape_cast %7 : vector<1x8xf32> to vector<1x1x8xf32>
    %9 = vector.broadcast %8 : vector<1x1x8xf32> to vector<8x8x8xf32>
    %10 = arith.addf %6, %9 : vector<8x8x8xf32>
    %c0_7 = arith.constant 0 : index
    %c0_8 = arith.constant 0 : index
    %c0_9 = arith.constant 0 : index
    %c0_10 = arith.constant 0 : index
    %11 = vector.load %arg3[%c0_7, %c0_8, %c0_9, %c0_10] : memref<1x8x8x8xbf16, #tpu.memory_space<vmem>>, vector<1x8x8x8xbf16>
    %12 = vector.shape_cast %11 : vector<1x8x8x8xbf16> to vector<8x8x8xbf16>
    %13 = arith.extf %12 : vector<8x8x8xbf16> to vector<8x8x8xf32>
    %c0_11 = arith.constant 0 : index
    %c0_12 = arith.constant 0 : index
    %14 = vector.load %arg6[%c0_11, %c0_12] : memref<1x8xf32, #tpu.memory_space<vmem>>, vector<1x8xf32>
    %15 = vector.shape_cast %14 : vector<1x8xf32> to vector<1x1x8xf32>
    %16 = vector.broadcast %15 : vector<1x1x8xf32> to vector<8x8x8xf32>
    %17 = arith.mulf %13, %16 : vector<8x8x8xf32>
    %c0_13 = arith.constant 0 : index
    %c0_14 = arith.constant 0 : index
    %18 = vector.load %arg7[%c0_13, %c0_14] : memref<1x8xf32, #tpu.memory_space<vmem>>, vector<1x8xf32>
    %19 = vector.shape_cast %18 : vector<1x8xf32> to vector<1x1x8xf32>
    %20 = vector.broadcast %19 : vector<1x1x8xf32> to vector<8x8x8xf32>
    %21 = arith.addf %17, %20 : vector<8x8x8xf32>
    %22 = arith.addf %10, %21 : vector<8x8x8xf32>
    %cst = arith.constant 0.000000e+00 : f32
    %23 = vector.broadcast %cst : f32 to vector<8x8x8xf32>
    %24 = arith.maximumf %22, %23 : vector<8x8x8xf32>
    %c0_15 = arith.constant 0 : index
    %c0_16 = arith.constant 0 : index
    %c0_17 = arith.constant 0 : index
    %c0_18 = arith.constant 0 : index
    %25 = vector.load %arg8[%c0_15, %c0_16, %c0_17, %c0_18] : memref<1x8x8x8xf32, #tpu.memory_space<vmem>>, vector<1x8x8x8xf32>
    %26 = vector.shape_cast %25 : vector<1x8x8x8xf32> to vector<8x8x8xf32>
    %27 = vector.shape_cast %24 : vector<8x8x8xf32> to vector<1x8x8x8xf32>
    tpu.vector_store %arg8[%c0_15, %c0_16, %c0_17, %c0_18], %27 {strides = array<i32>} : memref<1x8x8x8xf32, #tpu.memory_space<vmem>>, vector<1x8x8x8xf32>,
    return
  }
  func.func @transform_0(%arg0: i32, %arg1: i32) -> (i32, i32, i32, i32) {
    %c0_i32 = arith.constant 0 : i32
    %c0_i32_0 = arith.constant 0 : i32
    %c0_i32_1 = arith.constant 0 : i32
    return %arg0, %arg1, %c0_i32, %c0_i32_0 : i32, i32, i32, i32
  }
  func.func @transform_1(%arg0: i32, %arg1: i32) -> (i32, i32, i32, i32) {
    %c0_i32 = arith.constant 0 : i32
    %c0_i32_0 = arith.constant 0 : i32
    %c0_i32_1 = arith.constant 0 : i32
    return %arg0, %arg1, %c0_i32, %c0_i32_0 : i32, i32, i32, i32
  }
  func.func @transform_2(%arg0: i32, %arg1: i32) -> (i32, i32) {
    %c0_i32 = arith.constant 0 : i32
    %c0_i32_0 = arith.constant 0 : i32
    %c0_i32_1 = arith.constant 0 : i32
    return %c0_i32, %c0_i32_0 : i32, i32
  }
  func.func @transform_3(%arg0: i32, %arg1: i32) -> (i32, i32) {
    %c0_i32 = arith.constant 0 : i32
    %c0_i32_0 = arith.constant 0 : i32
    %c0_i32_1 = arith.constant 0 : i32
    return %c0_i32, %c0_i32_0 : i32, i32
  }
  func.func @transform_4(%arg0: i32, %arg1: i32) -> (i32, i32) {
    %c0_i32 = arith.constant 0 : i32
    %c0_i32_0 = arith.constant 0 : i32
    %c0_i32_1 = arith.constant 0 : i32
    return %c0_i32, %c0_i32_0 : i32, i32
  }
  func.func @transform_5(%arg0: i32, %arg1: i32) -> (i32, i32) {
    %c0_i32 = arith.constant 0 : i32
    %c0_i32_0 = arith.constant 0 : i32
    %c0_i32_1 = arith.constant 0 : i32
    return %c0_i32, %c0_i32_0 : i32, i32
  }
  func.func @transform_6(%arg0: i32, %arg1: i32) -> (i32, i32, i32, i32) {
    %c0_i32 = arith.constant 0 : i32
    %c0_i32_0 = arith.constant 0 : i32
    %c0_i32_1 = arith.constant 0 : i32
    return %arg0, %arg1, %c0_i32, %c0_i32_0 : i32, i32, i32, i32
  }
}

</mosaic_0001>

<llo_original>
// kernel: basic_block_forward.6
$region0: #{basic_block_forward.6}
  #allocation0 [shape = 'u32[]', space=smem, size = 0x4, offset = 0x4, fixed_abs, tag = 'smem constant byte address 0x4 - core index']
  #allocation1 [shape = 'u32[144,128]{1,0:T(1,128)}', space=vmem, size = 0x12000, scoped, tag = 'internal scratch']
  %s0 = inlined_call_operand.vmem [shape: bf16[2,8,8,4], index: 0, kind: input, shape index: {}]
  %s1 = inlined_call_operand.vmem [shape: bf16[1,1,4,8], index: 1, kind: input, shape index: {}]
  %s2 = inlined_call_operand.vmem [shape: bf16[2,8,8,8], index: 2, kind: output, shape index: {0}]
  %s3 = inlined_call_operand.vmem [shape: f32[2,1,2,8], index: 3, kind: output, shape index: {1}]
  %4 = xla_tuple %s2, %s3
  %s5 = sld [smem:[#allocation0]]
  $region49: #{basic_block_forward.6} parent=0
    _
  %s7 = ssub.s32 1, %s5
  %s8 = scalar_select 0, %s7, %s5
  loop: start=0, step=1, limit=4
  $region2: #{basic_block_forward.6} parent=0 // loop_pre_header
    _
  $region3: #{basic_block_forward.6} parent=0 // loop_header
    %s10 = sphi 0, %s14
    %p11 = scmp.ge.s32.totalorder %s10, 4
    %s17 = sphi 0, %s29
    %s18 = sphi 0, %s25
    %s19 = sphi 0, %s17
    %s20 = sphi 0, %s18
    %s21 = sphi 0, %s19
    %s22 = sphi 0, %s20
    %s32 = sphi 0, %s34
    %s35 = sphi 0, %s32
    %s36 = sphi 0, %s35
    %s52 = sphi 0, %s36
    %s56 = sphi 0, %s56
    %s58 = sphi 0, %s56
    %s59 = sphi 0, %s58
    %s73 = sphi 0, %s59
    %s81 = sphi 0, %s83
    %s84 = sphi 0, %s81
    %s85 = sphi 0, %s84
    %s101 = sphi 0, %s85
    %s109 = sphi 0, %s111
    %s112 = sphi 0, %s109
    %s113 = sphi 0, %s112
    %s129 = sphi 0, %s113
  $region4: #{basic_block_forward.6} parent=0 // loop_header_branch
    %13 = sbr.rel (%p11) target = $region8
  $region5: #{basic_block_forward.6} parent=0 // loop_body
    %s15 = ssub.s32 %s10, 1
    %s16 = ssub.s32 %s10, 2
    %s23 = sadd.s32 1, %s18
    %p24 = scmp.ge.s32.totalorder %s23, 1
    %s25 = scalar_select %p24, 0, %s23
    %s26 = sadd.s32 1, %s17
    %s27 = scalar_select %p24, %s26, %s17
    %p28 = scmp.ge.s32.totalorder %s27, 2
    %s29 = scalar_select %p28, 0, %s27
    %s30 = ssub.s32 %s17, %s29
    %p31 = scmp.eq.s32.totalorder %s30, 0
    %s33 = sadd.s32 %s32, 1
    %s34 = scalar_select %p31, %s32, %s33
    %p37 = pneg %p31
    %p38 = scmp.eq.s32.totalorder %s10, 1
    %p39 = por %p37, %p38
    %p40 = scmp.ne.s32.totalorder %s32, %s35
    %p41 = scmp.eq.s32.totalorder %s10, 0
    %p42 = por %p40, %p41
    %p43 = scmp.ne.s32.totalorder %s32, %s35
    %p44 = scmp.eq.s32.totalorder %s15, 1
    %p45 = por %p43, %p44
    %p46 = scmp.ne.s32.totalorder %s35, %s36
    %p47 = scmp.eq.s32.totalorder %s15, 0
    %p48 = por %p46, %p47
    %p49 = scmp.ne.s32.totalorder %s35, %s36
    %p50 = scmp.eq.s32.totalorder %s16, 1
    %p51 = por %p49, %p50
    %p53 = scmp.ne.s32.totalorder %s36, %s52
    %p54 = scmp.eq.s32.totalorder %s16, 0
    %p55 = por %p53, %p54
    %s57 = sadd.s32 %s56, 1
    %p60 = scmp.eq.s32.totalorder %s10, 1
    %p61 = scmp.ne.s32.totalorder %s56, %s58
    %p62 = scmp.eq.s32.totalorder %s10, 0
    %p63 = por %p61, %p62
    %p64 = scmp.ne.s32.totalorder %s56, %s58
    %p65 = scmp.eq.s32.totalorder %s15, 1
    %p66 = por %p64, %p65
    %p67 = scmp.ne.s32.totalorder %s58, %s59
    %p68 = scmp.eq.s32.totalorder %s15, 0
    %p69 = por %p67, %p68
    %p70 = scmp.ne.s32.totalorder %s58, %s59
    %p71 = scmp.eq.s32.totalorder %s16, 1
    %p72 = por %p70, %p71
    %p74 = scmp.ne.s32.totalorder %s59, %s73
    %p75 = scmp.eq.s32.totalorder %s16, 0
    %p76 = por %p74, %p75
    %s77 = ssub.s32 %s17, %s29
    %s78 = ssub.s32 %s18, %s25
    %s79 = sor.u32 %s77, %s78
    %p80 = scmp.eq.s32.totalorder %s79, 0
    %s82 = sadd.s32 %s81, 1
    %s83 = scalar_select %p80, %s81, %s82
    %p86 = pneg %p80
    %p87 = scmp.eq.s32.totalorder %s10, 1
    %p88 = por %p86, %p87
    %p89 = scmp.ne.s32.totalorder %s81, %s84
    %p90 = scmp.eq.s32.totalorder %s10, 0
    %p91 = por %p89, %p90
    %p92 = scmp.ne.s32.totalorder %s81, %s84
    %p93 = scmp.eq.s32.totalorder %s15, 1
    %p94 = por %p92, %p93
    %p95 = scmp.ne.s32.totalorder %s84, %s85
    %p96 = scmp.eq.s32.totalorder %s15, 0
    %p97 = por %p95, %p96
    %p98 = scmp.ne.s32.totalorder %s84, %s85
    %p99 = scmp.eq.s32.totalorder %s16, 1
    %p100 = por %p98, %p99
    %p102 = scmp.ne.s32.totalorder %s85, %s101
    %p103 = scmp.eq.s32.totalorder %s16, 0
    %p104 = por %p102, %p103
    %s105 = ssub.s32 %s17, %s29
    %s106 = ssub.s32 %s18, %s25
    %s107 = sor.u32 %s105, %s106
    %p108 = scmp.eq.s32.totalorder %s107, 0
    %s110 = sadd.s32 %s109, 1
    %s111 = scalar_select %p108, %s109, %s110
    %p114 = pneg %p108
    %p115 = scmp.eq.s32.totalorder %s10, 1
    %p116 = por %p114, %p115
    %p117 = scmp.ne.s32.totalorder %s109, %s112
    %p118 = scmp.eq.s32.totalorder %s10, 0
    %p119 = por %p117, %p118
    %p120 = scmp.ne.s32.totalorder %s109, %s112
    %p121 = scmp.eq.s32.totalorder %s15, 1
    %p122 = por %p120, %p121
    %p123 = scmp.ne.s32.totalorder %s112, %s113
    %p124 = scmp.eq.s32.totalorder %s15, 0
    %p125 = por %p123, %p124
    %p126 = scmp.ne.s32.totalorder %s112, %s113
    %p127 = scmp.eq.s32.totalorder %s16, 1
    %p128 = por %p126, %p127
    %p130 = scmp.ne.s32.totalorder %s113, %s129
    %p131 = scmp.eq.s32.totalorder %s16, 0
    %p132 = por %p130, %p131
    %p133 = scmp.le.s32.totalorder 1, %s10
    %p134 = scmp.lt.s32.totalorder %s10, 3
    %p135 = pnand %p133, %p134
    %p136 = pneg %p135
    // Predicated region
    $region9: #{basic_block_forward.6} parent=5 // pred_check
      _
    $region10: #{basic_block_forward.6} parent=5 // pred_check_branch
      %138 = sbr.rel (%p135) target = $region12
    $region11: #{basic_block_forward.6} parent=5 // pred_region
      %s139 = ssub.s32 %s10, 1
      // Predicated region
      $region13: #{basic_block_forward.6} parent=11 // pred_check
        %p140 = pneg %p69
      $region14: #{basic_block_forward.6} parent=11 // pred_check_branch
        %142 = sbr.rel (%p140) target = $region16
      $region15: #{basic_block_forward.6} parent=11 // pred_region
        _
      $region16: #{basic_block_forward.6} parent=11 // pred_fallthru
        _
    $region12: #{basic_block_forward.6} parent=5 // pred_fallthru
      _
    %p143 = scmp.lt.s32.totalorder %s10, 2
    // Predicated region
    $region17: #{basic_block_forward.6} parent=5 // pred_check
      %p144 = pneg %p143
    $region18: #{basic_block_forward.6} parent=5 // pred_check_branch
      %146 = sbr.rel (%p144) target = $region20
    $region19: #{basic_block_forward.6} parent=5 // pred_region
      // Predicated region
      $region21: #{basic_block_forward.6} parent=19 // pred_check
        %p147 = pneg %p42
      $region22: #{basic_block_forward.6} parent=19 // pred_check_branch
        %149 = sbr.rel (%p147) target = $region24
      $region23: #{basic_block_forward.6} parent=19 // pred_region
        %p150 = scmp.lt.s32.totalorder %s17, 1
        %s151 = scalar_select %p150, %s17, 1
        %s152 = smul.addr %s151, 8
        %s153 = smul.addr %s152, 4
        %s154 = scalar_lea.vmem %s0, %s153
      $region24: #{basic_block_forward.6} parent=19 // pred_fallthru
        _
    $region20: #{basic_block_forward.6} parent=5 // pred_fallthru
      _
    %p155 = scmp.le.s32.totalorder 1, %s10
    %p156 = scmp.lt.s32.totalorder %s10, 3
    %p157 = pnand %p155, %p156
    %p158 = pneg %p157
    // Predicated region
    $region25: #{basic_block_forward.6} parent=5 // pred_check
      _
    $region26: #{basic_block_forward.6} parent=5 // pred_check_branch
      %160 = sbr.rel (%p157) target = $region28
    $region27: #{basic_block_forward.6} parent=5 // pred_region
      %s161 = ssub.s32 %s10, 1
      %p162 = scmp.lt.s32.totalorder %s19, 1
      %s163 = scalar_select %p162, %s19, 1
      %s164 = smul.addr %s163, 8
      %s165 = smul.addr %s164, 4
      %s166 = scalar_lea.vmem %s0, %s165
      %p167 = pneg %p48
      %p168 = pneg %p45
      %p169 = pneg %p69
      %p170 = pneg %p66
      %p171 = pneg %p97
      %p172 = pneg %p94
      %s173 = smul.u32 8, %s20
      %p174 = scmp.lt.s32.totalorder %s19, 1
      %s175 = scalar_select %p174, %s19, 1
      %p176 = scmp.lt.s32.totalorder %s173, 7
      %s177 = scalar_select %p176, %s173, 7
      %s178 = smul.addr %s175, 8
      %s179 = sadd.s32 %s177, %s178
      %s180 = smul.addr %s179, 4
      %s181 = scalar_lea.vmem %s2, %s180
      %p182 = pneg %p125
      %p183 = pneg %p122
      %p184 = scmp.lt.s32.totalorder %s19, 1
      %s185 = scalar_select %p184, %s19, 1
      %p186 = scmp.lt.s32.totalorder %s20, 0
      %s187 = scalar_select %p186, %s20, 0
      %s188 = sadd.s32 %s187, %s185
      %s189 = smul.addr %s188, 2
      %s190 = scalar_lea.vmem %s3, %s189
      %p191 = scmp.lt.s32.totalorder %s19, 1
      %s192 = scalar_select %p191, %s19, 1
      %s193 = smul.addr %s192, 8
      %s194 = smul.addr %s193, 4
      %s195 = scalar_lea.vmem %s0, %s194
      %s196 = smul.u32 8, %s20
      %p197 = scmp.lt.s32.totalorder %s19, 1
      %s198 = scalar_select %p197, %s19, 1
      %p199 = scmp.lt.s32.totalorder %s196, 7
      %s200 = scalar_select %p199, %s196, 7
      %s201 = smul.addr %s198, 8
      %s202 = sadd.s32 %s200, %s201
      %s203 = smul.addr %s202, 4
      %s204 = scalar_lea.vmem %s2, %s203
      %s205 = smul.u32 8, %s20
      %p206 = scmp.lt.s32.totalorder %s19, 1
      %s207 = scalar_select %p206, %s19, 1
      %p208 = scmp.lt.s32.totalorder %s20, 0
      %s209 = scalar_select %p208, %s20, 0
      %s210 = sadd.s32 %s209, %s207
      %s211 = smul.addr %s210, 2
      %s212 = scalar_lea.vmem %s3, %s211
      %s214 = smul.u32 %s20, 8
      %s215 = smul.addr %s214, 4
      %s216 = scalar_lea.vmem %s195, %s215
      %v217 = vld [vmem:[%s216] sm:$0xf]
      %v218 = vld [vmem:[%s216 + $0x4] sm:$0xf]
      %v219 = vld [vmem:[%s216 + $0x8] sm:$0xf]
      %v220 = vld [vmem:[%s216 + $0xc] sm:$0xf]
      %v221 = vld [vmem:[%s216 + $0x10] sm:$0xf]
      %v222 = vld [vmem:[%s216 + $0x14] sm:$0xf]
      %v223 = vld [vmem:[%s216 + $0x18] sm:$0xf]
      %v224 = vld [vmem:[%s216 + $0x1c] sm:$0xf]
      %v225 = vld [vmem:[%s1] sm:$0x3]
      %v234 = vunpack.c.l.b16 %v217
      %v235 = vunpack.c.l.b16 %v218
      %v236 = vunpack.c.l.b16 %v219
      %v237 = vunpack.c.l.b16 %v220
      %v238 = vunpack.c.l.b16 %v221
      %v239 = vunpack.c.l.b16 %v222
      %v240 = vunpack.c.l.b16 %v223
      %v241 = vunpack.c.l.b16 %v224
      %v242 = vpack.c.b16 %v235, %v234
      %v243 = vpack.c.b16 %v237, %v236
      %v244 = vpack.c.b16 %v239, %v238
      %v245 = vpack.c.b16 %v241, %v240
      %vm246 = vcmask 31744
      %v248 = vsel %vm246, %v242, 0
      %v251 = vsel %vm246, %v243, 0
      %v254 = vsel %vm246, %v244, 0
      %v257 = vsel %vm246, %v245, 0
      %vm259 = vcmask 1041408
      %v261 = vsel %vm259, %v225, 0
      %263 = vmatprep.subr.bf16.mxu0 0
      %264 = vmatpush1.bf16.msra.mxu0 %v261
      %265 = vmatprep.subr.bf16.mxu0 0
      %266 = vmatpush1.bf16.msra.mxu0 0
      %267 = vmatprep.subr.bf16.mxu0 0
      %268 = vmatpush1.bf16.msra.mxu0 0
      %269 = vmatprep.subr.bf16.mxu0 0
      %270 = vmatpush1.bf16.msra.mxu0 0
      %271 = vmatprep.subr.bf16.mxu0 0
      %272 = vmatpush1.bf16.msra.mxu0 0
      %273 = vmatprep.subr.bf16.mxu0 0
      %274 = vmatpush1.bf16.msra.mxu0 0
      %275 = vmatprep.subr.bf16.mxu0 0
      %276 = vmatpush1.bf16.msra.mxu0 0
      %277 = vmatprep.subr.bf16.mxu0 0
      %278 = vmatpush1.bf16.msra.mxu0 0
      %279 = vmatprep.subr.bf16.mxu0 0
      %280 = vmatpush1.bf16.msra.mxu0 0
      %281 = vmatprep.subr.bf16.mxu0 0
      %282 = vmatpush1.bf16.msra.mxu0 0
      %283 = vmatprep.subr.bf16.mxu0 0
      %284 = vmatpush1.bf16.msra.mxu0 0
      %285 = vmatprep.subr.bf16.mxu0 0
      %286 = vmatpush1.bf16.msra.mxu0 0
      %287 = vmatprep.subr.bf16.mxu0 0
      %288 = vmatpush1.bf16.msra.mxu0 0
      %289 = vmatprep.subr.bf16.mxu0 0
      %290 = vmatpush1.bf16.msra.mxu0 0
      %291 = vmatprep.subr.bf16.mxu0 0
      %292 = vmatpush1.bf16.msra.mxu0 0
      %293 = vmatprep.subr.bf16.mxu0 0
      %294 = vmatpush1.bf16.msra.mxu0 0
      %295 = vmatprep.mubr.bf16.mxu0 0
      %296 = vmatmul.mubr.bf16.gmra.mrb[0].mxu0 %v248
      %v297 = vpop.f32.mrb[0].mxu0
      %v298 = vadd.f32 0.0, %v297
      %v299 = vpop.f32.mrb[0].mxu0
      %v300 = vpop.f32.mrb[0].mxu0
      %v301 = vadd.f32 0.0, %v300
      %v302 = vpop.f32.mrb[0].mxu0
      %303 = vmatprep.mubr.bf16.mxu0 0
      %304 = vmatmul.mubr.bf16.gmra.mrb[0].mxu0 %v251
      %v305 = vpop.f32.mrb[0].mxu0
      %v306 = vadd.f32 0.0, %v305
      %v307 = vpop.f32.mrb[0].mxu0
      %v308 = vpop.f32.mrb[0].mxu0
      %v309 = vadd.f32 0.0, %v308
      %v310 = vpop.f32.mrb[0].mxu0
      %311 = vmatprep.mubr.bf16.mxu0 0
      %312 = vmatmul.mubr.bf16.gmra.mrb[0].mxu0 %v254
      %v313 = vpop.f32.mrb[0].mxu0
      %v314 = vadd.f32 0.0, %v313
      %v315 = vpop.f32.mrb[0].mxu0
      %v316 = vpop.f32.mrb[0].mxu0
      %v317 = vadd.f32 0.0, %v316
      %v318 = vpop.f32.mrb[0].mxu0
      %319 = vmatprep.mubr.bf16.mxu0 0
      %320 = vmatmul.mubr.bf16.gmra.mrb[0].mxu0 %v257
      %v321 = vpop.f32.mrb[0].mxu0
      %v322 = vadd.f32 0.0, %v321
      %v323 = vpop.f32.mrb[0].mxu0
      %v324 = vpop.f32.mrb[0].mxu0
      %v325 = vadd.f32 0.0, %v324
      %v326 = vpop.f32.mrb[0].mxu0
      %327 = vdwg.mxu0
      %v328 = vpack.c.bf16 %v298, %v298
      %v329 = vpack.c.bf16 %v301, %v301
      %v330 = vpack.c.bf16 %v306, %v306
      %v331 = vpack.c.bf16 %v309, %v309
      %v332 = vpack.c.bf16 %v314, %v314
      %v333 = vpack.c.bf16 %v317, %v317
      %v334 = vpack.c.bf16 %v322, %v322
      %v335 = vpack.c.bf16 %v325, %v325
      %vm336 = vcmask 60416
      %337 = vst.msk [vmem:[%s204] sm:$0xf] %vm336, %v328
      %338 = vst.msk [vmem:[%s204 + $0x4] sm:$0xf] %vm336, %v329
      %339 = vst.msk [vmem:[%s204 + $0x8] sm:$0xf] %vm336, %v330
      %340 = vst.msk [vmem:[%s204 + $0xc] sm:$0xf] %vm336, %v331
      %341 = vst.msk [vmem:[%s204 + $0x10] sm:$0xf] %vm336, %v332
      %342 = vst.msk [vmem:[%s204 + $0x14] sm:$0xf] %vm336, %v333
      %343 = vst.msk [vmem:[%s204 + $0x18] sm:$0xf] %vm336, %v334
      %344 = vst.msk [vmem:[%s204 + $0x1c] sm:$0xf] %vm336, %v335
      %vm345 = vcmask 64512
      %v346 = vsel %vm345, %v298, 0.0
      %v347 = vsel %vm345, %v301, 0.0
      %v348 = vadd.f32 %v346, %v347
      %v349 = vsel %vm345, %v306, 0.0
      %v350 = vadd.f32 %v348, %v349
      %v351 = vsel %vm345, %v309, 0.0
      %v352 = vadd.f32 %v350, %v351
      %v353 = vsel %vm345, %v314, 0.0
      %v354 = vadd.f32 %v352, %v353
      %v355 = vsel %vm345, %v317, 0.0
      %v356 = vadd.f32 %v354, %v355
      %v357 = vsel %vm345, %v322, 0.0
      %v358 = vadd.f32 %v356, %v357
      %v359 = vsel %vm345, %v325, 0.0
      %v360 = vadd.f32 %v358, %v359
      %v361 = vrot.slane %v360, 4
      %v362 = vadd.f32 %v360, %v361
      %v363 = vrot.slane %v362, 2
      %v364 = vadd.f32 %v362, %v363
      %v365 = vrot.slane %v364, 1
      %v366 = vadd.f32 %v364, %v365
      %vm367 = vcmask 57344
      %368 = vst.msk [vmem:[%s212] sm:$0x1] %vm367, %v366
      %v369 = vmul.f32 %v298, %v298
      %v370 = vmul.f32 %v301, %v301
      %v371 = vmul.f32 %v306, %v306
      %v372 = vmul.f32 %v309, %v309
      %v373 = vmul.f32 %v314, %v314
      %v374 = vmul.f32 %v317, %v317
      %v375 = vmul.f32 %v322, %v322
      %v376 = vmul.f32 %v325, %v325
      %v377 = vsel %vm345, %v369, 0.0
      %v378 = vsel %vm345, %v370, 0.0
      %v379 = vadd.f32 %v377, %v378
      %v380 = vsel %vm345, %v371, 0.0
      %v381 = vadd.f32 %v379, %v380
      %v382 = vsel %vm345, %v372, 0.0
      %v383 = vadd.f32 %v381, %v382
      %v384 = vsel %vm345, %v373, 0.0
      %v385 = vadd.f32 %v383, %v384
      %v386 = vsel %vm345, %v374, 0.0
      %v387 = vadd.f32 %v385, %v386
      %v388 = vsel %vm345, %v375, 0.0
      %v389 = vadd.f32 %v387, %v388
      %v390 = vsel %vm345, %v376, 0.0
      %v391 = vadd.f32 %v389, %v390
      %v392 = vrot.slane %v391, 4
      %v393 = vadd.f32 %v391, %v392
      %v394 = vrot.slane %v393, 2
      %v395 = vadd.f32 %v393, %v394
      %v396 = vrot.slane %v395, 1
      %v397 = vadd.f32 %v395, %v396
      %398 = vst.msk [vmem:[%s212 + $0x1] sm:$0x1] %vm367, %v397
      %s399 = smul.u32 8, %s20
      %p400 = scmp.lt.s32.totalorder %s19, 1
      %s401 = scalar_select %p400, %s19, 1
      %p402 = scmp.lt.s32.totalorder %s399, 7
      %s403 = scalar_select %p402, %s399, 7
      %s404 = smul.addr %s401, 8
      %s405 = sadd.s32 %s403, %s404
      %s406 = smul.addr %s405, 4
      %s407 = scalar_lea.vmem %s2, %s406
      %p408 = scmp.lt.s32.totalorder %s19, 1
      %s409 = scalar_select %p408, %s19, 1
      %p410 = scmp.lt.s32.totalorder %s20, 0
      %s411 = scalar_select %p410, %s20, 0
      %s412 = sadd.s32 %s411, %s409
      %s413 = smul.addr %s412, 2
      %s414 = scalar_lea.vmem %s3, %s413
      // Predicated region
      $region29: #{basic_block_forward.6} parent=27 // pred_check
        %p415 = pneg %p94
      $region30: #{basic_block_forward.6} parent=27 // pred_check_branch
        %417 = sbr.rel (%p415) target = $region32
      $region31: #{basic_block_forward.6} parent=27 // pred_region
        %s418 = smul.u32 8, %s20
      $region32: #{basic_block_forward.6} parent=27 // pred_fallthru
        _
      // Predicated region
      $region33: #{basic_block_forward.6} parent=27 // pred_check
        %p419 = pneg %p122
      $region34: #{basic_block_forward.6} parent=27 // pred_check_branch
        %421 = sbr.rel (%p419) target = $region36
      $region35: #{basic_block_forward.6} parent=27 // pred_region
        _
      $region36: #{basic_block_forward.6} parent=27 // pred_fallthru
        _
    $region28: #{basic_block_forward.6} parent=5 // pred_fallthru
      _
    %p422 = scmp.le.s32.totalorder 2, %s10
    // Predicated region
    $region37: #{basic_block_forward.6} parent=5 // pred_check
      %p423 = pneg %p422
    $region38: #{basic_block_forward.6} parent=5 // pred_check_branch
      %425 = sbr.rel (%p423) target = $region40
    $region39: #{basic_block_forward.6} parent=5 // pred_region
      %s426 = ssub.s32 %s10, 2
      // Predicated region
      $region41: #{basic_block_forward.6} parent=39 // pred_check
        %p427 = pneg %p100
      $region42: #{basic_block_forward.6} parent=39 // pred_check_branch
        %429 = sbr.rel (%p427) target = $region44
      $region43: #{basic_block_forward.6} parent=39 // pred_region
        %s430 = smul.u32 8, %s22
        %p431 = scmp.lt.s32.totalorder %s21, 1
        %s432 = scalar_select %p431, %s21, 1
        %p433 = scmp.lt.s32.totalorder %s430, 7
        %s434 = scalar_select %p433, %s430, 7
        %s435 = smul.addr %s432, 8
        %s436 = sadd.s32 %s434, %s435
        %s437 = smul.addr %s436, 4
        %s438 = scalar_lea.vmem %s2, %s437
      $region44: #{basic_block_forward.6} parent=39 // pred_fallthru
        _
      // Predicated region
      $region45: #{basic_block_forward.6} parent=39 // pred_check
        %p439 = pneg %p128
      $region46: #{basic_block_forward.6} parent=39 // pred_check_branch
        %441 = sbr.rel (%p439) target = $region48
      $region47: #{basic_block_forward.6} parent=39 // pred_region
        %p442 = scmp.lt.s32.totalorder %s21, 1
        %s443 = scalar_select %p442, %s21, 1
        %p444 = scmp.lt.s32.totalorder %s22, 0
        %s445 = scalar_select %p444, %s22, 0
        %s446 = sadd.s32 %s445, %s443
        %s447 = smul.addr %s446, 2
        %s448 = scalar_lea.vmem %s3, %s447
      $region48: #{basic_block_forward.6} parent=39 // pred_fallthru
        _
    $region40: #{basic_block_forward.6} parent=5 // pred_fallthru
      _
  $region6: #{basic_block_forward.6} parent=0 // loop_footer
    %s14 = sadd.s32 1, %s10
  $region7: #{basic_block_forward.6} parent=0 // loop_footer_branch
    %9 = sbr.rel target = $region3
  $region8: #{basic_block_forward.6} parent=0 // loop_exit
    _

// kernel: basic_block_forward.7
$region0: #{basic_block_forward.7}
  #allocation0 [shape = 'u32[]', space=smem, size = 0x4, offset = 0x4, fixed_abs, tag = 'smem constant byte address 0x4 - core index']
  #allocation1 [shape = 'u32[144,128]{1,0:T(1,128)}', space=vmem, size = 0x12000, scoped, tag = 'internal scratch']
  %s0 = inlined_call_operand.vmem [shape: bf16[2,8,8,8], index: 0, kind: input, shape index: {}]
  %s1 = inlined_call_operand.vmem [shape: bf16[2,8,8,8], index: 1, kind: input, shape index: {}]
  %s2 = inlined_call_operand.vmem [shape: f32[1,8], index: 2, kind: input, shape index: {}]
  %s3 = inlined_call_operand.vmem [shape: f32[1,8], index: 3, kind: input, shape index: {}]
  %s4 = inlined_call_operand.vmem [shape: f32[1,8], index: 4, kind: input, shape index: {}]
  %s5 = inlined_call_operand.vmem [shape: f32[1,8], index: 5, kind: input, shape index: {}]
  %s6 = inlined_call_operand.vmem [shape: f32[2,8,8,8], index: 6, kind: output, shape index: {}]
  %s7 = sld [smem:[#allocation0]]
  $region57: #{basic_block_forward.7} parent=0
    _
  %s9 = ssub.s32 1, %s7
  %s10 = scalar_select 0, %s9, %s7
  loop: start=0, step=1, limit=4
  $region2: #{basic_block_forward.7} parent=0 // loop_pre_header
    _
  $region3: #{basic_block_forward.7} parent=0 // loop_header
    %s12 = sphi 0, %s16
    %p13 = scmp.ge.s32.totalorder %s12, 4
    %s19 = sphi 0, %s31
    %s20 = sphi 0, %s27
    %s21 = sphi 0, %s19
    %s22 = sphi 0, %s20
    %s23 = sphi 0, %s21
    %s24 = sphi 0, %s22
    %s36 = sphi 0, %s38
    %s39 = sphi 0, %s36
    %s40 = sphi 0, %s39
    %s56 = sphi 0, %s40
    %s64 = sphi 0, %s66
    %s67 = sphi 0, %s64
    %s68 = sphi 0, %s67
    %s84 = sphi 0, %s68
    %s88 = sphi 0, %s88
    %s90 = sphi 0, %s88
    %s91 = sphi 0, %s90
    %s105 = sphi 0, %s91
    %s109 = sphi 0, %s109
    %s111 = sphi 0, %s109
    %s112 = sphi 0, %s111
    %s126 = sphi 0, %s112
    %s130 = sphi 0, %s130
    %s132 = sphi 0, %s130
    %s133 = sphi 0, %s132
    %s147 = sphi 0, %s133
    %s151 = sphi 0, %s151
    %s153 = sphi 0, %s151
    %s154 = sphi 0, %s153
    %s168 = sphi 0, %s154
    %s176 = sphi 0, %s178
    %s179 = sphi 0, %s176
    %s180 = sphi 0, %s179
    %s196 = sphi 0, %s180
  $region4: #{basic_block_forward.7} parent=0 // loop_header_branch
    %15 = sbr.rel (%p13) target = $region8
  $region5: #{basic_block_forward.7} parent=0 // loop_body
    %s17 = ssub.s32 %s12, 1
    %s18 = ssub.s32 %s12, 2
    %s25 = sadd.s32 1, %s20
    %p26 = scmp.ge.s32.totalorder %s25, 1
    %s27 = scalar_select %p26, 0, %s25
    %s28 = sadd.s32 1, %s19
    %s29 = scalar_select %p26, %s28, %s19
    %p30 = scmp.ge.s32.totalorder %s29, 2
    %s31 = scalar_select %p30, 0, %s29
    %s32 = ssub.s32 %s19, %s31
    %s33 = ssub.s32 %s20, %s27
    %s34 = sor.u32 %s32, %s33
    %p35 = scmp.eq.s32.totalorder %s34, 0
    %s37 = sadd.s32 %s36, 1
    %s38 = scalar_select %p35, %s36, %s37
    %p41 = pneg %p35
    %p42 = scmp.eq.s32.totalorder %s12, 1
    %p43 = por %p41, %p42
    %p44 = scmp.ne.s32.totalorder %s36, %s39
    %p45 = scmp.eq.s32.totalorder %s12, 0
    %p46 = por %p44, %p45
    %p47 = scmp.ne.s32.totalorder %s36, %s39
    %p48 = scmp.eq.s32.totalorder %s17, 1
    %p49 = por %p47, %p48
    %p50 = scmp.ne.s32.totalorder %s39, %s40
    %p51 = scmp.eq.s32.totalorder %s17, 0
    %p52 = por %p50, %p51
    %p53 = scmp.ne.s32.totalorder %s39, %s40
    %p54 = scmp.eq.s32.totalorder %s18, 1
    %p55 = por %p53, %p54
    %p57 = scmp.ne.s32.totalorder %s40, %s56
    %p58 = scmp.eq.s32.totalorder %s18, 0
    %p59 = por %p57, %p58
    %s60 = ssub.s32 %s19, %s31
    %s61 = ssub.s32 %s20, %s27
    %s62 = sor.u32 %s60, %s61
    %p63 = scmp.eq.s32.totalorder %s62, 0
    %s65 = sadd.s32 %s64, 1
    %s66 = scalar_select %p63, %s64, %s65
    %p69 = pneg %p63
    %p70 = scmp.eq.s32.totalorder %s12, 1
    %p71 = por %p69, %p70
    %p72 = scmp.ne.s32.totalorder %s64, %s67
    %p73 = scmp.eq.s32.totalorder %s12, 0
    %p74 = por %p72, %p73
    %p75 = scmp.ne.s32.totalorder %s64, %s67
    %p76 = scmp.eq.s32.totalorder %s17, 1
    %p77 = por %p75, %p76
    %p78 = scmp.ne.s32.totalorder %s67, %s68
    %p79 = scmp.eq.s32.totalorder %s17, 0
    %p80 = por %p78, %p79
    %p81 = scmp.ne.s32.totalorder %s67, %s68
    %p82 = scmp.eq.s32.totalorder %s18, 1
    %p83 = por %p81, %p82
    %p85 = scmp.ne.s32.totalorder %s68, %s84
    %p86 = scmp.eq.s32.totalorder %s18, 0
    %p87 = por %p85, %p86
    %s89 = sadd.s32 %s88, 1
    %p92 = scmp.eq.s32.totalorder %s12, 1
    %p93 = scmp.ne.s32.totalorder %s88, %s90
    %p94 = scmp.eq.s32.totalorder %s12, 0
    %p95 = por %p93, %p94
    %p96 = scmp.ne.s32.totalorder %s88, %s90
    %p97 = scmp.eq.s32.totalorder %s17, 1
    %p98 = por %p96, %p97
    %p99 = scmp.ne.s32.totalorder %s90, %s91
    %p100 = scmp.eq.s32.totalorder %s17, 0
    %p101 = por %p99, %p100
    %p102 = scmp.ne.s32.totalorder %s90, %s91
    %p103 = scmp.eq.s32.totalorder %s18, 1
    %p104 = por %p102, %p103
    %p106 = scmp.ne.s32.totalorder %s91, %s105
    %p107 = scmp.eq.s32.totalorder %s18, 0
    %p108 = por %p106, %p107
    %s110 = sadd.s32 %s109, 1
    %p113 = scmp.eq.s32.totalorder %s12, 1
    %p114 = scmp.ne.s32.totalorder %s109, %s111
    %p115 = scmp.eq.s32.totalorder %s12, 0
    %p116 = por %p114, %p115
    %p117 = scmp.ne.s32.totalorder %s109, %s111
    %p118 = scmp.eq.s32.totalorder %s17, 1
    %p119 = por %p117, %p118
    %p120 = scmp.ne.s32.totalorder %s111, %s112
    %p121 = scmp.eq.s32.totalorder %s17, 0
    %p122 = por %p120, %p121
    %p123 = scmp.ne.s32.totalorder %s111, %s112
    %p124 = scmp.eq.s32.totalorder %s18, 1
    %p125 = por %p123, %p124
    %p127 = scmp.ne.s32.totalorder %s112, %s126
    %p128 = scmp.eq.s32.totalorder %s18, 0
    %p129 = por %p127, %p128
    %s131 = sadd.s32 %s130, 1
    %p134 = scmp.eq.s32.totalorder %s12, 1
    %p135 = scmp.ne.s32.totalorder %s130, %s132
    %p136 = scmp.eq.s32.totalorder %s12, 0
    %p137 = por %p135, %p136
    %p138 = scmp.ne.s32.totalorder %s130, %s132
    %p139 = scmp.eq.s32.totalorder %s17, 1
    %p140 = por %p138, %p139
    %p141 = scmp.ne.s32.totalorder %s132, %s133
    %p142 = scmp.eq.s32.totalorder %s17, 0
    %p143 = por %p141, %p142
    %p144 = scmp.ne.s32.totalorder %s132, %s133
    %p145 = scmp.eq.s32.totalorder %s18, 1
    %p146 = por %p144, %p145
    %p148 = scmp.ne.s32.totalorder %s133, %s147
    %p149 = scmp.eq.s32.totalorder %s18, 0
    %p150 = por %p148, %p149
    %s152 = sadd.s32 %s151, 1
    %p155 = scmp.eq.s32.totalorder %s12, 1
    %p156 = scmp.ne.s32.totalorder %s151, %s153
    %p157 = scmp.eq.s32.totalorder %s12, 0
    %p158 = por %p156, %p157
    %p159 = scmp.ne.s32.totalorder %s151, %s153
    %p160 = scmp.eq.s32.totalorder %s17, 1
    %p161 = por %p159, %p160
    %p162 = scmp.ne.s32.totalorder %s153, %s154
    %p163 = scmp.eq.s32.totalorder %s17, 0
    %p164 = por %p162, %p163
    %p165 = scmp.ne.s32.totalorder %s153, %s154
    %p166 = scmp.eq.s32.totalorder %s18, 1
    %p167 = por %p165, %p166
    %p169 = scmp.ne.s32.totalorder %s154, %s168
    %p170 = scmp.eq.s32.totalorder %s18, 0
    %p171 = por %p169, %p170
    %s172 = ssub.s32 %s19, %s31
    %s173 = ssub.s32 %s20, %s27
    %s174 = sor.u32 %s172, %s173
    %p175 = scmp.eq.s32.totalorder %s174, 0
    %s177 = sadd.s32 %s176, 1
    %s178 = scalar_select %p175, %s176, %s177
    %p181 = pneg %p175
    %p182 = scmp.eq.s32.totalorder %s12, 1
    %p183 = por %p181, %p182
    %p184 = scmp.ne.s32.totalorder %s176, %s179
    %p185 = scmp.eq.s32.totalorder %s12, 0
    %p186 = por %p184, %p185
    %p187 = scmp.ne.s32.totalorder %s176, %s179
    %p188 = scmp.eq.s32.totalorder %s17, 1
    %p189 = por %p187, %p188
    %p190 = scmp.ne.s32.totalorder %s179, %s180
    %p191 = scmp.eq.s32.totalorder %s17, 0
    %p192 = por %p190, %p191
    %p193 = scmp.ne.s32.totalorder %s179, %s180
    %p194 = scmp.eq.s32.totalorder %s18, 1
    %p195 = por %p193, %p194
    %p197 = scmp.ne.s32.totalorder %s180, %s196
    %p198 = scmp.eq.s32.totalorder %s18, 0
    %p199 = por %p197, %p198
    %p200 = scmp.le.s32.totalorder 1, %s12
    %p201 = scmp.lt.s32.totalorder %s12, 3
    %p202 = pnand %p200, %p201
    %p203 = pneg %p202
    // Predicated region
    $region9: #{basic_block_forward.7} parent=5 // pred_check
      _
    $region10: #{basic_block_forward.7} parent=5 // pred_check_branch
      %205 = sbr.rel (%p202) target = $region12
    $region11: #{basic_block_forward.7} parent=5 // pred_region
      %s206 = ssub.s32 %s12, 1
      // Predicated region
      $region13: #{basic_block_forward.7} parent=11 // pred_check
        %p207 = pneg %p101
      $region14: #{basic_block_forward.7} parent=11 // pred_check_branch
        %209 = sbr.rel (%p207) target = $region16
      $region15: #{basic_block_forward.7} parent=11 // pred_region
        _
      $region16: #{basic_block_forward.7} parent=11 // pred_fallthru
        _
      // Predicated region
      $region17: #{basic_block_forward.7} parent=11 // pred_check
        %p210 = pneg %p122
      $region18: #{basic_block_forward.7} parent=11 // pred_check_branch
        %212 = sbr.rel (%p210) target = $region20
      $region19: #{basic_block_forward.7} parent=11 // pred_region
        _
      $region20: #{basic_block_forward.7} parent=11 // pred_fallthru
        _
      // Predicated region
      $region21: #{basic_block_forward.7} parent=11 // pred_check
        %p213 = pneg %p143
      $region22: #{basic_block_forward.7} parent=11 // pred_check_branch
        %215 = sbr.rel (%p213) target = $region24
      $region23: #{basic_block_forward.7} parent=11 // pred_region
        _
      $region24: #{basic_block_forward.7} parent=11 // pred_fallthru
        _
      // Predicated region
      $region25: #{basic_block_forward.7} parent=11 // pred_check
        %p216 = pneg %p164
      $region26: #{basic_block_forward.7} parent=11 // pred_check_branch
        %218 = sbr.rel (%p216) target = $region28
      $region27: #{basic_block_forward.7} parent=11 // pred_region
        _
      $region28: #{basic_block_forward.7} parent=11 // pred_fallthru
        _
    $region12: #{basic_block_forward.7} parent=5 // pred_fallthru
      _
    %p219 = scmp.lt.s32.totalorder %s12, 2
    // Predicated region
    $region29: #{basic_block_forward.7} parent=5 // pred_check
      %p220 = pneg %p219
    $region30: #{basic_block_forward.7} parent=5 // pred_check_branch
      %222 = sbr.rel (%p220) target = $region32
    $region31: #{basic_block_forward.7} parent=5 // pred_region
      // Predicated region
      $region33: #{basic_block_forward.7} parent=31 // pred_check
        %p223 = pneg %p46
      $region34: #{basic_block_forward.7} parent=31 // pred_check_branch
        %225 = sbr.rel (%p223) target = $region36
      $region35: #{basic_block_forward.7} parent=31 // pred_region
        %s226 = smul.u32 8, %s20
        %p227 = scmp.lt.s32.totalorder %s19, 1
        %s228 = scalar_select %p227, %s19, 1
        %p229 = scmp.lt.s32.totalorder %s226, 7
        %s230 = scalar_select %p229, %s226, 7
        %s231 = smul.addr %s228, 8
        %s232 = sadd.s32 %s230, %s231
        %s233 = smul.addr %s232, 4
        %s234 = scalar_lea.vmem %s0, %s233
        %s235 = smul.u32 8, %s20
      $region36: #{basic_block_forward.7} parent=31 // pred_fallthru
        _
      // Predicated region
      $region37: #{basic_block_forward.7} parent=31 // pred_check
        %p236 = pneg %p74
      $region38: #{basic_block_forward.7} parent=31 // pred_check_branch
        %238 = sbr.rel (%p236) target = $region40
      $region39: #{basic_block_forward.7} parent=31 // pred_region
        %s239 = smul.u32 8, %s20
        %p240 = scmp.lt.s32.totalorder %s19, 1
        %s241 = scalar_select %p240, %s19, 1
        %p242 = scmp.lt.s32.totalorder %s239, 7
        %s243 = scalar_select %p242, %s239, 7
        %s244 = smul.addr %s241, 8
        %s245 = sadd.s32 %s243, %s244
        %s246 = smul.addr %s245, 4
        %s247 = scalar_lea.vmem %s1, %s246
        %s248 = smul.u32 8, %s20
      $region40: #{basic_block_forward.7} parent=31 // pred_fallthru
        _
    $region32: #{basic_block_forward.7} parent=5 // pred_fallthru
      _
    %p249 = scmp.le.s32.totalorder 1, %s12
    %p250 = scmp.lt.s32.totalorder %s12, 3
    %p251 = pnand %p249, %p250
    %p252 = pneg %p251
    // Predicated region
    $region41: #{basic_block_forward.7} parent=5 // pred_check
      _
    $region42: #{basic_block_forward.7} parent=5 // pred_check_branch
      %254 = sbr.rel (%p251) target = $region44
    $region43: #{basic_block_forward.7} parent=5 // pred_region
      %s255 = ssub.s32 %s12, 1
      %s256 = smul.u32 8, %s22
      %p257 = scmp.lt.s32.totalorder %s21, 1
      %s258 = scalar_select %p257, %s21, 1
      %p259 = scmp.lt.s32.totalorder %s256, 7
      %s260 = scalar_select %p259, %s256, 7
      %s261 = smul.addr %s258, 8
      %s262 = sadd.s32 %s260, %s261
      %s263 = smul.addr %s262, 4
      %s264 = scalar_lea.vmem %s0, %s263
      %p265 = pneg %p52
      %p266 = pneg %p49
      %s267 = smul.u32 8, %s22
      %p268 = scmp.lt.s32.totalorder %s21, 1
      %s269 = scalar_select %p268, %s21, 1
      %p270 = scmp.lt.s32.totalorder %s267, 7
      %s271 = scalar_select %p270, %s267, 7
      %s272 = smul.addr %s269, 8
      %s273 = sadd.s32 %s271, %s272
      %s274 = smul.addr %s273, 4
      %s275 = scalar_lea.vmem %s1, %s274
      %p276 = pneg %p80
      %p277 = pneg %p77
      %p278 = pneg %p101
      %p279 = pneg %p98
      %p280 = pneg %p122
      %p281 = pneg %p119
      %p282 = pneg %p143
      %p283 = pneg %p140
      %p284 = pneg %p164
      %p285 = pneg %p161
      %p286 = pneg %p192
      %p287 = pneg %p189
      %s288 = smul.u32 8, %s22
      %p289 = scmp.lt.s32.totalorder %s21, 1
      %s290 = scalar_select %p289, %s21, 1
      %p291 = scmp.lt.s32.totalorder %s288, 7
      %s292 = scalar_select %p291, %s288, 7
      %s293 = smul.addr %s290, 8
      %s294 = sadd.s32 %s292, %s293
      %s295 = smul.addr %s294, 8
      %s296 = scalar_lea.vmem %s6, %s295
      %s297 = smul.u32 8, %s22
      %p298 = scmp.lt.s32.totalorder %s21, 1
      %s299 = scalar_select %p298, %s21, 1
      %p300 = scmp.lt.s32.totalorder %s297, 7
      %s301 = scalar_select %p300, %s297, 7
      %s302 = smul.addr %s299, 8
      %s303 = sadd.s32 %s301, %s302
      %s304 = smul.addr %s303, 4
      %s305 = scalar_lea.vmem %s0, %s304
      %s306 = smul.u32 8, %s22
      %s307 = smul.u32 8, %s22
      %p308 = scmp.lt.s32.totalorder %s21, 1
      %s309 = scalar_select %p308, %s21, 1
      %p310 = scmp.lt.s32.totalorder %s307, 7
      %s311 = scalar_select %p310, %s307, 7
      %s312 = smul.addr %s309, 8
      %s313 = sadd.s32 %s311, %s312
      %s314 = smul.addr %s313, 4
      %s315 = scalar_lea.vmem %s1, %s314
      %s316 = smul.u32 8, %s22
      %s317 = smul.u32 8, %s22
      %p318 = scmp.lt.s32.totalorder %s21, 1
      %s319 = scalar_select %p318, %s21, 1
      %p320 = scmp.lt.s32.totalorder %s317, 7
      %s321 = scalar_select %p320, %s317, 7
      %s322 = smul.addr %s319, 8
      %s323 = sadd.s32 %s321, %s322
      %s324 = smul.addr %s323, 8
      %s325 = scalar_lea.vmem %s6, %s324
      %s326 = smul.u32 8, %s22
      %v327 = vld [vmem:[%s305] sm:$0xf]
      %v328 = vld [vmem:[%s305 + $0x4] sm:$0xf]
      %v329 = vld [vmem:[%s305 + $0x8] sm:$0xf]
      %v330 = vld [vmem:[%s305 + $0xc] sm:$0xf]
      %v331 = vld [vmem:[%s305 + $0x10] sm:$0xf]
      %v332 = vld [vmem:[%s305 + $0x14] sm:$0xf]
      %v333 = vld [vmem:[%s305 + $0x18] sm:$0xf]
      %v334 = vld [vmem:[%s305 + $0x1c] sm:$0xf]
      %v335 = vunpack.c.l.bf16 %v327
      %v336 = vunpack.c.l.bf16 %v328
      %v337 = vunpack.c.l.bf16 %v329
      %v338 = vunpack.c.l.bf16 %v330
      %v339 = vunpack.c.l.bf16 %v331
      %v340 = vunpack.c.l.bf16 %v332
      %v341 = vunpack.c.l.bf16 %v333
      %v342 = vunpack.c.l.bf16 %v334
      %v343 = vld [vmem:[%s2] sm:$0x1]
      %v345 = vlaneseq
      %v346 = vshrl.u32 %v345, 7
      %v347 = vsub.s32 0, %v346
      %v348 = vrot.slane %v343, %v347
      %v350 = vmul.f32 %v335, %v348
      %v351 = vmul.f32 %v336, %v348
      %v352 = vmul.f32 %v337, %v348
      %v353 = vmul.f32 %v338, %v348
      %v354 = vmul.f32 %v339, %v348
      %v355 = vmul.f32 %v340, %v348
      %v356 = vmul.f32 %v341, %v348
      %v357 = vmul.f32 %v342, %v348
      %v358 = vld [vmem:[%s3] sm:$0x1]
      %v360 = vlaneseq
      %v361 = vshrl.u32 %v360, 7
      %v362 = vsub.s32 0, %v361
      %v363 = vrot.slane %v358, %v362
      %v365 = vadd.f32 %v350, %v363
      %v366 = vadd.f32 %v351, %v363
      %v367 = vadd.f32 %v352, %v363
      %v368 = vadd.f32 %v353, %v363
      %v369 = vadd.f32 %v354, %v363
      %v370 = vadd.f32 %v355, %v363
      %v371 = vadd.f32 %v356, %v363
      %v372 = vadd.f32 %v357, %v363
      %v373 = vld [vmem:[%s315] sm:$0xf]
      %v374 = vld [vmem:[%s315 + $0x4] sm:$0xf]
      %v375 = vld [vmem:[%s315 + $0x8] sm:$0xf]
      %v376 = vld [vmem:[%s315 + $0xc] sm:$0xf]
      %v377 = vld [vmem:[%s315 + $0x10] sm:$0xf]
      %v378 = vld [vmem:[%s315 + $0x14] sm:$0xf]
      %v379 = vld [vmem:[%s315 + $0x18] sm:$0xf]
      %v380 = vld [vmem:[%s315 + $0x1c] sm:$0xf]
      %v381 = vunpack.c.l.bf16 %v373
      %v382 = vunpack.c.l.bf16 %v374
      %v383 = vunpack.c.l.bf16 %v375
      %v384 = vunpack.c.l.bf16 %v376
      %v385 = vunpack.c.l.bf16 %v377
      %v386 = vunpack.c.l.bf16 %v378
      %v387 = vunpack.c.l.bf16 %v379
      %v388 = vunpack.c.l.bf16 %v380
      %v389 = vld [vmem:[%s4] sm:$0x1]
      %v391 = vlaneseq
      %v392 = vshrl.u32 %v391, 7
      %v393 = vsub.s32 0, %v392
      %v394 = vrot.slane %v389, %v393
      %v396 = vmul.f32 %v381, %v394
      %v397 = vmul.f32 %v382, %v394
      %v398 = vmul.f32 %v383, %v394
      %v399 = vmul.f32 %v384, %v394
      %v400 = vmul.f32 %v385, %v394
      %v401 = vmul.f32 %v386, %v394
      %v402 = vmul.f32 %v387, %v394
      %v403 = vmul.f32 %v388, %v394
      %v404 = vld [vmem:[%s5] sm:$0x1]
      %v406 = vlaneseq
      %v407 = vshrl.u32 %v406, 7
      %v408 = vsub.s32 0, %v407
      %v409 = vrot.slane %v404, %v408
      %v411 = vadd.f32 %v396, %v409
      %v412 = vadd.f32 %v397, %v409
      %v413 = vadd.f32 %v398, %v409
      %v414 = vadd.f32 %v399, %v409
      %v415 = vadd.f32 %v400, %v409
      %v416 = vadd.f32 %v401, %v409
      %v417 = vadd.f32 %v402, %v409
      %v418 = vadd.f32 %v403, %v409
      %v419 = vadd.f32 %v365, %v411
      %v420 = vadd.f32 %v366, %v412
      %v421 = vadd.f32 %v367, %v413
      %v422 = vadd.f32 %v368, %v414
      %v423 = vadd.f32 %v369, %v415
      %v424 = vadd.f32 %v370, %v416
      %v425 = vadd.f32 %v371, %v417
      %v426 = vadd.f32 %v372, %v418
      %v427 = vmax.f32 %v419, 0.0
      %v428 = vmax.f32 %v420, 0.0
      %v429 = vmax.f32 %v421, 0.0
      %v430 = vmax.f32 %v422, 0.0
      %v431 = vmax.f32 %v423, 0.0
      %v432 = vmax.f32 %v424, 0.0
      %v433 = vmax.f32 %v425, 0.0
      %v434 = vmax.f32 %v426, 0.0
      %vm435 = vcmask 64512
      %436 = vst.msk [vmem:[%s325] sm:$0xff] %vm435, %v427
      %437 = vst.msk [vmem:[%s325 + $0x8] sm:$0xff] %vm435, %v428
      %438 = vst.msk [vmem:[%s325 + $0x10] sm:$0xff] %vm435, %v429
      %439 = vst.msk [vmem:[%s325 + $0x18] sm:$0xff] %vm435, %v430
      %440 = vst.msk [vmem:[%s325 + $0x20] sm:$0xff] %vm435, %v431
      %441 = vst.msk [vmem:[%s325 + $0x28] sm:$0xff] %vm435, %v432
      %442 = vst.msk [vmem:[%s325 + $0x30] sm:$0xff] %vm435, %v433
      %443 = vst.msk [vmem:[%s325 + $0x38] sm:$0xff] %vm435, %v434
      %s444 = smul.u32 8, %s22
      %p445 = scmp.lt.s32.totalorder %s21, 1
      %s446 = scalar_select %p445, %s21, 1
      %p447 = scmp.lt.s32.totalorder %s444, 7
      %s448 = scalar_select %p447, %s444, 7
      %s449 = smul.addr %s446, 8
      %s450 = sadd.s32 %s448, %s449
      %s451 = smul.addr %s450, 8
      %s452 = scalar_lea.vmem %s6, %s451
      // Predicated region
      $region45: #{basic_block_forward.7} parent=43 // pred_check
        %p453 = pneg %p189
      $region46: #{basic_block_forward.7} parent=43 // pred_check_branch
        %455 = sbr.rel (%p453) target = $region48
      $region47: #{basic_block_forward.7} parent=43 // pred_region
        %s456 = smul.u32 8, %s22
      $region48: #{basic_block_forward.7} parent=43 // pred_fallthru
        _
    $region44: #{basic_block_forward.7} parent=5 // pred_fallthru
      _
    %p457 = scmp.le.s32.totalorder 2, %s12
    // Predicated region
    $region49: #{basic_block_forward.7} parent=5 // pred_check
      %p458 = pneg %p457
    $region50: #{basic_block_forward.7} parent=5 // pred_check_branch
      %460 = sbr.rel (%p458) target = $region52
    $region51: #{basic_block_forward.7} parent=5 // pred_region
      %s461 = ssub.s32 %s12, 2
      // Predicated region
      $region53: #{basic_block_forward.7} parent=51 // pred_check
        %p462 = pneg %p195
      $region54: #{basic_block_forward.7} parent=51 // pred_check_branch
        %464 = sbr.rel (%p462) target = $region56
      $region55: #{basic_block_forward.7} parent=51 // pred_region
        %s465 = smul.u32 8, %s24
        %p466 = scmp.lt.s32.totalorder %s23, 1
        %s467 = scalar_select %p466, %s23, 1
        %p468 = scmp.lt.s32.totalorder %s465, 7
        %s469 = scalar_select %p468, %s465, 7
        %s470 = smul.addr %s467, 8
        %s471 = sadd.s32 %s469, %s470
        %s472 = smul.addr %s471, 8
        %s473 = scalar_lea.vmem %s6, %s472
      $region56: #{basic_block_forward.7} parent=51 // pred_fallthru
        _
    $region52: #{basic_block_forward.7} parent=5 // pred_fallthru
      _
  $region6: #{basic_block_forward.7} parent=0 // loop_footer
    %s16 = sadd.s32 1, %s12
  $region7: #{basic_block_forward.7} parent=0 // loop_footer_branch
    %11 = sbr.rel target = $region3
  $region8: #{basic_block_forward.7} parent=0 // loop_exit
    _

// kernel: basic_block_forward.4
$region0: #{basic_block_forward.4}
  #allocation0 [shape = 'u32[]', space=smem, size = 0x4, offset = 0x4, fixed_abs, tag = 'smem constant byte address 0x4 - core index']
  #allocation1 [shape = 'u32[144,128]{1,0:T(1,128)}', space=vmem, size = 0x12000, scoped, tag = 'internal scratch']
  #allocation2 [shape = 'f32[64,8]{1,0:T(8,128)}', space=vmem, size = 0x8000, scoped, tag = 'scratch operand']
  %s0 = inlined_call_operand.vmem [shape: bf16[2,36,9,4], index: 0, kind: input, shape index: {}]
  %s1 = inlined_call_operand.vmem [shape: bf16[3,3,4,8], index: 1, kind: input, shape index: {}]
  %s2 = inlined_call_operand.vmem [shape: bf16[2,8,8,8], index: 2, kind: output, shape index: {0}]
  %s3 = inlined_call_operand.vmem [shape: f32[2,1,2,8], index: 3, kind: output, shape index: {1}]
  %4 = xla_tuple %s2, %s3
  %s5 = sld [smem:[#allocation0]]
  $region49: #{basic_block_forward.4} parent=0
    _
  %s7 = ssub.s32 1, %s5
  %s8 = scalar_select 0, %s7, %s5
  loop: start=0, step=1, limit=4
  $region2: #{basic_block_forward.4} parent=0 // loop_pre_header
    _
  $region3: #{basic_block_forward.4} parent=0 // loop_header
    %s10 = sphi 0, %s14
    %p11 = scmp.ge.s32.totalorder %s10, 4
    %s17 = sphi 0, %s29
    %s18 = sphi 0, %s25
    %s19 = sphi 0, %s17
    %s20 = sphi 0, %s18
    %s21 = sphi 0, %s19
    %s22 = sphi 0, %s20
    %s32 = sphi 0, %s34
    %s35 = sphi 0, %s32
    %s36 = sphi 0, %s35
    %s52 = sphi 0, %s36
    %s56 = sphi 0, %s56
    %s58 = sphi 0, %s56
    %s59 = sphi 0, %s58
    %s73 = sphi 0, %s59
    %s81 = sphi 0, %s83
    %s84 = sphi 0, %s81
    %s85 = sphi 0, %s84
    %s101 = sphi 0, %s85
    %s109 = sphi 0, %s111
    %s112 = sphi 0, %s109
    %s113 = sphi 0, %s112
    %s129 = sphi 0, %s113
  $region4: #{basic_block_forward.4} parent=0 // loop_header_branch
    %13 = sbr.rel (%p11) target = $region8
  $region5: #{basic_block_forward.4} parent=0 // loop_body
    %s15 = ssub.s32 %s10, 1
    %s16 = ssub.s32 %s10, 2
    %s23 = sadd.s32 1, %s18
    %p24 = scmp.ge.s32.totalorder %s23, 1
    %s25 = scalar_select %p24, 0, %s23
    %s26 = sadd.s32 1, %s17
    %s27 = scalar_select %p24, %s26, %s17
    %p28 = scmp.ge.s32.totalorder %s27, 2
    %s29 = scalar_select %p28, 0, %s27
    %s30 = ssub.s32 %s17, %s29
    %p31 = scmp.eq.s32.totalorder %s30, 0
    %s33 = sadd.s32 %s32, 1
    %s34 = scalar_select %p31, %s32, %s33
    %p37 = pneg %p31
    %p38 = scmp.eq.s32.totalorder %s10, 1
    %p39 = por %p37, %p38
    %p40 = scmp.ne.s32.totalorder %s32, %s35
    %p41 = scmp.eq.s32.totalorder %s10, 0
    %p42 = por %p40, %p41
    %p43 = scmp.ne.s32.totalorder %s32, %s35
    %p44 = scmp.eq.s32.totalorder %s15, 1
    %p45 = por %p43, %p44
    %p46 = scmp.ne.s32.totalorder %s35, %s36
    %p47 = scmp.eq.s32.totalorder %s15, 0
    %p48 = por %p46, %p47
    %p49 = scmp.ne.s32.totalorder %s35, %s36
    %p50 = scmp.eq.s32.totalorder %s16, 1
    %p51 = por %p49, %p50
    %p53 = scmp.ne.s32.totalorder %s36, %s52
    %p54 = scmp.eq.s32.totalorder %s16, 0
    %p55 = por %p53, %p54
    %s57 = sadd.s32 %s56, 1
    %p60 = scmp.eq.s32.totalorder %s10, 1
    %p61 = scmp.ne.s32.totalorder %s56, %s58
    %p62 = scmp.eq.s32.totalorder %s10, 0
    %p63 = por %p61, %p62
    %p64 = scmp.ne.s32.totalorder %s56, %s58
    %p65 = scmp.eq.s32.totalorder %s15, 1
    %p66 = por %p64, %p65
    %p67 = scmp.ne.s32.totalorder %s58, %s59
    %p68 = scmp.eq.s32.totalorder %s15, 0
    %p69 = por %p67, %p68
    %p70 = scmp.ne.s32.totalorder %s58, %s59
    %p71 = scmp.eq.s32.totalorder %s16, 1
    %p72 = por %p70, %p71
    %p74 = scmp.ne.s32.totalorder %s59, %s73
    %p75 = scmp.eq.s32.totalorder %s16, 0
    %p76 = por %p74, %p75
    %s77 = ssub.s32 %s17, %s29
    %s78 = ssub.s32 %s18, %s25
    %s79 = sor.u32 %s77, %s78
    %p80 = scmp.eq.s32.totalorder %s79, 0
    %s82 = sadd.s32 %s81, 1
    %s83 = scalar_select %p80, %s81, %s82
    %p86 = pneg %p80
    %p87 = scmp.eq.s32.totalorder %s10, 1
    %p88 = por %p86, %p87
    %p89 = scmp.ne.s32.totalorder %s81, %s84
    %p90 = scmp.eq.s32.totalorder %s10, 0
    %p91 = por %p89, %p90
    %p92 = scmp.ne.s32.totalorder %s81, %s84
    %p93 = scmp.eq.s32.totalorder %s15, 1
    %p94 = por %p92, %p93
    %p95 = scmp.ne.s32.totalorder %s84, %s85
    %p96 = scmp.eq.s32.totalorder %s15, 0
    %p97 = por %p95, %p96
    %p98 = scmp.ne.s32.totalorder %s84, %s85
    %p99 = scmp.eq.s32.totalorder %s16, 1
    %p100 = por %p98, %p99
    %p102 = scmp.ne.s32.totalorder %s85, %s101
    %p103 = scmp.eq.s32.totalorder %s16, 0
    %p104 = por %p102, %p103
    %s105 = ssub.s32 %s17, %s29
    %s106 = ssub.s32 %s18, %s25
    %s107 = sor.u32 %s105, %s106
    %p108 = scmp.eq.s32.totalorder %s107, 0
    %s110 = sadd.s32 %s109, 1
    %s111 = scalar_select %p108, %s109, %s110
    %p114 = pneg %p108
    %p115 = scmp.eq.s32.totalorder %s10, 1
    %p116 = por %p114, %p115
    %p117 = scmp.ne.s32.totalorder %s109, %s112
    %p118 = scmp.eq.s32.totalorder %s10, 0
    %p119 = por %p117, %p118
    %p120 = scmp.ne.s32.totalorder %s109, %s112
    %p121 = scmp.eq.s32.totalorder %s15, 1
    %p122 = por %p120, %p121
    %p123 = scmp.ne.s32.totalorder %s112, %s113
    %p124 = scmp.eq.s32.totalorder %s15, 0
    %p125 = por %p123, %p124
    %p126 = scmp.ne.s32.totalorder %s112, %s113
    %p127 = scmp.eq.s32.totalorder %s16, 1
    %p128 = por %p126, %p127
    %p130 = scmp.ne.s32.totalorder %s113, %s129
    %p131 = scmp.eq.s32.totalorder %s16, 0
    %p132 = por %p130, %p131
    %p133 = scmp.le.s32.totalorder 1, %s10
    %p134 = scmp.lt.s32.totalorder %s10, 3
    %p135 = pnand %p133, %p134
    %p136 = pneg %p135
    // Predicated region
    $region9: #{basic_block_forward.4} parent=5 // pred_check
      _
    $region10: #{basic_block_forward.4} parent=5 // pred_check_branch
      %138 = sbr.rel (%p135) target = $region12
    $region11: #{basic_block_forward.4} parent=5 // pred_region
      %s139 = ssub.s32 %s10, 1
      // Predicated region
      $region13: #{basic_block_forward.4} parent=11 // pred_check
        %p140 = pneg %p69
      $region14: #{basic_block_forward.4} parent=11 // pred_check_branch
        %142 = sbr.rel (%p140) target = $region16
      $region15: #{basic_block_forward.4} parent=11 // pred_region
        _
      $region16: #{basic_block_forward.4} parent=11 // pred_fallthru
        _
    $region12: #{basic_block_forward.4} parent=5 // pred_fallthru
      _
    %p143 = scmp.lt.s32.totalorder %s10, 2
    // Predicated region
    $region17: #{basic_block_forward.4} parent=5 // pred_check
      %p144 = pneg %p143
    $region18: #{basic_block_forward.4} parent=5 // pred_check_branch
      %146 = sbr.rel (%p144) target = $region20
    $region19: #{basic_block_forward.4} parent=5 // pred_region
      // Predicated region
      $region21: #{basic_block_forward.4} parent=19 // pred_check
        %p147 = pneg %p42
      $region22: #{basic_block_forward.4} parent=19 // pred_check_branch
        %149 = sbr.rel (%p147) target = $region24
      $region23: #{basic_block_forward.4} parent=19 // pred_region
        %p150 = scmp.lt.s32.totalorder %s17, 1
        %s151 = scalar_select %p150, %s17, 1
        %s152 = smul.addr %s151, 72
        %s153 = smul.addr %s152, 4
        %s154 = scalar_lea.vmem %s0, %s153
      $region24: #{basic_block_forward.4} parent=19 // pred_fallthru
        _
    $region20: #{basic_block_forward.4} parent=5 // pred_fallthru
      _
    %p155 = scmp.le.s32.totalorder 1, %s10
    %p156 = scmp.lt.s32.totalorder %s10, 3
    %p157 = pnand %p155, %p156
    %p158 = pneg %p157
    // Predicated region
    $region25: #{basic_block_forward.4} parent=5 // pred_check
      _
    $region26: #{basic_block_forward.4} parent=5 // pred_check_branch
      %160 = sbr.rel (%p157) target = $region28
    $region27: #{basic_block_forward.4} parent=5 // pred_region
      %s161 = ssub.s32 %s10, 1
      %p162 = scmp.lt.s32.totalorder %s19, 1
      %s163 = scalar_select %p162, %s19, 1
      %s164 = smul.addr %s163, 72
      %s165 = smul.addr %s164, 4
      %s166 = scalar_lea.vmem %s0, %s165
      %p167 = pneg %p48
      %p168 = pneg %p45
      %p169 = pneg %p69
      %p170 = pneg %p66
      %p171 = pneg %p97
      %p172 = pneg %p94
      %s173 = smul.u32 8, %s20
      %p174 = scmp.lt.s32.totalorder %s19, 1
      %s175 = scalar_select %p174, %s19, 1
      %p176 = scmp.lt.s32.totalorder %s173, 7
      %s177 = scalar_select %p176, %s173, 7
      %s178 = smul.addr %s175, 8
      %s179 = sadd.s32 %s177, %s178
      %s180 = smul.addr %s179, 4
      %s181 = scalar_lea.vmem %s2, %s180
      %p182 = pneg %p125
      %p183 = pneg %p122
      %p184 = scmp.lt.s32.totalorder %s19, 1
      %s185 = scalar_select %p184, %s19, 1
      %p186 = scmp.lt.s32.totalorder %s20, 0
      %s187 = scalar_select %p186, %s20, 0
      %s188 = sadd.s32 %s187, %s185
      %s189 = smul.addr %s188, 2
      %s190 = scalar_lea.vmem %s3, %s189
      %p191 = scmp.lt.s32.totalorder %s19, 1
      %s192 = scalar_select %p191, %s19, 1
      %s193 = smul.addr %s192, 72
      %s194 = smul.addr %s193, 4
      %s195 = scalar_lea.vmem %s0, %s194
      %s196 = smul.u32 8, %s20
      %p197 = scmp.lt.s32.totalorder %s19, 1
      %s198 = scalar_select %p197, %s19, 1
      %p199 = scmp.lt.s32.totalorder %s196, 7
      %s200 = scalar_select %p199, %s196, 7
      %s201 = smul.addr %s198, 8
      %s202 = sadd.s32 %s200, %s201
      %s203 = smul.addr %s202, 4
      %s204 = scalar_lea.vmem %s2, %s203
      %s205 = smul.u32 8, %s20
      %p206 = scmp.lt.s32.totalorder %s19, 1
      %s207 = scalar_select %p206, %s19, 1
      %p208 = scmp.lt.s32.totalorder %s20, 0
      %s209 = scalar_select %p208, %s20, 0
      %s210 = sadd.s32 %s209, %s207
      %s211 = smul.addr %s210, 2
      %s212 = scalar_lea.vmem %s3, %s211
      %s214 = smul.u32 %s20, 8
      %s215 = smul.u32 %s214, 2
      %s216 = smul.addr %s215, 4
      %s217 = scalar_lea.vmem %s195, %s216
      %v218 = vld [vmem:[%s217] sm:$0xf]
      %v219 = vld [vmem:[%s217 + $0x8] sm:$0xf]
      %v220 = vld [vmem:[%s217 + $0x10] sm:$0xf]
      %v221 = vld [vmem:[%s217 + $0x18] sm:$0xf]
      %v222 = vld [vmem:[%s217 + $0x20] sm:$0xf]
      %v223 = vld [vmem:[%s217 + $0x28] sm:$0xf]
      %v224 = vld [vmem:[%s217 + $0x30] sm:$0xf]
      %v225 = vld [vmem:[%s217 + $0x38] sm:$0xf]
      %v226 = vld [vmem:[%s1] sm:$0x3]
      %s227 = sadd.s32 %s214, 9
      %s228 = smul.u32 %s227, 2
      %s229 = smul.addr %s228, 4
      %s230 = scalar_lea.vmem %s195, %s229
      %v231 = vld [vmem:[%s230] sm:$0xf]
      %v232 = vld [vmem:[%s230 + $0x8] sm:$0xf]
      %v233 = vld [vmem:[%s230 + $0x10] sm:$0xf]
      %v234 = vld [vmem:[%s230 + $0x18] sm:$0xf]
      %v235 = vld [vmem:[%s230 + $0x20] sm:$0xf]
      %v236 = vld [vmem:[%s230 + $0x28] sm:$0xf]
      %v237 = vld [vmem:[%s230 + $0x30] sm:$0xf]
      %v238 = vld [vmem:[%s230 + $0x38] sm:$0xf]
      %s239 = scalar_lea.vmem %s1, 2
      %v240 = vld [vmem:[%s239] sm:$0x3]
      %v249 = vunpack.c.l.b16 %v231
      %v250 = vunpack.c.l.b16 %v232
      %v251 = vunpack.c.l.b16 %v233
      %v252 = vunpack.c.l.b16 %v234
      %v253 = vunpack.c.l.b16 %v235
      %v254 = vunpack.c.l.b16 %v236
      %v255 = vunpack.c.l.b16 %v237
      %v256 = vunpack.c.l.b16 %v238
      %v257 = vpack.c.b16 %v250, %v249
      %v258 = vpack.c.b16 %v252, %v251
      %v259 = vpack.c.b16 %v254, %v253
      %v260 = vpack.c.b16 %v256, %v255
      %vm261 = vcmask 31744
      %v263 = vsel %vm261, %v257, 0
      %v266 = vsel %vm261, %v258, 0
      %v269 = vsel %vm261, %v259, 0
      %v272 = vsel %vm261, %v260, 0
      %vm274 = vcmask 1041408
      %v276 = vsel %vm274, %v240, 0
      %278 = vmatprep.subr.bf16.mxu0 0
      %279 = vmatpush1.bf16.msra.mxu0 %v276
      %280 = vmatprep.subr.bf16.mxu0 0
      %281 = vmatpush1.bf16.msra.mxu0 0
      %282 = vmatprep.subr.bf16.mxu0 0
      %283 = vmatpush1.bf16.msra.mxu0 0
      %284 = vmatprep.subr.bf16.mxu0 0
      %285 = vmatpush1.bf16.msra.mxu0 0
      %286 = vmatprep.subr.bf16.mxu0 0
      %287 = vmatpush1.bf16.msra.mxu0 0
      %288 = vmatprep.subr.bf16.mxu0 0
      %289 = vmatpush1.bf16.msra.mxu0 0
      %290 = vmatprep.subr.bf16.mxu0 0
      %291 = vmatpush1.bf16.msra.mxu0 0
      %292 = vmatprep.subr.bf16.mxu0 0
      %293 = vmatpush1.bf16.msra.mxu0 0
      %294 = vmatprep.subr.bf16.mxu0 0
      %295 = vmatpush1.bf16.msra.mxu0 0
      %296 = vmatprep.subr.bf16.mxu0 0
      %297 = vmatpush1.bf16.msra.mxu0 0
      %298 = vmatprep.subr.bf16.mxu0 0
      %299 = vmatpush1.bf16.msra.mxu0 0
      %300 = vmatprep.subr.bf16.mxu0 0
      %301 = vmatpush1.bf16.msra.mxu0 0
      %302 = vmatprep.subr.bf16.mxu0 0
      %303 = vmatpush1.bf16.msra.mxu0 0
      %304 = vmatprep.subr.bf16.mxu0 0
      %305 = vmatpush1.bf16.msra.mxu0 0
      %306 = vmatprep.subr.bf16.mxu0 0
      %307 = vmatpush1.bf16.msra.mxu0 0
      %308 = vmatprep.subr.bf16.mxu0 0
      %309 = vmatpush1.bf16.msra.mxu0 0
      %310 = vmatprep.mubr.bf16.mxu0 0
      %311 = vmatmul.mubr.bf16.gmra.mrb[0].mxu0 %v263
      %v312 = vpop.f32.mrb[0].mxu0
      %v313 = vadd.f32 0.0, %v312
      %v314 = vpop.f32.mrb[0].mxu0
      %v315 = vpop.f32.mrb[0].mxu0
      %v316 = vadd.f32 0.0, %v315
      %v317 = vpop.f32.mrb[0].mxu0
      %318 = vmatprep.mubr.bf16.mxu0 0
      %319 = vmatmul.mubr.bf16.gmra.mrb[0].mxu0 %v266
      %v320 = vpop.f32.mrb[0].mxu0
      %v321 = vadd.f32 0.0, %v320
      %v322 = vpop.f32.mrb[0].mxu0
      %v323 = vpop.f32.mrb[0].mxu0
      %v324 = vadd.f32 0.0, %v323
      %v325 = vpop.f32.mrb[0].mxu0
      %326 = vmatprep.mubr.bf16.mxu0 0
      %327 = vmatmul.mubr.bf16.gmra.mrb[0].mxu0 %v269
      %v328 = vpop.f32.mrb[0].mxu0
      %v329 = vadd.f32 0.0, %v328
      %v330 = vpop.f32.mrb[0].mxu0
      %v331 = vpop.f32.mrb[0].mxu0
      %v332 = vadd.f32 0.0, %v331
      %v333 = vpop.f32.mrb[0].mxu0
      %334 = vmatprep.mubr.bf16.mxu0 0
      %335 = vmatmul.mubr.bf16.gmra.mrb[0].mxu0 %v272
      %v336 = vpop.f32.mrb[0].mxu0
      %v337 = vadd.f32 0.0, %v336
      %v338 = vpop.f32.mrb[0].mxu0
      %v339 = vpop.f32.mrb[0].mxu0
      %v340 = vadd.f32 0.0, %v339
      %v341 = vpop.f32.mrb[0].mxu0
      %342 = vdwg.mxu0
      %v351 = vunpack.c.l.b16 %v218
      %v352 = vunpack.c.l.b16 %v219
      %v353 = vunpack.c.l.b16 %v220
      %v354 = vunpack.c.l.b16 %v221
      %v355 = vunpack.c.l.b16 %v222
      %v356 = vunpack.c.l.b16 %v223
      %v357 = vunpack.c.l.b16 %v224
      %v358 = vunpack.c.l.b16 %v225
      %v359 = vpack.c.b16 %v352, %v351
      %v360 = vpack.c.b16 %v354, %v353
      %v361 = vpack.c.b16 %v356, %v355
      %v362 = vpack.c.b16 %v358, %v357
      %v364 = vsel %vm261, %v359, 0
      %v367 = vsel %vm261, %v360, 0
      %v370 = vsel %vm261, %v361, 0
      %v373 = vsel %vm261, %v362, 0
      %v376 = vsel %vm274, %v226, 0
      %378 = vmatprep.subr.bf16.mxu0 0
      %379 = vmatpush1.bf16.msra.mxu0 %v376
      %380 = vmatprep.subr.bf16.mxu0 0
      %381 = vmatpush1.bf16.msra.mxu0 0
      %382 = vmatprep.subr.bf16.mxu0 0
      %383 = vmatpush1.bf16.msra.mxu0 0
      %384 = vmatprep.subr.bf16.mxu0 0
      %385 = vmatpush1.bf16.msra.mxu0 0
      %386 = vmatprep.subr.bf16.mxu0 0
      %387 = vmatpush1.bf16.msra.mxu0 0
      %388 = vmatprep.subr.bf16.mxu0 0
      %389 = vmatpush1.bf16.msra.mxu0 0
      %390 = vmatprep.subr.bf16.mxu0 0
      %391 = vmatpush1.bf16.msra.mxu0 0
      %392 = vmatprep.subr.bf16.mxu0 0
      %393 = vmatpush1.bf16.msra.mxu0 0
      %394 = vmatprep.subr.bf16.mxu0 0
      %395 = vmatpush1.bf16.msra.mxu0 0
      %396 = vmatprep.subr.bf16.mxu0 0
      %397 = vmatpush1.bf16.msra.mxu0 0
      %398 = vmatprep.subr.bf16.mxu0 0
      %399 = vmatpush1.bf16.msra.mxu0 0
      %400 = vmatprep.subr.bf16.mxu0 0
      %401 = vmatpush1.bf16.msra.mxu0 0
      %402 = vmatprep.subr.bf16.mxu0 0
      %403 = vmatpush1.bf16.msra.mxu0 0
      %404 = vmatprep.subr.bf16.mxu0 0
      %405 = vmatpush1.bf16.msra.mxu0 0
      %406 = vmatprep.subr.bf16.mxu0 0
      %407 = vmatpush1.bf16.msra.mxu0 0
      %408 = vmatprep.subr.bf16.mxu0 0
      %409 = vmatpush1.bf16.msra.mxu0 0
      %410 = vmatprep.mubr.bf16.mxu0 0
      %411 = vmatmul.mubr.bf16.gmra.mrb[0].mxu0 %v364
      %v412 = vpop.f32.mrb[0].mxu0
      %v413 = vadd.f32 %v313, %v412
      %v414 = vpop.f32.mrb[0].mxu0
      %v415 = vpop.f32.mrb[0].mxu0
      %v416 = vadd.f32 %v316, %v415
      %v417 = vpop.f32.mrb[0].mxu0
      %418 = vmatprep.mubr.bf16.mxu0 0
      %419 = vmatmul.mubr.bf16.gmra.mrb[0].mxu0 %v367
      %v420 = vpop.f32.mrb[0].mxu0
      %v421 = vadd.f32 %v321, %v420
      %v422 = vpop.f32.mrb[0].mxu0
      %v423 = vpop.f32.mrb[0].mxu0
      %v424 = vadd.f32 %v324, %v423
      %v425 = vpop.f32.mrb[0].mxu0
      %426 = vmatprep.mubr.bf16.mxu0 0
      %427 = vmatmul.mubr.bf16.gmra.mrb[0].mxu0 %v370
      %v428 = vpop.f32.mrb[0].mxu0
      %v429 = vadd.f32 %v329, %v428
      %v430 = vpop.f32.mrb[0].mxu0
      %v431 = vpop.f32.mrb[0].mxu0
      %v432 = vadd.f32 %v332, %v431
      %v433 = vpop.f32.mrb[0].mxu0
      %434 = vmatprep.mubr.bf16.mxu0 0
      %435 = vmatmul.mubr.bf16.gmra.mrb[0].mxu0 %v373
      %v436 = vpop.f32.mrb[0].mxu0
      %v437 = vadd.f32 %v337, %v436
      %v438 = vpop.f32.mrb[0].mxu0
      %v439 = vpop.f32.mrb[0].mxu0
      %v440 = vadd.f32 %v340, %v439
      %v441 = vpop.f32.mrb[0].mxu0
      %442 = vdwg.mxu0
      %v443 = vld [vmem:[%s217] sm:$0xf]
      %v444 = vld [vmem:[%s217 + $0x4] sm:$0x1]
      %v445 = vld [vmem:[%s217 + $0x8] sm:$0xf]
      %v446 = vld [vmem:[%s217 + $0xc] sm:$0x1]
      %v447 = vld [vmem:[%s217 + $0x10] sm:$0xf]
      %v448 = vld [vmem:[%s217 + $0x14] sm:$0x1]
      %v449 = vld [vmem:[%s217 + $0x18] sm:$0xf]
      %v450 = vld [vmem:[%s217 + $0x1c] sm:$0x1]
      %v451 = vld [vmem:[%s217 + $0x20] sm:$0xf]
      %v452 = vld [vmem:[%s217 + $0x24] sm:$0x1]
      %v453 = vld [vmem:[%s217 + $0x28] sm:$0xf]
      %v454 = vld [vmem:[%s217 + $0x2c] sm:$0x1]
      %v455 = vld [vmem:[%s217 + $0x30] sm:$0xf]
      %v456 = vld [vmem:[%s217 + $0x34] sm:$0x1]
      %v457 = vld [vmem:[%s217 + $0x38] sm:$0xf]
      %v458 = vld [vmem:[%s217 + $0x3c] sm:$0x1]
      %vm459 = vsmask.f32 3328
      %vm460 = vsmask.f32 7440
      %vm461 = vmor %vm459, %vm460
      %v463 = vshrl.u32 %v443, 16
      %v465 = vrot.slane %v463, 4
      %v466 = vshll.u32 %v443, 16
      %v468 = vrot.slane %v466, 5
      %v469 = vor.u32 %v465, %v468
      %v470 = vrot.slane %v469, 4
      %v472 = vshll.u32 %v444, 16
      %v474 = vrot.slane %v472, 5
      %v475 = vsel %vm461, %v470, %v474
      %v477 = vshrl.u32 %v445, 16
      %v479 = vrot.slane %v477, 4
      %v480 = vshll.u32 %v445, 16
      %v482 = vrot.slane %v480, 5
      %v483 = vor.u32 %v479, %v482
      %v484 = vrot.slane %v483, 4
      %v486 = vshll.u32 %v446, 16
      %v488 = vrot.slane %v486, 5
      %v489 = vsel %vm461, %v484, %v488
      %v491 = vshrl.u32 %v447, 16
      %v493 = vrot.slane %v491, 4
      %v494 = vshll.u32 %v447, 16
      %v496 = vrot.slane %v494, 5
      %v497 = vor.u32 %v493, %v496
      %v498 = vrot.slane %v497, 4
      %v500 = vshll.u32 %v448, 16
      %v502 = vrot.slane %v500, 5
      %v503 = vsel %vm461, %v498, %v502
      %v505 = vshrl.u32 %v449, 16
      %v507 = vrot.slane %v505, 4
      %v508 = vshll.u32 %v449, 16
      %v510 = vrot.slane %v508, 5
      %v511 = vor.u32 %v507, %v510
      %v512 = vrot.slane %v511, 4
      %v514 = vshll.u32 %v450, 16
      %v516 = vrot.slane %v514, 5
      %v517 = vsel %vm461, %v512, %v516
      %v519 = vshrl.u32 %v451, 16
      %v521 = vrot.slane %v519, 4
      %v522 = vshll.u32 %v451, 16
      %v524 = vrot.slane %v522, 5
      %v525 = vor.u32 %v521, %v524
      %v526 = vrot.slane %v525, 4
      %v528 = vshll.u32 %v452, 16
      %v530 = vrot.slane %v528, 5
      %v531 = vsel %vm461, %v526, %v530
      %v533 = vshrl.u32 %v453, 16
      %v535 = vrot.slane %v533, 4
      %v536 = vshll.u32 %v453, 16
      %v538 = vrot.slane %v536, 5
      %v539 = vor.u32 %v535, %v538
      %v540 = vrot.slane %v539, 4
      %v542 = vshll.u32 %v454, 16
      %v544 = vrot.slane %v542, 5
      %v545 = vsel %vm461, %v540, %v544
      %v547 = vshrl.u32 %v455, 16
      %v549 = vrot.slane %v547, 4
      %v550 = vshll.u32 %v455, 16
      %v552 = vrot.slane %v550, 5
      %v553 = vor.u32 %v549, %v552
      %v554 = vrot.slane %v553, 4
      %v556 = vshll.u32 %v456, 16
      %v558 = vrot.slane %v556, 5
      %v559 = vsel %vm461, %v554, %v558
      %v561 = vshrl.u32 %v457, 16
      %v563 = vrot.slane %v561, 4
      %v564 = vshll.u32 %v457, 16
      %v566 = vrot.slane %v564, 5
      %v567 = vor.u32 %v563, %v566
      %v568 = vrot.slane %v567, 4
      %v570 = vshll.u32 %v458, 16
      %v572 = vrot.slane %v570, 5
      %v573 = vsel %vm461, %v568, %v572
      %s574 = scalar_lea.vmem %s1, 4
      %v575 = vld [vmem:[%s574] sm:$0x3]
      %v576 = vunpack.c.l.b16 %v475
      %v577 = vunpack.c.l.b16 %v489
      %v578 = vunpack.c.l.b16 %v503
      %v579 = vunpack.c.l.b16 %v517
      %v580 = vunpack.c.l.b16 %v531
      %v581 = vunpack.c.l.b16 %v545
      %v582 = vunpack.c.l.b16 %v559
      %v583 = vunpack.c.l.b16 %v573
      %v584 = vpack.c.b16 %v577, %v576
      %v585 = vpack.c.b16 %v579, %v578
      %v586 = vpack.c.b16 %v581, %v580
      %v587 = vpack.c.b16 %v583, %v582
      %v589 = vsel %vm261, %v584, 0
      %v592 = vsel %vm261, %v585, 0
      %v595 = vsel %vm261, %v586, 0
      %v598 = vsel %vm261, %v587, 0
      %v601 = vsel %vm274, %v575, 0
      %603 = vmatprep.subr.bf16.mxu0 0
      %604 = vmatpush1.bf16.msra.mxu0 %v601
      %605 = vmatprep.subr.bf16.mxu0 0
      %606 = vmatpush1.bf16.msra.mxu0 0
      %607 = vmatprep.subr.bf16.mxu0 0
      %608 = vmatpush1.bf16.msra.mxu0 0
      %609 = vmatprep.subr.bf16.mxu0 0
      %610 = vmatpush1.bf16.msra.mxu0 0
      %611 = vmatprep.subr.bf16.mxu0 0
      %612 = vmatpush1.bf16.msra.mxu0 0
      %613 = vmatprep.subr.bf16.mxu0 0
      %614 = vmatpush1.bf16.msra.mxu0 0
      %615 = vmatprep.subr.bf16.mxu0 0
      %616 = vmatpush1.bf16.msra.mxu0 0
      %617 = vmatprep.subr.bf16.mxu0 0
      %618 = vmatpush1.bf16.msra.mxu0 0
      %619 = vmatprep.subr.bf16.mxu0 0
      %620 = vmatpush1.bf16.msra.mxu0 0
      %621 = vmatprep.subr.bf16.mxu0 0
      %622 = vmatpush1.bf16.msra.mxu0 0
      %623 = vmatprep.subr.bf16.mxu0 0
      %624 = vmatpush1.bf16.msra.mxu0 0
      %625 = vmatprep.subr.bf16.mxu0 0
      %626 = vmatpush1.bf16.msra.mxu0 0
      %627 = vmatprep.subr.bf16.mxu0 0
      %628 = vmatpush1.bf16.msra.mxu0 0
      %629 = vmatprep.subr.bf16.mxu0 0
      %630 = vmatpush1.bf16.msra.mxu0 0
      %631 = vmatprep.subr.bf16.mxu0 0
      %632 = vmatpush1.bf16.msra.mxu0 0
      %633 = vmatprep.subr.bf16.mxu0 0
      %634 = vmatpush1.bf16.msra.mxu0 0
      %635 = vmatprep.mubr.bf16.mxu0 0
      %636 = vmatmul.mubr.bf16.gmra.mrb[0].mxu0 %v589
      %v637 = vpop.f32.mrb[0].mxu0
      %v638 = vadd.f32 0.0, %v637
      %v639 = vpop.f32.mrb[0].mxu0
      %v640 = vpop.f32.mrb[0].mxu0
      %v641 = vadd.f32 0.0, %v640
      %v642 = vpop.f32.mrb[0].mxu0
      %643 = vmatprep.mubr.bf16.mxu0 0
      %644 = vmatmul.mubr.bf16.gmra.mrb[0].mxu0 %v592
      %v645 = vpop.f32.mrb[0].mxu0
      %v646 = vadd.f32 0.0, %v645
      %v647 = vpop.f32.mrb[0].mxu0
      %v648 = vpop.f32.mrb[0].mxu0
      %v649 = vadd.f32 0.0, %v648
      %v650 = vpop.f32.mrb[0].mxu0
      %651 = vmatprep.mubr.bf16.mxu0 0
      %652 = vmatmul.mubr.bf16.gmra.mrb[0].mxu0 %v595
      %v653 = vpop.f32.mrb[0].mxu0
      %v654 = vadd.f32 0.0, %v653
      %v655 = vpop.f32.mrb[0].mxu0
      %v656 = vpop.f32.mrb[0].mxu0
      %v657 = vadd.f32 0.0, %v656
      %v658 = vpop.f32.mrb[0].mxu0
      %659 = vmatprep.mubr.bf16.mxu0 0
      %660 = vmatmul.mubr.bf16.gmra.mrb[0].mxu0 %v598
      %v661 = vpop.f32.mrb[0].mxu0
      %v662 = vadd.f32 0.0, %v661
      %v663 = vpop.f32.mrb[0].mxu0
      %v664 = vpop.f32.mrb[0].mxu0
      %v665 = vadd.f32 0.0, %v664
      %v666 = vpop.f32.mrb[0].mxu0
      %667 = vdwg.mxu0
      %v668 = vadd.f32 %v413, %v638
      %v669 = vadd.f32 %v416, %v641
      %v670 = vadd.f32 %v421, %v646
      %v671 = vadd.f32 %v424, %v649
      %v672 = vadd.f32 %v429, %v654
      %v673 = vadd.f32 %v432, %v657
      %v674 = vadd.f32 %v437, %v662
      %v675 = vadd.f32 %v440, %v665
      %vm676 = vcmask 64512
      %677 = vst.msk [vmem:[#allocation2] sm:$0xff] %vm676, %v668
      %678 = vst.msk [vmem:[#allocation2 + $0x8] sm:$0xff] %vm676, %v669
      %679 = vst.msk [vmem:[#allocation2 + $0x10] sm:$0xff] %vm676, %v670
      %680 = vst.msk [vmem:[#allocation2 + $0x18] sm:$0xff] %vm676, %v671
      %681 = vst.msk [vmem:[#allocation2 + $0x20] sm:$0xff] %vm676, %v672
      %682 = vst.msk [vmem:[#allocation2 + $0x28] sm:$0xff] %vm676, %v673
      %683 = vst.msk [vmem:[#allocation2 + $0x30] sm:$0xff] %vm676, %v674
      %684 = vst.msk [vmem:[#allocation2 + $0x38] sm:$0xff] %vm676, %v675
      %s685 = sadd.s32 %s214, 18
      %s686 = smul.u32 %s685, 2
      %s687 = smul.addr %s686, 4
      %s688 = scalar_lea.vmem %s195, %s687
      %v689 = vld [vmem:[%s688] sm:$0xf]
      %v690 = vld [vmem:[%s688 + $0x8] sm:$0xf]
      %v691 = vld [vmem:[%s688 + $0x10] sm:$0xf]
      %v692 = vld [vmem:[%s688 + $0x18] sm:$0xf]
      %v693 = vld [vmem:[%s688 + $0x20] sm:$0xf]
      %v694 = vld [vmem:[%s688 + $0x28] sm:$0xf]
      %v695 = vld [vmem:[%s688 + $0x30] sm:$0xf]
      %v696 = vld [vmem:[%s688 + $0x38] sm:$0xf]
      %s697 = scalar_lea.vmem %s1, 6
      %v698 = vld [vmem:[%s697] sm:$0x3]
      %s699 = sadd.s32 %s214, 27
      %s700 = smul.u32 %s699, 2
      %s701 = smul.addr %s700, 4
      %s702 = scalar_lea.vmem %s195, %s701
      %v703 = vld [vmem:[%s702] sm:$0xf]
      %v704 = vld [vmem:[%s702 + $0x8] sm:$0xf]
      %v705 = vld [vmem:[%s702 + $0x10] sm:$0xf]
      %v706 = vld [vmem:[%s702 + $0x18] sm:$0xf]
      %v707 = vld [vmem:[%s702 + $0x20] sm:$0xf]
      %v708 = vld [vmem:[%s702 + $0x28] sm:$0xf]
      %v709 = vld [vmem:[%s702 + $0x30] sm:$0xf]
      %v710 = vld [vmem:[%s702 + $0x38] sm:$0xf]
      %s711 = scalar_lea.vmem %s1, 8
      %v712 = vld [vmem:[%s711] sm:$0x3]
      %v721 = vunpack.c.l.b16 %v703
      %v722 = vunpack.c.l.b16 %v704
      %v723 = vunpack.c.l.b16 %v705
      %v724 = vunpack.c.l.b16 %v706
      %v725 = vunpack.c.l.b16 %v707
      %v726 = vunpack.c.l.b16 %v708
      %v727 = vunpack.c.l.b16 %v709
      %v728 = vunpack.c.l.b16 %v710
      %v729 = vpack.c.b16 %v722, %v721
      %v730 = vpack.c.b16 %v724, %v723
      %v731 = vpack.c.b16 %v726, %v725
      %v732 = vpack.c.b16 %v728, %v727
      %v734 = vsel %vm261, %v729, 0
      %v737 = vsel %vm261, %v730, 0
      %v740 = vsel %vm261, %v731, 0
      %v743 = vsel %vm261, %v732, 0
      %v746 = vsel %vm274, %v712, 0
      %748 = vmatprep.subr.bf16.mxu0 0
      %749 = vmatpush1.bf16.msra.mxu0 %v746
      %750 = vmatprep.subr.bf16.mxu0 0
      %751 = vmatpush1.bf16.msra.mxu0 0
      %752 = vmatprep.subr.bf16.mxu0 0
      %753 = vmatpush1.bf16.msra.mxu0 0
      %754 = vmatprep.subr.bf16.mxu0 0
      %755 = vmatpush1.bf16.msra.mxu0 0
      %756 = vmatprep.subr.bf16.mxu0 0
      %757 = vmatpush1.bf16.msra.mxu0 0
      %758 = vmatprep.subr.bf16.mxu0 0
      %759 = vmatpush1.bf16.msra.mxu0 0
      %760 = vmatprep.subr.bf16.mxu0 0
      %761 = vmatpush1.bf16.msra.mxu0 0
      %762 = vmatprep.subr.bf16.mxu0 0
      %763 = vmatpush1.bf16.msra.mxu0 0
      %764 = vmatprep.subr.bf16.mxu0 0
      %765 = vmatpush1.bf16.msra.mxu0 0
      %766 = vmatprep.subr.bf16.mxu0 0
      %767 = vmatpush1.bf16.msra.mxu0 0
      %768 = vmatprep.subr.bf16.mxu0 0
      %769 = vmatpush1.bf16.msra.mxu0 0
      %770 = vmatprep.subr.bf16.mxu0 0
      %771 = vmatpush1.bf16.msra.mxu0 0
      %772 = vmatprep.subr.bf16.mxu0 0
      %773 = vmatpush1.bf16.msra.mxu0 0
      %774 = vmatprep.subr.bf16.mxu0 0
      %775 = vmatpush1.bf16.msra.mxu0 0
      %776 = vmatprep.subr.bf16.mxu0 0
      %777 = vmatpush1.bf16.msra.mxu0 0
      %778 = vmatprep.subr.bf16.mxu0 0
      %779 = vmatpush1.bf16.msra.mxu0 0
      %780 = vmatprep.mubr.bf16.mxu0 0
      %781 = vmatmul.mubr.bf16.gmra.mrb[0].mxu0 %v734
      %v782 = vpop.f32.mrb[0].mxu0
      %v783 = vadd.f32 0.0, %v782
      %v784 = vpop.f32.mrb[0].mxu0
      %v785 = vpop.f32.mrb[0].mxu0
      %v786 = vadd.f32 0.0, %v785
      %v787 = vpop.f32.mrb[0].mxu0
      %788 = vmatprep.mubr.bf16.mxu0 0
      %789 = vmatmul.mubr.bf16.gmra.mrb[0].mxu0 %v737
      %v790 = vpop.f32.mrb[0].mxu0
      %v791 = vadd.f32 0.0, %v790
      %v792 = vpop.f32.mrb[0].mxu0
      %v793 = vpop.f32.mrb[0].mxu0
      %v794 = vadd.f32 0.0, %v793
      %v795 = vpop.f32.mrb[0].mxu0
      %796 = vmatprep.mubr.bf16.mxu0 0
      %797 = vmatmul.mubr.bf16.gmra.mrb[0].mxu0 %v740
      %v798 = vpop.f32.mrb[0].mxu0
      %v799 = vadd.f32 0.0, %v798
      %v800 = vpop.f32.mrb[0].mxu0
      %v801 = vpop.f32.mrb[0].mxu0
      %v802 = vadd.f32 0.0, %v801
      %v803 = vpop.f32.mrb[0].mxu0
      %804 = vmatprep.mubr.bf16.mxu0 0
      %805 = vmatmul.mubr.bf16.gmra.mrb[0].mxu0 %v743
      %v806 = vpop.f32.mrb[0].mxu0
      %v807 = vadd.f32 0.0, %v806
      %v808 = vpop.f32.mrb[0].mxu0
      %v809 = vpop.f32.mrb[0].mxu0
      %v810 = vadd.f32 0.0, %v809
      %v811 = vpop.f32.mrb[0].mxu0
      %812 = vdwg.mxu0
      %v821 = vunpack.c.l.b16 %v689
      %v822 = vunpack.c.l.b16 %v690
      %v823 = vunpack.c.l.b16 %v691
      %v824 = vunpack.c.l.b16 %v692
      %v825 = vunpack.c.l.b16 %v693
      %v826 = vunpack.c.l.b16 %v694
      %v827 = vunpack.c.l.b16 %v695
      %v828 = vunpack.c.l.b16 %v696
      %v829 = vpack.c.b16 %v822, %v821
      %v830 = vpack.c.b16 %v824, %v823
      %v831 = vpack.c.b16 %v826, %v825
      %v832 = vpack.c.b16 %v828, %v827
      %v834 = vsel %vm261, %v829, 0
      %v837 = vsel %vm261, %v830, 0
      %v840 = vsel %vm261, %v831, 0
      %v843 = vsel %vm261, %v832, 0
      %v846 = vsel %vm274, %v698, 0
      %848 = vmatprep.subr.bf16.mxu0 0
      %849 = vmatpush1.bf16.msra.mxu0 %v846
      %850 = vmatprep.subr.bf16.mxu0 0
      %851 = vmatpush1.bf16.msra.mxu0 0
      %852 = vmatprep.subr.bf16.mxu0 0
      %853 = vmatpush1.bf16.msra.mxu0 0
      %854 = vmatprep.subr.bf16.mxu0 0
      %855 = vmatpush1.bf16.msra.mxu0 0
      %856 = vmatprep.subr.bf16.mxu0 0
      %857 = vmatpush1.bf16.msra.mxu0 0
      %858 = vmatprep.subr.bf16.mxu0 0
      %859 = vmatpush1.bf16.msra.mxu0 0
      %860 = vmatprep.subr.bf16.mxu0 0
      %861 = vmatpush1.bf16.msra.mxu0 0
      %862 = vmatprep.subr.bf16.mxu0 0
      %863 = vmatpush1.bf16.msra.mxu0 0
      %864 = vmatprep.subr.bf16.mxu0 0
      %865 = vmatpush1.bf16.msra.mxu0 0
      %866 = vmatprep.subr.bf16.mxu0 0
      %867 = vmatpush1.bf16.msra.mxu0 0
      %868 = vmatprep.subr.bf16.mxu0 0
      %869 = vmatpush1.bf16.msra.mxu0 0
      %870 = vmatprep.subr.bf16.mxu0 0
      %871 = vmatpush1.bf16.msra.mxu0 0
      %872 = vmatprep.subr.bf16.mxu0 0
      %873 = vmatpush1.bf16.msra.mxu0 0
      %874 = vmatprep.subr.bf16.mxu0 0
      %875 = vmatpush1.bf16.msra.mxu0 0
      %876 = vmatprep.subr.bf16.mxu0 0
      %877 = vmatpush1.bf16.msra.mxu0 0
      %878 = vmatprep.subr.bf16.mxu0 0
      %879 = vmatpush1.bf16.msra.mxu0 0
      %880 = vmatprep.mubr.bf16.mxu0 0
      %881 = vmatmul.mubr.bf16.gmra.mrb[0].mxu0 %v834
      %v882 = vpop.f32.mrb[0].mxu0
      %v883 = vadd.f32 %v783, %v882
      %v884 = vpop.f32.mrb[0].mxu0
      %v885 = vpop.f32.mrb[0].mxu0
      %v886 = vadd.f32 %v786, %v885
      %v887 = vpop.f32.mrb[0].mxu0
      %888 = vmatprep.mubr.bf16.mxu0 0
      %889 = vmatmul.mubr.bf16.gmra.mrb[0].mxu0 %v837
      %v890 = vpop.f32.mrb[0].mxu0
      %v891 = vadd.f32 %v791, %v890
      %v892 = vpop.f32.mrb[0].mxu0
      %v893 = vpop.f32.mrb[0].mxu0
      %v894 = vadd.f32 %v794, %v893
      %v895 = vpop.f32.mrb[0].mxu0
      %896 = vmatprep.mubr.bf16.mxu0 0
      %897 = vmatmul.mubr.bf16.gmra.mrb[0].mxu0 %v840
      %v898 = vpop.f32.mrb[0].mxu0
      %v899 = vadd.f32 %v799, %v898
      %v900 = vpop.f32.mrb[0].mxu0
      %v901 = vpop.f32.mrb[0].mxu0
      %v902 = vadd.f32 %v802, %v901
      %v903 = vpop.f32.mrb[0].mxu0
      %904 = vmatprep.mubr.bf16.mxu0 0
      %905 = vmatmul.mubr.bf16.gmra.mrb[0].mxu0 %v843
      %v906 = vpop.f32.mrb[0].mxu0
      %v907 = vadd.f32 %v807, %v906
      %v908 = vpop.f32.mrb[0].mxu0
      %v909 = vpop.f32.mrb[0].mxu0
      %v910 = vadd.f32 %v810, %v909
      %v911 = vpop.f32.mrb[0].mxu0
      %912 = vdwg.mxu0
      %v913 = vld [vmem:[%s688] sm:$0xf]
      %v914 = vld [vmem:[%s688 + $0x4] sm:$0x1]
      %v915 = vld [vmem:[%s688 + $0x8] sm:$0xf]
      %v916 = vld [vmem:[%s688 + $0xc] sm:$0x1]
      %v917 = vld [vmem:[%s688 + $0x10] sm:$0xf]
      %v918 = vld [vmem:[%s688 + $0x14] sm:$0x1]
      %v919 = vld [vmem:[%s688 + $0x18] sm:$0xf]
      %v920 = vld [vmem:[%s688 + $0x1c] sm:$0x1]
      %v921 = vld [vmem:[%s688 + $0x20] sm:$0xf]
      %v922 = vld [vmem:[%s688 + $0x24] sm:$0x1]
      %v923 = vld [vmem:[%s688 + $0x28] sm:$0xf]
      %v924 = vld [vmem:[%s688 + $0x2c] sm:$0x1]
      %v925 = vld [vmem:[%s688 + $0x30] sm:$0xf]
      %v926 = vld [vmem:[%s688 + $0x34] sm:$0x1]
      %v927 = vld [vmem:[%s688 + $0x38] sm:$0xf]
      %v928 = vld [vmem:[%s688 + $0x3c] sm:$0x1]
      %v930 = vshrl.u32 %v913, 16
      %v932 = vrot.slane %v930, 4
      %v933 = vshll.u32 %v913, 16
      %v935 = vrot.slane %v933, 5
      %v936 = vor.u32 %v932, %v935
      %v937 = vrot.slane %v936, 4
      %v939 = vshll.u32 %v914, 16
      %v941 = vrot.slane %v939, 5
      %v942 = vsel %vm461, %v937, %v941
      %v944 = vshrl.u32 %v915, 16
      %v946 = vrot.slane %v944, 4
      %v947 = vshll.u32 %v915, 16
      %v949 = vrot.slane %v947, 5
      %v950 = vor.u32 %v946, %v949
      %v951 = vrot.slane %v950, 4
      %v953 = vshll.u32 %v916, 16
      %v955 = vrot.slane %v953, 5
      %v956 = vsel %vm461, %v951, %v955
      %v958 = vshrl.u32 %v917, 16
      %v960 = vrot.slane %v958, 4
      %v961 = vshll.u32 %v917, 16
      %v963 = vrot.slane %v961, 5
      %v964 = vor.u32 %v960, %v963
      %v965 = vrot.slane %v964, 4
      %v967 = vshll.u32 %v918, 16
      %v969 = vrot.slane %v967, 5
      %v970 = vsel %vm461, %v965, %v969
      %v972 = vshrl.u32 %v919, 16
      %v974 = vrot.slane %v972, 4
      %v975 = vshll.u32 %v919, 16
      %v977 = vrot.slane %v975, 5
      %v978 = vor.u32 %v974, %v977
      %v979 = vrot.slane %v978, 4
      %v981 = vshll.u32 %v920, 16
      %v983 = vrot.slane %v981, 5
      %v984 = vsel %vm461, %v979, %v983
      %v986 = vshrl.u32 %v921, 16
      %v988 = vrot.slane %v986, 4
      %v989 = vshll.u32 %v921, 16
      %v991 = vrot.slane %v989, 5
      %v992 = vor.u32 %v988, %v991
      %v993 = vrot.slane %v992, 4
      %v995 = vshll.u32 %v922, 16
      %v997 = vrot.slane %v995, 5
      %v998 = vsel %vm461, %v993, %v997
      %v1000 = vshrl.u32 %v923, 16
      %v1002 = vrot.slane %v1000, 4
      %v1003 = vshll.u32 %v923, 16
      %v1005 = vrot.slane %v1003, 5
      %v1006 = vor.u32 %v1002, %v1005
      %v1007 = vrot.slane %v1006, 4
      %v1009 = vshll.u32 %v924, 16
      %v1011 = vrot.slane %v1009, 5
      %v1012 = vsel %vm461, %v1007, %v1011
      %v1014 = vshrl.u32 %v925, 16
      %v1016 = vrot.slane %v1014, 4
      %v1017 = vshll.u32 %v925, 16
      %v1019 = vrot.slane %v1017, 5
      %v1020 = vor.u32 %v1016, %v1019
      %v1021 = vrot.slane %v1020, 4
      %v1023 = vshll.u32 %v926, 16
      %v1025 = vrot.slane %v1023, 5
      %v1026 = vsel %vm461, %v1021, %v1025
      %v1028 = vshrl.u32 %v927, 16
      %v1030 = vrot.slane %v1028, 4
      %v1031 = vshll.u32 %v927, 16
      %v1033 = vrot.slane %v1031, 5
      %v1034 = vor.u32 %v1030, %v1033
      %v1035 = vrot.slane %v1034, 4
      %v1037 = vshll.u32 %v928, 16
      %v1039 = vrot.slane %v1037, 5
      %v1040 = vsel %vm461, %v1035, %v1039
      %s1041 = scalar_lea.vmem %s1, 10
      %v1042 = vld [vmem:[%s1041] sm:$0x3]
      %v1043 = vunpack.c.l.b16 %v942
      %v1044 = vunpack.c.l.b16 %v956
      %v1045 = vunpack.c.l.b16 %v970
      %v1046 = vunpack.c.l.b16 %v984
      %v1047 = vunpack.c.l.b16 %v998
      %v1048 = vunpack.c.l.b16 %v1012
      %v1049 = vunpack.c.l.b16 %v1026
      %v1050 = vunpack.c.l.b16 %v1040
      %v1051 = vpack.c.b16 %v1044, %v1043
      %v1052 = vpack.c.b16 %v1046, %v1045
      %v1053 = vpack.c.b16 %v1048, %v1047
      %v1054 = vpack.c.b16 %v1050, %v1049
      %v1056 = vsel %vm261, %v1051, 0
      %v1059 = vsel %vm261, %v1052, 0
      %v1062 = vsel %vm261, %v1053, 0
      %v1065 = vsel %vm261, %v1054, 0
      %v1068 = vsel %vm274, %v1042, 0
      %1070 = vmatprep.subr.bf16.mxu0 0
      %1071 = vmatpush1.bf16.msra.mxu0 %v1068
      %1072 = vmatprep.subr.bf16.mxu0 0
      %1073 = vmatpush1.bf16.msra.mxu0 0
      %1074 = vmatprep.subr.bf16.mxu0 0
      %1075 = vmatpush1.bf16.msra.mxu0 0
      %1076 = vmatprep.subr.bf16.mxu0 0
      %1077 = vmatpush1.bf16.msra.mxu0 0
      %1078 = vmatprep.subr.bf16.mxu0 0
      %1079 = vmatpush1.bf16.msra.mxu0 0
      %1080 = vmatprep.subr.bf16.mxu0 0
      %1081 = vmatpush1.bf16.msra.mxu0 0
      %1082 = vmatprep.subr.bf16.mxu0 0
      %1083 = vmatpush1.bf16.msra.mxu0 0
      %1084 = vmatprep.subr.bf16.mxu0 0
      %1085 = vmatpush1.bf16.msra.mxu0 0
      %1086 = vmatprep.subr.bf16.mxu0 0
      %1087 = vmatpush1.bf16.msra.mxu0 0
      %1088 = vmatprep.subr.bf16.mxu0 0
      %1089 = vmatpush1.bf16.msra.mxu0 0
      %1090 = vmatprep.subr.bf16.mxu0 0
      %1091 = vmatpush1.bf16.msra.mxu0 0
      %1092 = vmatprep.subr.bf16.mxu0 0
      %1093 = vmatpush1.bf16.msra.mxu0 0
      %1094 = vmatprep.subr.bf16.mxu0 0
      %1095 = vmatpush1.bf16.msra.mxu0 0
      %1096 = vmatprep.subr.bf16.mxu0 0
      %1097 = vmatpush1.bf16.msra.mxu0 0
      %1098 = vmatprep.subr.bf16.mxu0 0
      %1099 = vmatpush1.bf16.msra.mxu0 0
      %1100 = vmatprep.subr.bf16.mxu0 0
      %1101 = vmatpush1.bf16.msra.mxu0 0
      %1102 = vmatprep.mubr.bf16.mxu0 0
      %1103 = vmatmul.mubr.bf16.gmra.mrb[0].mxu0 %v1056
      %v1104 = vpop.f32.mrb[0].mxu0
      %v1105 = vadd.f32 0.0, %v1104
      %v1106 = vpop.f32.mrb[0].mxu0
      %v1107 = vpop.f32.mrb[0].mxu0
      %v1108 = vadd.f32 0.0, %v1107
      %v1109 = vpop.f32.mrb[0].mxu0
      %1110 = vmatprep.mubr.bf16.mxu0 0
      %1111 = vmatmul.mubr.bf16.gmra.mrb[0].mxu0 %v1059
      %v1112 = vpop.f32.mrb[0].mxu0
      %v1113 = vadd.f32 0.0, %v1112
      %v1114 = vpop.f32.mrb[0].mxu0
      %v1115 = vpop.f32.mrb[0].mxu0
      %v1116 = vadd.f32 0.0, %v1115
      %v1117 = vpop.f32.mrb[0].mxu0
      %1118 = vmatprep.mubr.bf16.mxu0 0
      %1119 = vmatmul.mubr.bf16.gmra.mrb[0].mxu0 %v1062
      %v1120 = vpop.f32.mrb[0].mxu0
      %v1121 = vadd.f32 0.0, %v1120
      %v1122 = vpop.f32.mrb[0].mxu0
      %v1123 = vpop.f32.mrb[0].mxu0
      %v1124 = vadd.f32 0.0, %v1123
      %v1125 = vpop.f32.mrb[0].mxu0
      %1126 = vmatprep.mubr.bf16.mxu0 0
      %1127 = vmatmul.mubr.bf16.gmra.mrb[0].mxu0 %v1065
      %v1128 = vpop.f32.mrb[0].mxu0
      %v1129 = vadd.f32 0.0, %v1128
      %v1130 = vpop.f32.mrb[0].mxu0
      %v1131 = vpop.f32.mrb[0].mxu0
      %v1132 = vadd.f32 0.0, %v1131
      %v1133 = vpop.f32.mrb[0].mxu0
      %1134 = vdwg.mxu0
      %v1135 = vadd.f32 %v883, %v1105
      %v1136 = vadd.f32 %v886, %v1108
      %v1137 = vadd.f32 %v891, %v1113
      %v1138 = vadd.f32 %v894, %v1116
      %v1139 = vadd.f32 %v899, %v1121
      %v1140 = vadd.f32 %v902, %v1124
      %v1141 = vadd.f32 %v907, %v1129
      %v1142 = vadd.f32 %v910, %v1132
      %v1143 = vld [vmem:[#allocation2] sm:$0xff]
      %v1144 = vld [vmem:[#allocation2 + $0x8] sm:$0xff]
      %v1145 = vld [vmem:[#allocation2 + $0x10] sm:$0xff]
      %v1146 = vld [vmem:[#allocation2 + $0x18] sm:$0xff]
      %v1147 = vld [vmem:[#allocation2 + $0x20] sm:$0xff]
      %v1148 = vld [vmem:[#allocation2 + $0x28] sm:$0xff]
      %v1149 = vld [vmem:[#allocation2 + $0x30] sm:$0xff]
      %v1150 = vld [vmem:[#allocation2 + $0x38] sm:$0xff]
      %v1151 = vadd.f32 %v1143, %v1135
      %v1152 = vadd.f32 %v1144, %v1136
      %v1153 = vadd.f32 %v1145, %v1137
      %v1154 = vadd.f32 %v1146, %v1138
      %v1155 = vadd.f32 %v1147, %v1139
      %v1156 = vadd.f32 %v1148, %v1140
      %v1157 = vadd.f32 %v1149, %v1141
      %v1158 = vadd.f32 %v1150, %v1142
      %1159 = vst.msk [vmem:[#allocation2] sm:$0xff] %vm676, %v1151
      %1160 = vst.msk [vmem:[#allocation2 + $0x8] sm:$0xff] %vm676, %v1152
      %1161 = vst.msk [vmem:[#allocation2 + $0x10] sm:$0xff] %vm676, %v1153
      %1162 = vst.msk [vmem:[#allocation2 + $0x18] sm:$0xff] %vm676, %v1154
      %1163 = vst.msk [vmem:[#allocation2 + $0x20] sm:$0xff] %vm676, %v1155
      %1164 = vst.msk [vmem:[#allocation2 + $0x28] sm:$0xff] %vm676, %v1156
      %1165 = vst.msk [vmem:[#allocation2 + $0x30] sm:$0xff] %vm676, %v1157
      %1166 = vst.msk [vmem:[#allocation2 + $0x38] sm:$0xff] %vm676, %v1158
      %s1167 = sadd.s32 %s214, 1
      %s1168 = smul.u32 %s1167, 2
      %s1169 = smul.addr %s1168, 4
      %s1170 = scalar_lea.vmem %s195, %s1169
      %v1171 = vld [vmem:[%s1170] sm:$0xf]
      %v1172 = vld [vmem:[%s1170 + $0x8] sm:$0xf]
      %v1173 = vld [vmem:[%s1170 + $0x10] sm:$0xf]
      %v1174 = vld [vmem:[%s1170 + $0x18] sm:$0xf]
      %v1175 = vld [vmem:[%s1170 + $0x20] sm:$0xf]
      %v1176 = vld [vmem:[%s1170 + $0x28] sm:$0xf]
      %v1177 = vld [vmem:[%s1170 + $0x30] sm:$0xf]
      %v1178 = vld [vmem:[%s1170 + $0x38] sm:$0xf]
      %s1179 = scalar_lea.vmem %s1, 12
      %v1180 = vld [vmem:[%s1179] sm:$0x3]
      %s1181 = sadd.s32 %s214, 10
      %s1182 = smul.u32 %s1181, 2
      %s1183 = smul.addr %s1182, 4
      %s1184 = scalar_lea.vmem %s195, %s1183
      %v1185 = vld [vmem:[%s1184] sm:$0xf]
      %v1186 = vld [vmem:[%s1184 + $0x8] sm:$0xf]
      %v1187 = vld [vmem:[%s1184 + $0x10] sm:$0xf]
      %v1188 = vld [vmem:[%s1184 + $0x18] sm:$0xf]
      %v1189 = vld [vmem:[%s1184 + $0x20] sm:$0xf]
      %v1190 = vld [vmem:[%s1184 + $0x28] sm:$0xf]
      %v1191 = vld [vmem:[%s1184 + $0x30] sm:$0xf]
      %v1192 = vld [vmem:[%s1184 + $0x38] sm:$0xf]
      %s1193 = scalar_lea.vmem %s1, 14
      %v1194 = vld [vmem:[%s1193] sm:$0x3]
      %v1203 = vunpack.c.l.b16 %v1185
      %v1204 = vunpack.c.l.b16 %v1186
      %v1205 = vunpack.c.l.b16 %v1187
      %v1206 = vunpack.c.l.b16 %v1188
      %v1207 = vunpack.c.l.b16 %v1189
      %v1208 = vunpack.c.l.b16 %v1190
      %v1209 = vunpack.c.l.b16 %v1191
      %v1210 = vunpack.c.l.b16 %v1192
      %v1211 = vpack.c.b16 %v1204, %v1203
      %v1212 = vpack.c.b16 %v1206, %v1205
      %v1213 = vpack.c.b16 %v1208, %v1207
      %v1214 = vpack.c.b16 %v1210, %v1209
      %v1216 = vsel %vm261, %v1211, 0
      %v1219 = vsel %vm261, %v1212, 0
      %v1222 = vsel %vm261, %v1213, 0
      %v1225 = vsel %vm261, %v1214, 0
      %v1228 = vsel %vm274, %v1194, 0
      %1230 = vmatprep.subr.bf16.mxu0 0
      %1231 = vmatpush1.bf16.msra.mxu0 %v1228
      %1232 = vmatprep.subr.bf16.mxu0 0
      %1233 = vmatpush1.bf16.msra.mxu0 0
      %1234 = vmatprep.subr.bf16.mxu0 0
      %1235 = vmatpush1.bf16.msra.mxu0 0
      %1236 = vmatprep.subr.bf16.mxu0 0
      %1237 = vmatpush1.bf16.msra.mxu0 0
      %1238 = vmatprep.subr.bf16.mxu0 0
      %1239 = vmatpush1.bf16.msra.mxu0 0
      %1240 = vmatprep.subr.bf16.mxu0 0
      %1241 = vmatpush1.bf16.msra.mxu0 0
      %1242 = vmatprep.subr.bf16.mxu0 0
      %1243 = vmatpush1.bf16.msra.mxu0 0
      %1244 = vmatprep.subr.bf16.mxu0 0
      %1245 = vmatpush1.bf16.msra.mxu0 0
      %1246 = vmatprep.subr.bf16.mxu0 0
      %1247 = vmatpush1.bf16.msra.mxu0 0
      %1248 = vmatprep.subr.bf16.mxu0 0
      %1249 = vmatpush1.bf16.msra.mxu0 0
      %1250 = vmatprep.subr.bf16.mxu0 0
      %1251 = vmatpush1.bf16.msra.mxu0 0
      %1252 = vmatprep.subr.bf16.mxu0 0
      %1253 = vmatpush1.bf16.msra.mxu0 0
      %1254 = vmatprep.subr.bf16.mxu0 0
      %1255 = vmatpush1.bf16.msra.mxu0 0
      %1256 = vmatprep.subr.bf16.mxu0 0
      %1257 = vmatpush1.bf16.msra.mxu0 0
      %1258 = vmatprep.subr.bf16.mxu0 0
      %1259 = vmatpush1.bf16.msra.mxu0 0
      %1260 = vmatprep.subr.bf16.mxu0 0
      %1261 = vmatpush1.bf16.msra.mxu0 0
      %1262 = vmatprep.mubr.bf16.mxu0 0
      %1263 = vmatmul.mubr.bf16.gmra.mrb[0].mxu0 %v1216
      %v1264 = vpop.f32.mrb[0].mxu0
      %v1265 = vadd.f32 0.0, %v1264
      %v1266 = vpop.f32.mrb[0].mxu0
      %v1267 = vpop.f32.mrb[0].mxu0
      %v1268 = vadd.f32 0.0, %v1267
      %v1269 = vpop.f32.mrb[0].mxu0
      %1270 = vmatprep.mubr.bf16.mxu0 0
      %1271 = vmatmul.mubr.bf16.gmra.mrb[0].mxu0 %v1219
      %v1272 = vpop.f32.mrb[0].mxu0
      %v1273 = vadd.f32 0.0, %v1272
      %v1274 = vpop.f32.mrb[0].mxu0
      %v1275 = vpop.f32.mrb[0].mxu0
      %v1276 = vadd.f32 0.0, %v1275
      %v1277 = vpop.f32.mrb[0].mxu0
      %1278 = vmatprep.mubr.bf16.mxu0 0
      %1279 = vmatmul.mubr.bf16.gmra.mrb[0].mxu0 %v1222
      %v1280 = vpop.f32.mrb[0].mxu0
      %v1281 = vadd.f32 0.0, %v1280
      %v1282 = vpop.f32.mrb[0].mxu0
      %v1283 = vpop.f32.mrb[0].mxu0
      %v1284 = vadd.f32 0.0, %v1283
      %v1285 = vpop.f32.mrb[0].mxu0
      %1286 = vmatprep.mubr.bf16.mxu0 0
      %1287 = vmatmul.mubr.bf16.gmra.mrb[0].mxu0 %v1225
      %v1288 = vpop.f32.mrb[0].mxu0
      %v1289 = vadd.f32 0.0, %v1288
      %v1290 = vpop.f32.mrb[0].mxu0
      %v1291 = vpop.f32.mrb[0].mxu0
      %v1292 = vadd.f32 0.0, %v1291
      %v1293 = vpop.f32.mrb[0].mxu0
      %1294 = vdwg.mxu0
      %v1303 = vunpack.c.l.b16 %v1171
      %v1304 = vunpack.c.l.b16 %v1172
      %v1305 = vunpack.c.l.b16 %v1173
      %v1306 = vunpack.c.l.b16 %v1174
      %v1307 = vunpack.c.l.b16 %v1175
      %v1308 = vunpack.c.l.b16 %v1176
      %v1309 = vunpack.c.l.b16 %v1177
      %v1310 = vunpack.c.l.b16 %v1178
      %v1311 = vpack.c.b16 %v1304, %v1303
      %v1312 = vpack.c.b16 %v1306, %v1305
      %v1313 = vpack.c.b16 %v1308, %v1307
      %v1314 = vpack.c.b16 %v1310, %v1309
      %v1316 = vsel %vm261, %v1311, 0
      %v1319 = vsel %vm261, %v1312, 0
      %v1322 = vsel %vm261, %v1313, 0
      %v1325 = vsel %vm261, %v1314, 0
      %v1328 = vsel %vm274, %v1180, 0
      %1330 = vmatprep.subr.bf16.mxu0 0
      %1331 = vmatpush1.bf16.msra.mxu0 %v1328
      %1332 = vmatprep.subr.bf16.mxu0 0
      %1333 = vmatpush1.bf16.msra.mxu0 0
      %1334 = vmatprep.subr.bf16.mxu0 0
      %1335 = vmatpush1.bf16.msra.mxu0 0
      %1336 = vmatprep.subr.bf16.mxu0 0
      %1337 = vmatpush1.bf16.msra.mxu0 0
      %1338 = vmatprep.subr.bf16.mxu0 0
      %1339 = vmatpush1.bf16.msra.mxu0 0
      %1340 = vmatprep.subr.bf16.mxu0 0
      %1341 = vmatpush1.bf16.msra.mxu0 0
      %1342 = vmatprep.subr.bf16.mxu0 0
      %1343 = vmatpush1.bf16.msra.mxu0 0
      %1344 = vmatprep.subr.bf16.mxu0 0
      %1345 = vmatpush1.bf16.msra.mxu0 0
      %1346 = vmatprep.subr.bf16.mxu0 0
      %1347 = vmatpush1.bf16.msra.mxu0 0
      %1348 = vmatprep.subr.bf16.mxu0 0
      %1349 = vmatpush1.bf16.msra.mxu0 0
      %1350 = vmatprep.subr.bf16.mxu0 0
      %1351 = vmatpush1.bf16.msra.mxu0 0
      %1352 = vmatprep.subr.bf16.mxu0 0
      %1353 = vmatpush1.bf16.msra.mxu0 0
      %1354 = vmatprep.subr.bf16.mxu0 0
      %1355 = vmatpush1.bf16.msra.mxu0 0
      %1356 = vmatprep.subr.bf16.mxu0 0
      %1357 = vmatpush1.bf16.msra.mxu0 0
      %1358 = vmatprep.subr.bf16.mxu0 0
      %1359 = vmatpush1.bf16.msra.mxu0 0
      %1360 = vmatprep.subr.bf16.mxu0 0
      %1361 = vmatpush1.bf16.msra.mxu0 0
      %1362 = vmatprep.mubr.bf16.mxu0 0
      %1363 = vmatmul.mubr.bf16.gmra.mrb[0].mxu0 %v1316
      %v1364 = vpop.f32.mrb[0].mxu0
      %v1365 = vadd.f32 %v1265, %v1364
      %v1366 = vpop.f32.mrb[0].mxu0
      %v1367 = vpop.f32.mrb[0].mxu0
      %v1368 = vadd.f32 %v1268, %v1367
      %v1369 = vpop.f32.mrb[0].mxu0
      %1370 = vmatprep.mubr.bf16.mxu0 0
      %1371 = vmatmul.mubr.bf16.gmra.mrb[0].mxu0 %v1319
      %v1372 = vpop.f32.mrb[0].mxu0
      %v1373 = vadd.f32 %v1273, %v1372
      %v1374 = vpop.f32.mrb[0].mxu0
      %v1375 = vpop.f32.mrb[0].mxu0
      %v1376 = vadd.f32 %v1276, %v1375
      %v1377 = vpop.f32.mrb[0].mxu0
      %1378 = vmatprep.mubr.bf16.mxu0 0
      %1379 = vmatmul.mubr.bf16.gmra.mrb[0].mxu0 %v1322
      %v1380 = vpop.f32.mrb[0].mxu0
      %v1381 = vadd.f32 %v1281, %v1380
      %v1382 = vpop.f32.mrb[0].mxu0
      %v1383 = vpop.f32.mrb[0].mxu0
      %v1384 = vadd.f32 %v1284, %v1383
      %v1385 = vpop.f32.mrb[0].mxu0
      %1386 = vmatprep.mubr.bf16.mxu0 0
      %1387 = vmatmul.mubr.bf16.gmra.mrb[0].mxu0 %v1325
      %v1388 = vpop.f32.mrb[0].mxu0
      %v1389 = vadd.f32 %v1289, %v1388
      %v1390 = vpop.f32.mrb[0].mxu0
      %v1391 = vpop.f32.mrb[0].mxu0
      %v1392 = vadd.f32 %v1292, %v1391
      %v1393 = vpop.f32.mrb[0].mxu0
      %1394 = vdwg.mxu0
      %v1395 = vld [vmem:[%s1170] sm:$0xf]
      %v1396 = vld [vmem:[%s1170 + $0x4] sm:$0x1]
      %v1397 = vld [vmem:[%s1170 + $0x8] sm:$0xf]
      %v1398 = vld [vmem:[%s1170 + $0xc] sm:$0x1]
      %v1399 = vld [vmem:[%s1170 + $0x10] sm:$0xf]
      %v1400 = vld [vmem:[%s1170 + $0x14] sm:$0x1]
      %v1401 = vld [vmem:[%s1170 + $0x18] sm:$0xf]
      %v1402 = vld [vmem:[%s1170 + $0x1c] sm:$0x1]
      %v1403 = vld [vmem:[%s1170 + $0x20] sm:$0xf]
      %v1404 = vld [vmem:[%s1170 + $0x24] sm:$0x1]
      %v1405 = vld [vmem:[%s1170 + $0x28] sm:$0xf]
      %v1406 = vld [vmem:[%s1170 + $0x2c] sm:$0x1]
      %v1407 = vld [vmem:[%s1170 + $0x30] sm:$0xf]
      %v1408 = vld [vmem:[%s1170 + $0x34] sm:$0x1]
      %v1409 = vld [vmem:[%s1170 + $0x38] sm:$0xf]
      %v1410 = vld [vmem:[%s1170 + $0x3c] sm:$0x1]
      %v1412 = vshrl.u32 %v1395, 16
      %v1414 = vrot.slane %v1412, 4
      %v1415 = vshll.u32 %v1395, 16
      %v1417 = vrot.slane %v1415, 5
      %v1418 = vor.u32 %v1414, %v1417
      %v1419 = vrot.slane %v1418, 4
      %v1421 = vshll.u32 %v1396, 16
      %v1423 = vrot.slane %v1421, 5
      %v1424 = vsel %vm461, %v1419, %v1423
      %v1426 = vshrl.u32 %v1397, 16
      %v1428 = vrot.slane %v1426, 4
      %v1429 = vshll.u32 %v1397, 16
      %v1431 = vrot.slane %v1429, 5
      %v1432 = vor.u32 %v1428, %v1431
      %v1433 = vrot.slane %v1432, 4
      %v1435 = vshll.u32 %v1398, 16
      %v1437 = vrot.slane %v1435, 5
      %v1438 = vsel %vm461, %v1433, %v1437
      %v1440 = vshrl.u32 %v1399, 16
      %v1442 = vrot.slane %v1440, 4
      %v1443 = vshll.u32 %v1399, 16
      %v1445 = vrot.slane %v1443, 5
      %v1446 = vor.u32 %v1442, %v1445
      %v1447 = vrot.slane %v1446, 4
      %v1449 = vshll.u32 %v1400, 16
      %v1451 = vrot.slane %v1449, 5
      %v1452 = vsel %vm461, %v1447, %v1451
      %v1454 = vshrl.u32 %v1401, 16
      %v1456 = vrot.slane %v1454, 4
      %v1457 = vshll.u32 %v1401, 16
      %v1459 = vrot.slane %v1457, 5
      %v1460 = vor.u32 %v1456, %v1459
      %v1461 = vrot.slane %v1460, 4
      %v1463 = vshll.u32 %v1402, 16
      %v1465 = vrot.slane %v1463, 5
      %v1466 = vsel %vm461, %v1461, %v1465
      %v1468 = vshrl.u32 %v1403, 16
      %v1470 = vrot.slane %v1468, 4
      %v1471 = vshll.u32 %v1403, 16
      %v1473 = vrot.slane %v1471, 5
      %v1474 = vor.u32 %v1470, %v1473
      %v1475 = vrot.slane %v1474, 4
      %v1477 = vshll.u32 %v1404, 16
      %v1479 = vrot.slane %v1477, 5
      %v1480 = vsel %vm461, %v1475, %v1479
      %v1482 = vshrl.u32 %v1405, 16
      %v1484 = vrot.slane %v1482, 4
      %v1485 = vshll.u32 %v1405, 16
      %v1487 = vrot.slane %v1485, 5
      %v1488 = vor.u32 %v1484, %v1487
      %v1489 = vrot.slane %v1488, 4
      %v1491 = vshll.u32 %v1406, 16
      %v1493 = vrot.slane %v1491, 5
      %v1494 = vsel %vm461, %v1489, %v1493
      %v1496 = vshrl.u32 %v1407, 16
      %v1498 = vrot.slane %v1496, 4
      %v1499 = vshll.u32 %v1407, 16
      %v1501 = vrot.slane %v1499, 5
      %v1502 = vor.u32 %v1498, %v1501
      %v1503 = vrot.slane %v1502, 4
      %v1505 = vshll.u32 %v1408, 16
      %v1507 = vrot.slane %v1505, 5
      %v1508 = vsel %vm461, %v1503, %v1507
      %v1510 = vshrl.u32 %v1409, 16
      %v1512 = vrot.slane %v1510, 4
      %v1513 = vshll.u32 %v1409, 16
      %v1515 = vrot.slane %v1513, 5
      %v1516 = vor.u32 %v1512, %v1515
      %v1517 = vrot.slane %v1516, 4
      %v1519 = vshll.u32 %v1410, 16
      %v1521 = vrot.slane %v1519, 5
      %v1522 = vsel %vm461, %v1517, %v1521
      %s1523 = scalar_lea.vmem %s1, 16
      %v1524 = vld [vmem:[%s1523] sm:$0x3]
      %v1525 = vunpack.c.l.b16 %v1424
      %v1526 = vunpack.c.l.b16 %v1438
      %v1527 = vunpack.c.l.b16 %v1452
      %v1528 = vunpack.c.l.b16 %v1466
      %v1529 = vunpack.c.l.b16 %v1480
      %v1530 = vunpack.c.l.b16 %v1494
      %v1531 = vunpack.c.l.b16 %v1508
      %v1532 = vunpack.c.l.b16 %v1522
      %v1533 = vpack.c.b16 %v1526, %v1525
      %v1534 = vpack.c.b16 %v1528, %v1527
      %v1535 = vpack.c.b16 %v1530, %v1529
      %v1536 = vpack.c.b16 %v1532, %v1531
      %v1538 = vsel %vm261, %v1533, 0
      %v1541 = vsel %vm261, %v1534, 0
      %v1544 = vsel %vm261, %v1535, 0
      %v1547 = vsel %vm261, %v1536, 0
      %v1550 = vsel %vm274, %v1524, 0
      %1552 = vmatprep.subr.bf16.mxu0 0
      %1553 = vmatpush1.bf16.msra.mxu0 %v1550
      %1554 = vmatprep.subr.bf16.mxu0 0
      %1555 = vmatpush1.bf16.msra.mxu0 0
      %1556 = vmatprep.subr.bf16.mxu0 0
      %1557 = vmatpush1.bf16.msra.mxu0 0
      %1558 = vmatprep.subr.bf16.mxu0 0
      %1559 = vmatpush1.bf16.msra.mxu0 0
      %1560 = vmatprep.subr.bf16.mxu0 0
      %1561 = vmatpush1.bf16.msra.mxu0 0
      %1562 = vmatprep.subr.bf16.mxu0 0
      %1563 = vmatpush1.bf16.msra.mxu0 0
      %1564 = vmatprep.subr.bf16.mxu0 0
      %1565 = vmatpush1.bf16.msra.mxu0 0
      %1566 = vmatprep.subr.bf16.mxu0 0
      %1567 = vmatpush1.bf16.msra.mxu0 0
      %1568 = vmatprep.subr.bf16.mxu0 0
      %1569 = vmatpush1.bf16.msra.mxu0 0
      %1570 = vmatprep.subr.bf16.mxu0 0
      %1571 = vmatpush1.bf16.msra.mxu0 0
      %1572 = vmatprep.subr.bf16.mxu0 0
      %1573 = vmatpush1.bf16.msra.mxu0 0
      %1574 = vmatprep.subr.bf16.mxu0 0
      %1575 = vmatpush1.bf16.msra.mxu0 0
      %1576 = vmatprep.subr.bf16.mxu0 0
      %1577 = vmatpush1.bf16.msra.mxu0 0
      %1578 = vmatprep.subr.bf16.mxu0 0
      %1579 = vmatpush1.bf16.msra.mxu0 0
      %1580 = vmatprep.subr.bf16.mxu0 0
      %1581 = vmatpush1.bf16.msra.mxu0 0
      %1582 = vmatprep.subr.bf16.mxu0 0
      %1583 = vmatpush1.bf16.msra.mxu0 0
      %1584 = vmatprep.mubr.bf16.mxu0 0
      %1585 = vmatmul.mubr.bf16.gmra.mrb[0].mxu0 %v1538
      %v1586 = vpop.f32.mrb[0].mxu0
      %v1587 = vadd.f32 0.0, %v1586
      %v1588 = vpop.f32.mrb[0].mxu0
      %v1589 = vpop.f32.mrb[0].mxu0
      %v1590 = vadd.f32 0.0, %v1589
      %v1591 = vpop.f32.mrb[0].mxu0
      %1592 = vmatprep.mubr.bf16.mxu0 0
      %1593 = vmatmul.mubr.bf16.gmra.mrb[0].mxu0 %v1541
      %v1594 = vpop.f32.mrb[0].mxu0
      %v1595 = vadd.f32 0.0, %v1594
      %v1596 = vpop.f32.mrb[0].mxu0
      %v1597 = vpop.f32.mrb[0].mxu0
      %v1598 = vadd.f32 0.0, %v1597
      %v1599 = vpop.f32.mrb[0].mxu0
      %1600 = vmatprep.mubr.bf16.mxu0 0
      %1601 = vmatmul.mubr.bf16.gmra.mrb[0].mxu0 %v1544
      %v1602 = vpop.f32.mrb[0].mxu0
      %v1603 = vadd.f32 0.0, %v1602
      %v1604 = vpop.f32.mrb[0].mxu0
      %v1605 = vpop.f32.mrb[0].mxu0
      %v1606 = vadd.f32 0.0, %v1605
      %v1607 = vpop.f32.mrb[0].mxu0
      %1608 = vmatprep.mubr.bf16.mxu0 0
      %1609 = vmatmul.mubr.bf16.gmra.mrb[0].mxu0 %v1547
      %v1610 = vpop.f32.mrb[0].mxu0
      %v1611 = vadd.f32 0.0, %v1610
      %v1612 = vpop.f32.mrb[0].mxu0
      %v1613 = vpop.f32.mrb[0].mxu0
      %v1614 = vadd.f32 0.0, %v1613
      %v1615 = vpop.f32.mrb[0].mxu0
      %1616 = vdwg.mxu0
      %v1617 = vadd.f32 %v1365, %v1587
      %v1618 = vadd.f32 %v1368, %v1590
      %v1619 = vadd.f32 %v1373, %v1595
      %v1620 = vadd.f32 %v1376, %v1598
      %v1621 = vadd.f32 %v1381, %v1603
      %v1622 = vadd.f32 %v1384, %v1606
      %v1623 = vadd.f32 %v1389, %v1611
      %v1624 = vadd.f32 %v1392, %v1614
      %v1625 = vld [vmem:[#allocation2] sm:$0xff]
      %v1626 = vld [vmem:[#allocation2 + $0x8] sm:$0xff]
      %v1627 = vld [vmem:[#allocation2 + $0x10] sm:$0xff]
      %v1628 = vld [vmem:[#allocation2 + $0x18] sm:$0xff]
      %v1629 = vld [vmem:[#allocation2 + $0x20] sm:$0xff]
      %v1630 = vld [vmem:[#allocation2 + $0x28] sm:$0xff]
      %v1631 = vld [vmem:[#allocation2 + $0x30] sm:$0xff]
      %v1632 = vld [vmem:[#allocation2 + $0x38] sm:$0xff]
      %v1633 = vadd.f32 %v1625, %v1617
      %v1634 = vadd.f32 %v1626, %v1618
      %v1635 = vadd.f32 %v1627, %v1619
      %v1636 = vadd.f32 %v1628, %v1620
      %v1637 = vadd.f32 %v1629, %v1621
      %v1638 = vadd.f32 %v1630, %v1622
      %v1639 = vadd.f32 %v1631, %v1623
      %v1640 = vadd.f32 %v1632, %v1624
      %v1641 = vpack.c.bf16 %v1633, %v1633
      %v1642 = vpack.c.bf16 %v1634, %v1634
      %v1643 = vpack.c.bf16 %v1635, %v1635
      %v1644 = vpack.c.bf16 %v1636, %v1636
      %v1645 = vpack.c.bf16 %v1637, %v1637
      %v1646 = vpack.c.bf16 %v1638, %v1638
      %v1647 = vpack.c.bf16 %v1639, %v1639
      %v1648 = vpack.c.bf16 %v1640, %v1640
      %vm1649 = vcmask 60416
      %1650 = vst.msk [vmem:[%s204] sm:$0xf] %vm1649, %v1641
      %1651 = vst.msk [vmem:[%s204 + $0x4] sm:$0xf] %vm1649, %v1642
      %1652 = vst.msk [vmem:[%s204 + $0x8] sm:$0xf] %vm1649, %v1643
      %1653 = vst.msk [vmem:[%s204 + $0xc] sm:$0xf] %vm1649, %v1644
      %1654 = vst.msk [vmem:[%s204 + $0x10] sm:$0xf] %vm1649, %v1645
      %1655 = vst.msk [vmem:[%s204 + $0x14] sm:$0xf] %vm1649, %v1646
      %1656 = vst.msk [vmem:[%s204 + $0x18] sm:$0xf] %vm1649, %v1647
      %1657 = vst.msk [vmem:[%s204 + $0x1c] sm:$0xf] %vm1649, %v1648
      %v1658 = vsel %vm676, %v1633, 0.0
      %v1659 = vsel %vm676, %v1634, 0.0
      %v1660 = vadd.f32 %v1658, %v1659
      %v1661 = vsel %vm676, %v1635, 0.0
      %v1662 = vadd.f32 %v1660, %v1661
      %v1663 = vsel %vm676, %v1636, 0.0
      %v1664 = vadd.f32 %v1662, %v1663
      %v1665 = vsel %vm676, %v1637, 0.0
      %v1666 = vadd.f32 %v1664, %v1665
      %v1667 = vsel %vm676, %v1638, 0.0
      %v1668 = vadd.f32 %v1666, %v1667
      %v1669 = vsel %vm676, %v1639, 0.0
      %v1670 = vadd.f32 %v1668, %v1669
      %v1671 = vsel %vm676, %v1640, 0.0
      %v1672 = vadd.f32 %v1670, %v1671
      %v1673 = vrot.slane %v1672, 4
      %v1674 = vadd.f32 %v1672, %v1673
      %v1675 = vrot.slane %v1674, 2
      %v1676 = vadd.f32 %v1674, %v1675
      %v1677 = vrot.slane %v1676, 1
      %v1678 = vadd.f32 %v1676, %v1677
      %vm1679 = vcmask 57344
      %1680 = vst.msk [vmem:[%s212] sm:$0x1] %vm1679, %v1678
      %v1681 = vmul.f32 %v1633, %v1633
      %v1682 = vmul.f32 %v1634, %v1634
      %v1683 = vmul.f32 %v1635, %v1635
      %v1684 = vmul.f32 %v1636, %v1636
      %v1685 = vmul.f32 %v1637, %v1637
      %v1686 = vmul.f32 %v1638, %v1638
      %v1687 = vmul.f32 %v1639, %v1639
      %v1688 = vmul.f32 %v1640, %v1640
      %v1689 = vsel %vm676, %v1681, 0.0
      %v1690 = vsel %vm676, %v1682, 0.0
      %v1691 = vadd.f32 %v1689, %v1690
      %v1692 = vsel %vm676, %v1683, 0.0
      %v1693 = vadd.f32 %v1691, %v1692
      %v1694 = vsel %vm676, %v1684, 0.0
      %v1695 = vadd.f32 %v1693, %v1694
      %v1696 = vsel %vm676, %v1685, 0.0
      %v1697 = vadd.f32 %v1695, %v1696
      %v1698 = vsel %vm676, %v1686, 0.0
      %v1699 = vadd.f32 %v1697, %v1698
      %v1700 = vsel %vm676, %v1687, 0.0
      %v1701 = vadd.f32 %v1699, %v1700
      %v1702 = vsel %vm676, %v1688, 0.0
      %v1703 = vadd.f32 %v1701, %v1702
      %v1704 = vrot.slane %v1703, 4
      %v1705 = vadd.f32 %v1703, %v1704
      %v1706 = vrot.slane %v1705, 2
      %v1707 = vadd.f32 %v1705, %v1706
      %v1708 = vrot.slane %v1707, 1
      %v1709 = vadd.f32 %v1707, %v1708
      %1710 = vst.msk [vmem:[%s212 + $0x1] sm:$0x1] %vm1679, %v1709
      %s1711 = smul.u32 8, %s20
      %p1712 = scmp.lt.s32.totalorder %s19, 1
      %s1713 = scalar_select %p1712, %s19, 1
      %p1714 = scmp.lt.s32.totalorder %s1711, 7
      %s1715 = scalar_select %p1714, %s1711, 7
      %s1716 = smul.addr %s1713, 8
      %s1717 = sadd.s32 %s1715, %s1716
      %s1718 = smul.addr %s1717, 4
      %s1719 = scalar_lea.vmem %s2, %s1718
      %p1720 = scmp.lt.s32.totalorder %s19, 1
      %s1721 = scalar_select %p1720, %s19, 1
      %p1722 = scmp.lt.s32.totalorder %s20, 0
      %s1723 = scalar_select %p1722, %s20, 0
      %s1724 = sadd.s32 %s1723, %s1721
      %s1725 = smul.addr %s1724, 2
      %s1726 = scalar_lea.vmem %s3, %s1725
      // Predicated region
      $region29: #{basic_block_forward.4} parent=27 // pred_check
        %p1727 = pneg %p94
      $region30: #{basic_block_forward.4} parent=27 // pred_check_branch
        %1729 = sbr.rel (%p1727) target = $region32
      $region31: #{basic_block_forward.4} parent=27 // pred_region
        %s1730 = smul.u32 8, %s20
      $region32: #{basic_block_forward.4} parent=27 // pred_fallthru
        _
      // Predicated region
      $region33: #{basic_block_forward.4} parent=27 // pred_check
        %p1731 = pneg %p122
      $region34: #{basic_block_forward.4} parent=27 // pred_check_branch
        %1733 = sbr.rel (%p1731) target = $region36
      $region35: #{basic_block_forward.4} parent=27 // pred_region
        _
      $region36: #{basic_block_forward.4} parent=27 // pred_fallthru
        _
    $region28: #{basic_block_forward.4} parent=5 // pred_fallthru
      _
    %p1734 = scmp.le.s32.totalorder 2, %s10
    // Predicated region
    $region37: #{basic_block_forward.4} parent=5 // pred_check
      %p1735 = pneg %p1734
    $region38: #{basic_block_forward.4} parent=5 // pred_check_branch
      %1737 = sbr.rel (%p1735) target = $region40
    $region39: #{basic_block_forward.4} parent=5 // pred_region
      %s1738 = ssub.s32 %s10, 2
      // Predicated region
      $region41: #{basic_block_forward.4} parent=39 // pred_check
        %p1739 = pneg %p100
      $region42: #{basic_block_forward.4} parent=39 // pred_check_branch
        %1741 = sbr.rel (%p1739) target = $region44
      $region43: #{basic_block_forward.4} parent=39 // pred_region
        %s1742 = smul.u32 8, %s22
        %p1743 = scmp.lt.s32.totalorder %s21, 1
        %s1744 = scalar_select %p1743, %s21, 1
        %p1745 = scmp.lt.s32.totalorder %s1742, 7
        %s1746 = scalar_select %p1745, %s1742, 7
        %s1747 = smul.addr %s1744, 8
        %s1748 = sadd.s32 %s1746, %s1747
        %s1749 = smul.addr %s1748, 4
        %s1750 = scalar_lea.vmem %s2, %s1749
      $region44: #{basic_block_forward.4} parent=39 // pred_fallthru
        _
      // Predicated region
      $region45: #{basic_block_forward.4} parent=39 // pred_check
        %p1751 = pneg %p128
      $region46: #{basic_block_forward.4} parent=39 // pred_check_branch
        %1753 = sbr.rel (%p1751) target = $region48
      $region47: #{basic_block_forward.4} parent=39 // pred_region
        %p1754 = scmp.lt.s32.totalorder %s21, 1
        %s1755 = scalar_select %p1754, %s21, 1
        %p1756 = scmp.lt.s32.totalorder %s22, 0
        %s1757 = scalar_select %p1756, %s22, 0
        %s1758 = sadd.s32 %s1757, %s1755
        %s1759 = smul.addr %s1758, 2
        %s1760 = scalar_lea.vmem %s3, %s1759
      $region48: #{basic_block_forward.4} parent=39 // pred_fallthru
        _
    $region40: #{basic_block_forward.4} parent=5 // pred_fallthru
      _
  $region6: #{basic_block_forward.4} parent=0 // loop_footer
    %s14 = sadd.s32 1, %s10
  $region7: #{basic_block_forward.4} parent=0 // loop_footer_branch
    %9 = sbr.rel target = $region3
  $region8: #{basic_block_forward.4} parent=0 // loop_exit
    _

// kernel: basic_block_forward.5
$region0: #{basic_block_forward.5}
  #allocation0 [shape = 'u32[]', space=smem, size = 0x4, offset = 0x4, fixed_abs, tag = 'smem constant byte address 0x4 - core index']
  #allocation1 [shape = 'u32[144,128]{1,0:T(1,128)}', space=vmem, size = 0x12000, scoped, tag = 'internal scratch']
  #allocation2 [shape = 'bf16[10,10,8]{2,1,0:T(8,128)(2,1)}', space=vmem, size = 0xa000, scoped, tag = 'scratch operand']
  #allocation3 [shape = 'f32[64,8]{1,0:T(8,128)}', space=vmem, size = 0x8000, scoped, tag = 'scratch operand']
  %s0 = inlined_call_operand.vmem [shape: bf16[2,8,8,8], index: 0, kind: input, shape index: {}]
  %s1 = inlined_call_operand.vmem [shape: bf16[3,3,8,8], index: 1, kind: input, shape index: {}]
  %s2 = inlined_call_operand.vmem [shape: f32[1,8], index: 2, kind: input, shape index: {}]
  %s3 = inlined_call_operand.vmem [shape: f32[1,8], index: 3, kind: input, shape index: {}]
  %s4 = inlined_call_operand.vmem [shape: bf16[2,8,8,8], index: 4, kind: output, shape index: {0}]
  %s5 = inlined_call_operand.vmem [shape: f32[2,1,2,8], index: 5, kind: output, shape index: {1}]
  %6 = xla_tuple %s4, %s5
  %s7 = sld [smem:[#allocation0]]
  $region61: #{basic_block_forward.5} parent=0
    _
  %s9 = ssub.s32 1, %s7
  %s10 = scalar_select 0, %s9, %s7
  loop: start=0, step=1, limit=4
  $region2: #{basic_block_forward.5} parent=0 // loop_pre_header
    _
  $region3: #{basic_block_forward.5} parent=0 // loop_header
    %s12 = sphi 0, %s16
    %p13 = scmp.ge.s32.totalorder %s12, 4
    %s19 = sphi 0, %s31
    %s20 = sphi 0, %s27
    %s21 = sphi 0, %s19
    %s22 = sphi 0, %s20
    %s23 = sphi 0, %s21
    %s24 = sphi 0, %s22
    %s34 = sphi 0, %s36
    %s37 = sphi 0, %s34
    %s38 = sphi 0, %s37
    %s54 = sphi 0, %s38
    %s58 = sphi 0, %s58
    %s60 = sphi 0, %s58
    %s61 = sphi 0, %s60
    %s75 = sphi 0, %s61
    %s79 = sphi 0, %s79
    %s81 = sphi 0, %s79
    %s82 = sphi 0, %s81
    %s96 = sphi 0, %s82
    %s100 = sphi 0, %s100
    %s102 = sphi 0, %s100
    %s103 = sphi 0, %s102
    %s117 = sphi 0, %s103
    %s125 = sphi 0, %s127
    %s128 = sphi 0, %s125
    %s129 = sphi 0, %s128
    %s145 = sphi 0, %s129
    %s153 = sphi 0, %s155
    %s156 = sphi 0, %s153
    %s157 = sphi 0, %s156
    %s173 = sphi 0, %s157
  $region4: #{basic_block_forward.5} parent=0 // loop_header_branch
    %15 = sbr.rel (%p13) target = $region8
  $region5: #{basic_block_forward.5} parent=0 // loop_body
    %s17 = ssub.s32 %s12, 1
    %s18 = ssub.s32 %s12, 2
    %s25 = sadd.s32 1, %s20
    %p26 = scmp.ge.s32.totalorder %s25, 1
    %s27 = scalar_select %p26, 0, %s25
    %s28 = sadd.s32 1, %s19
    %s29 = scalar_select %p26, %s28, %s19
    %p30 = scmp.ge.s32.totalorder %s29, 2
    %s31 = scalar_select %p30, 0, %s29
    %s32 = ssub.s32 %s19, %s31
    %p33 = scmp.eq.s32.totalorder %s32, 0
    %s35 = sadd.s32 %s34, 1
    %s36 = scalar_select %p33, %s34, %s35
    %p39 = pneg %p33
    %p40 = scmp.eq.s32.totalorder %s12, 1
    %p41 = por %p39, %p40
    %p42 = scmp.ne.s32.totalorder %s34, %s37
    %p43 = scmp.eq.s32.totalorder %s12, 0
    %p44 = por %p42, %p43
    %p45 = scmp.ne.s32.totalorder %s34, %s37
    %p46 = scmp.eq.s32.totalorder %s17, 1
    %p47 = por %p45, %p46
    %p48 = scmp.ne.s32.totalorder %s37, %s38
    %p49 = scmp.eq.s32.totalorder %s17, 0
    %p50 = por %p48, %p49
    %p51 = scmp.ne.s32.totalorder %s37, %s38
    %p52 = scmp.eq.s32.totalorder %s18, 1
    %p53 = por %p51, %p52
    %p55 = scmp.ne.s32.totalorder %s38, %s54
    %p56 = scmp.eq.s32.totalorder %s18, 0
    %p57 = por %p55, %p56
    %s59 = sadd.s32 %s58, 1
    %p62 = scmp.eq.s32.totalorder %s12, 1
    %p63 = scmp.ne.s32.totalorder %s58, %s60
    %p64 = scmp.eq.s32.totalorder %s12, 0
    %p65 = por %p63, %p64
    %p66 = scmp.ne.s32.totalorder %s58, %s60
    %p67 = scmp.eq.s32.totalorder %s17, 1
    %p68 = por %p66, %p67
    %p69 = scmp.ne.s32.totalorder %s60, %s61
    %p70 = scmp.eq.s32.totalorder %s17, 0
    %p71 = por %p69, %p70
    %p72 = scmp.ne.s32.totalorder %s60, %s61
    %p73 = scmp.eq.s32.totalorder %s18, 1
    %p74 = por %p72, %p73
    %p76 = scmp.ne.s32.totalorder %s61, %s75
    %p77 = scmp.eq.s32.totalorder %s18, 0
    %p78 = por %p76, %p77
    %s80 = sadd.s32 %s79, 1
    %p83 = scmp.eq.s32.totalorder %s12, 1
    %p84 = scmp.ne.s32.totalorder %s79, %s81
    %p85 = scmp.eq.s32.totalorder %s12, 0
    %p86 = por %p84, %p85
    %p87 = scmp.ne.s32.totalorder %s79, %s81
    %p88 = scmp.eq.s32.totalorder %s17, 1
    %p89 = por %p87, %p88
    %p90 = scmp.ne.s32.totalorder %s81, %s82
    %p91 = scmp.eq.s32.totalorder %s17, 0
    %p92 = por %p90, %p91
    %p93 = scmp.ne.s32.totalorder %s81, %s82
    %p94 = scmp.eq.s32.totalorder %s18, 1
    %p95 = por %p93, %p94
    %p97 = scmp.ne.s32.totalorder %s82, %s96
    %p98 = scmp.eq.s32.totalorder %s18, 0
    %p99 = por %p97, %p98
    %s101 = sadd.s32 %s100, 1
    %p104 = scmp.eq.s32.totalorder %s12, 1
    %p105 = scmp.ne.s32.totalorder %s100, %s102
    %p106 = scmp.eq.s32.totalorder %s12, 0
    %p107 = por %p105, %p106
    %p108 = scmp.ne.s32.totalorder %s100, %s102
    %p109 = scmp.eq.s32.totalorder %s17, 1
    %p110 = por %p108, %p109
    %p111 = scmp.ne.s32.totalorder %s102, %s103
    %p112 = scmp.eq.s32.totalorder %s17, 0
    %p113 = por %p111, %p112
    %p114 = scmp.ne.s32.totalorder %s102, %s103
    %p115 = scmp.eq.s32.totalorder %s18, 1
    %p116 = por %p114, %p115
    %p118 = scmp.ne.s32.totalorder %s103, %s117
    %p119 = scmp.eq.s32.totalorder %s18, 0
    %p120 = por %p118, %p119
    %s121 = ssub.s32 %s19, %s31
    %s122 = ssub.s32 %s20, %s27
    %s123 = sor.u32 %s121, %s122
    %p124 = scmp.eq.s32.totalorder %s123, 0
    %s126 = sadd.s32 %s125, 1
    %s127 = scalar_select %p124, %s125, %s126
    %p130 = pneg %p124
    %p131 = scmp.eq.s32.totalorder %s12, 1
    %p132 = por %p130, %p131
    %p133 = scmp.ne.s32.totalorder %s125, %s128
    %p134 = scmp.eq.s32.totalorder %s12, 0
    %p135 = por %p133, %p134
    %p136 = scmp.ne.s32.totalorder %s125, %s128
    %p137 = scmp.eq.s32.totalorder %s17, 1
    %p138 = por %p136, %p137
    %p139 = scmp.ne.s32.totalorder %s128, %s129
    %p140 = scmp.eq.s32.totalorder %s17, 0
    %p141 = por %p139, %p140
    %p142 = scmp.ne.s32.totalorder %s128, %s129
    %p143 = scmp.eq.s32.totalorder %s18, 1
    %p144 = por %p142, %p143
    %p146 = scmp.ne.s32.totalorder %s129, %s145
    %p147 = scmp.eq.s32.totalorder %s18, 0
    %p148 = por %p146, %p147
    %s149 = ssub.s32 %s19, %s31
    %s150 = ssub.s32 %s20, %s27
    %s151 = sor.u32 %s149, %s150
    %p152 = scmp.eq.s32.totalorder %s151, 0
    %s154 = sadd.s32 %s153, 1
    %s155 = scalar_select %p152, %s153, %s154
    %p158 = pneg %p152
    %p159 = scmp.eq.s32.totalorder %s12, 1
    %p160 = por %p158, %p159
    %p161 = scmp.ne.s32.totalorder %s153, %s156
    %p162 = scmp.eq.s32.totalorder %s12, 0
    %p163 = por %p161, %p162
    %p164 = scmp.ne.s32.totalorder %s153, %s156
    %p165 = scmp.eq.s32.totalorder %s17, 1
    %p166 = por %p164, %p165
    %p167 = scmp.ne.s32.totalorder %s156, %s157
    %p168 = scmp.eq.s32.totalorder %s17, 0
    %p169 = por %p167, %p168
    %p170 = scmp.ne.s32.totalorder %s156, %s157
    %p171 = scmp.eq.s32.totalorder %s18, 1
    %p172 = por %p170, %p171
    %p174 = scmp.ne.s32.totalorder %s157, %s173
    %p175 = scmp.eq.s32.totalorder %s18, 0
    %p176 = por %p174, %p175
    %p177 = scmp.le.s32.totalorder 1, %s12
    %p178 = scmp.lt.s32.totalorder %s12, 3
    %p179 = pnand %p177, %p178
    %p180 = pneg %p179
    // Predicated region
    $region9: #{basic_block_forward.5} parent=5 // pred_check
      _
    $region10: #{basic_block_forward.5} parent=5 // pred_check_branch
      %182 = sbr.rel (%p179) target = $region12
    $region11: #{basic_block_forward.5} parent=5 // pred_region
      %s183 = ssub.s32 %s12, 1
      // Predicated region
      $region13: #{basic_block_forward.5} parent=11 // pred_check
        %p184 = pneg %p71
      $region14: #{basic_block_forward.5} parent=11 // pred_check_branch
        %186 = sbr.rel (%p184) target = $region16
      $region15: #{basic_block_forward.5} parent=11 // pred_region
        _
      $region16: #{basic_block_forward.5} parent=11 // pred_fallthru
        _
      // Predicated region
      $region17: #{basic_block_forward.5} parent=11 // pred_check
        %p187 = pneg %p92
      $region18: #{basic_block_forward.5} parent=11 // pred_check_branch
        %189 = sbr.rel (%p187) target = $region20
      $region19: #{basic_block_forward.5} parent=11 // pred_region
        _
      $region20: #{basic_block_forward.5} parent=11 // pred_fallthru
        _
      // Predicated region
      $region21: #{basic_block_forward.5} parent=11 // pred_check
        %p190 = pneg %p113
      $region22: #{basic_block_forward.5} parent=11 // pred_check_branch
        %192 = sbr.rel (%p190) target = $region24
      $region23: #{basic_block_forward.5} parent=11 // pred_region
        _
      $region24: #{basic_block_forward.5} parent=11 // pred_fallthru
        _
    $region12: #{basic_block_forward.5} parent=5 // pred_fallthru
      _
    %p193 = scmp.lt.s32.totalorder %s12, 2
    // Predicated region
    $region25: #{basic_block_forward.5} parent=5 // pred_check
      %p194 = pneg %p193
    $region26: #{basic_block_forward.5} parent=5 // pred_check_branch
      %196 = sbr.rel (%p194) target = $region28
    $region27: #{basic_block_forward.5} parent=5 // pred_region
      // Predicated region
      $region29: #{basic_block_forward.5} parent=27 // pred_check
        %p197 = pneg %p44
      $region30: #{basic_block_forward.5} parent=27 // pred_check_branch
        %199 = sbr.rel (%p197) target = $region32
      $region31: #{basic_block_forward.5} parent=27 // pred_region
        %p200 = scmp.lt.s32.totalorder %s19, 1
        %s201 = scalar_select %p200, %s19, 1
        %s202 = smul.addr %s201, 8
        %s203 = smul.addr %s202, 4
        %s204 = scalar_lea.vmem %s0, %s203
      $region32: #{basic_block_forward.5} parent=27 // pred_fallthru
        _
    $region28: #{basic_block_forward.5} parent=5 // pred_fallthru
      _
    %p205 = scmp.le.s32.totalorder 1, %s12
    %p206 = scmp.lt.s32.totalorder %s12, 3
    %p207 = pnand %p205, %p206
    %p208 = pneg %p207
    // Predicated region
    $region33: #{basic_block_forward.5} parent=5 // pred_check
      _
    $region34: #{basic_block_forward.5} parent=5 // pred_check_branch
      %210 = sbr.rel (%p207) target = $region36
    $region35: #{basic_block_forward.5} parent=5 // pred_region
      %s211 = ssub.s32 %s12, 1
      %p212 = scmp.lt.s32.totalorder %s21, 1
      %s213 = scalar_select %p212, %s21, 1
      %s214 = smul.addr %s213, 8
      %s215 = smul.addr %s214, 4
      %s216 = scalar_lea.vmem %s0, %s215
      %p217 = pneg %p50
      %p218 = pneg %p47
      %p219 = pneg %p71
      %p220 = pneg %p68
      %p221 = pneg %p92
      %p222 = pneg %p89
      %p223 = pneg %p113
      %p224 = pneg %p110
      %p225 = pneg %p141
      %p226 = pneg %p138
      %s227 = smul.u32 8, %s22
      %p228 = scmp.lt.s32.totalorder %s21, 1
      %s229 = scalar_select %p228, %s21, 1
      %p230 = scmp.lt.s32.totalorder %s227, 7
      %s231 = scalar_select %p230, %s227, 7
      %s232 = smul.addr %s229, 8
      %s233 = sadd.s32 %s231, %s232
      %s234 = smul.addr %s233, 4
      %s235 = scalar_lea.vmem %s4, %s234
      %p236 = pneg %p169
      %p237 = pneg %p166
      %p238 = scmp.lt.s32.totalorder %s21, 1
      %s239 = scalar_select %p238, %s21, 1
      %p240 = scmp.lt.s32.totalorder %s22, 0
      %s241 = scalar_select %p240, %s22, 0
      %s242 = sadd.s32 %s241, %s239
      %s243 = smul.addr %s242, 2
      %s244 = scalar_lea.vmem %s5, %s243
      %p245 = scmp.lt.s32.totalorder %s21, 1
      %s246 = scalar_select %p245, %s21, 1
      %s247 = smul.addr %s246, 8
      %s248 = smul.addr %s247, 4
      %s249 = scalar_lea.vmem %s0, %s248
      %s250 = smul.u32 8, %s22
      %p251 = scmp.lt.s32.totalorder %s21, 1
      %s252 = scalar_select %p251, %s21, 1
      %p253 = scmp.lt.s32.totalorder %s250, 7
      %s254 = scalar_select %p253, %s250, 7
      %s255 = smul.addr %s252, 8
      %s256 = sadd.s32 %s254, %s255
      %s257 = smul.addr %s256, 4
      %s258 = scalar_lea.vmem %s4, %s257
      %s259 = smul.u32 8, %s22
      %p260 = scmp.lt.s32.totalorder %s21, 1
      %s261 = scalar_select %p260, %s21, 1
      %p262 = scmp.lt.s32.totalorder %s22, 0
      %s263 = scalar_select %p262, %s22, 0
      %s264 = sadd.s32 %s263, %s261
      %s265 = smul.addr %s264, 2
      %s266 = scalar_lea.vmem %s5, %s265
      %p268 = scmp.eq.s32.totalorder %s22, 0
      // Predicated region
      $region37: #{basic_block_forward.5} parent=35 // pred_check
        %p269 = pneg %p268
      $region38: #{basic_block_forward.5} parent=35 // pred_check_branch
        %271 = sbr.rel (%p269) target = $region40
      $region39: #{basic_block_forward.5} parent=35 // pred_region
        %vm272 = vcmask 60416
        %273 = vst.msk [vmem:[#allocation2] sm:$0xf] %vm272, 0
        %vm274 = vcmask 57344
        %275 = vst.msk [vmem:[#allocation2 + $0x4] sm:$0x1] %vm274, 0
        %276 = vst.msk [vmem:[#allocation2 + $0x8] sm:$0xf] %vm272, 0
        %277 = vst.msk [vmem:[#allocation2 + $0xc] sm:$0x1] %vm274, 0
        %278 = vst.msk [vmem:[#allocation2 + $0x10] sm:$0xf] %vm272, 0
        %279 = vst.msk [vmem:[#allocation2 + $0x14] sm:$0x1] %vm274, 0
        %280 = vst.msk [vmem:[#allocation2 + $0x18] sm:$0xf] %vm272, 0
        %281 = vst.msk [vmem:[#allocation2 + $0x1c] sm:$0x1] %vm274, 0
        %282 = vst.msk [vmem:[#allocation2 + $0x20] sm:$0xf] %vm272, 0
        %283 = vst.msk [vmem:[#allocation2 + $0x24] sm:$0x1] %vm274, 0
        %284 = vst.msk [vmem:[#allocation2 + $0x28] sm:$0xf] %vm272, 0
        %285 = vst.msk [vmem:[#allocation2 + $0x2c] sm:$0x1] %vm274, 0
        %286 = vst.msk [vmem:[#allocation2 + $0x30] sm:$0xf] %vm272, 0
        %287 = vst.msk [vmem:[#allocation2 + $0x34] sm:$0x1] %vm274, 0
        %288 = vst.msk [vmem:[#allocation2 + $0x38] sm:$0xf] %vm272, 0
        %289 = vst.msk [vmem:[#allocation2 + $0x3c] sm:$0x1] %vm274, 0
        %290 = vst.msk [vmem:[#allocation2 + $0x40] sm:$0xf] %vm272, 0
        %291 = vst.msk [vmem:[#allocation2 + $0x44] sm:$0x1] %vm274, 0
        %292 = vst.msk [vmem:[#allocation2 + $0x48] sm:$0xf] %vm272, 0
        %293 = vst.msk [vmem:[#allocation2 + $0x4c] sm:$0x1] %vm274, 0
        %v294 = vld [vmem:[%s2] sm:$0x1]
        %v295 = vld [vmem:[%s3] sm:$0x1]
        %v296 = vld [vmem:[%s249] sm:$0xf]
        %v297 = vld [vmem:[%s249 + $0x4] sm:$0xf]
        %v298 = vld [vmem:[%s249 + $0x8] sm:$0xf]
        %v299 = vld [vmem:[%s249 + $0xc] sm:$0xf]
        %v300 = vld [vmem:[%s249 + $0x10] sm:$0xf]
        %v301 = vld [vmem:[%s249 + $0x14] sm:$0xf]
        %v302 = vld [vmem:[%s249 + $0x18] sm:$0xf]
        %v303 = vld [vmem:[%s249 + $0x1c] sm:$0xf]
        %v304 = vunpack.c.l.bf16 %v296
        %v305 = vunpack.c.l.bf16 %v297
        %v306 = vunpack.c.l.bf16 %v298
        %v307 = vunpack.c.l.bf16 %v299
        %v308 = vunpack.c.l.bf16 %v300
        %v309 = vunpack.c.l.bf16 %v301
        %v310 = vunpack.c.l.bf16 %v302
        %v311 = vunpack.c.l.bf16 %v303
        %v313 = vlaneseq
        %v314 = vshrl.u32 %v313, 7
        %v315 = vsub.s32 0, %v314
        %v316 = vrot.slane %v294, %v315
        %v318 = vmul.f32 %v304, %v316
        %v319 = vmul.f32 %v305, %v316
        %v320 = vmul.f32 %v306, %v316
        %v321 = vmul.f32 %v307, %v316
        %v322 = vmul.f32 %v308, %v316
        %v323 = vmul.f32 %v309, %v316
        %v324 = vmul.f32 %v310, %v316
        %v325 = vmul.f32 %v311, %v316
        %v327 = vlaneseq
        %v328 = vshrl.u32 %v327, 7
        %v329 = vsub.s32 0, %v328
        %v330 = vrot.slane %v295, %v329
        %v332 = vadd.f32 %v318, %v330
        %v333 = vadd.f32 %v319, %v330
        %v334 = vadd.f32 %v320, %v330
        %v335 = vadd.f32 %v321, %v330
        %v336 = vadd.f32 %v322, %v330
        %v337 = vadd.f32 %v323, %v330
        %v338 = vadd.f32 %v324, %v330
        %v339 = vadd.f32 %v325, %v330
        %v340 = vmax.f32 %v332, 0.0
        %v341 = vmax.f32 %v333, 0.0
        %v342 = vmax.f32 %v334, 0.0
        %v343 = vmax.f32 %v335, 0.0
        %v344 = vmax.f32 %v336, 0.0
        %v345 = vmax.f32 %v337, 0.0
        %v346 = vmax.f32 %v338, 0.0
        %v347 = vmax.f32 %v339, 0.0
        %v348 = vpack.c.bf16 %v340, %v340
        %v349 = vpack.c.bf16 %v341, %v341
        %v350 = vpack.c.bf16 %v342, %v342
        %v351 = vpack.c.bf16 %v343, %v343
        %v352 = vpack.c.bf16 %v344, %v344
        %v353 = vpack.c.bf16 %v345, %v345
        %v354 = vpack.c.bf16 %v346, %v346
        %v355 = vpack.c.bf16 %v347, %v347
        %v364 = vunpack.c.l.b16 %v348
        %v365 = vunpack.c.l.b16 %v349
        %v366 = vunpack.c.l.b16 %v350
        %v367 = vunpack.c.l.b16 %v351
        %v368 = vunpack.c.l.b16 %v352
        %v369 = vunpack.c.l.b16 %v353
        %v370 = vunpack.c.l.b16 %v354
        %v371 = vunpack.c.l.b16 %v355
        %v372 = vpack.c.b16 %v364, %v364
        %v373 = vpack.c.b16 %v365, %v365
        %v374 = vpack.c.b16 %v366, %v366
        %v375 = vpack.c.b16 %v367, %v367
        %v376 = vpack.c.b16 %v368, %v368
        %v377 = vpack.c.b16 %v369, %v369
        %v378 = vpack.c.b16 %v370, %v370
        %v379 = vpack.c.b16 %v371, %v371
        %v381 = vshrl.u32 %v372, 16
        %v383 = vrot.slane %v381, 7
        %v384 = vshll.u32 %v372, 16
        %v386 = vor.u32 %v383, %v384
        %v387 = vrot.slane %v383, 4
        %v389 = vshrl.u32 %v373, 16
        %v391 = vrot.slane %v389, 7
        %v392 = vshll.u32 %v373, 16
        %v394 = vor.u32 %v391, %v392
        %v395 = vrot.slane %v391, 4
        %v397 = vshrl.u32 %v374, 16
        %v399 = vrot.slane %v397, 7
        %v400 = vshll.u32 %v374, 16
        %v402 = vor.u32 %v399, %v400
        %v403 = vrot.slane %v399, 4
        %v405 = vshrl.u32 %v375, 16
        %v407 = vrot.slane %v405, 7
        %v408 = vshll.u32 %v375, 16
        %v410 = vor.u32 %v407, %v408
        %v411 = vrot.slane %v407, 4
        %v413 = vshrl.u32 %v376, 16
        %v415 = vrot.slane %v413, 7
        %v416 = vshll.u32 %v376, 16
        %v418 = vor.u32 %v415, %v416
        %v419 = vrot.slane %v415, 4
        %v421 = vshrl.u32 %v377, 16
        %v423 = vrot.slane %v421, 7
        %v424 = vshll.u32 %v377, 16
        %v426 = vor.u32 %v423, %v424
        %v427 = vrot.slane %v423, 4
        %v429 = vshrl.u32 %v378, 16
        %v431 = vrot.slane %v429, 7
        %v432 = vshll.u32 %v378, 16
        %v434 = vor.u32 %v431, %v432
        %v435 = vrot.slane %v431, 4
        %v437 = vshrl.u32 %v379, 16
        %v439 = vrot.slane %v437, 7
        %v440 = vshll.u32 %v379, 16
        %v442 = vor.u32 %v439, %v440
        %v443 = vrot.slane %v439, 4
        %s460 = scalar_lea.vmem [#allocation2], 8
        %vm461 = vcmask 60416
        %vm462 = vsmask.f32 7938
        %vm463 = vmand %vm461, %vm462
        %v464 = vld [vmem:[%s460] sm:$0xf]
        %v465 = vsel %vm463, %v386, %v464
        %466 = vst [vmem:[%s460] sm:$0xf] %v465
        %vm467 = vcmask 57344
        %vm468 = vsmask.f32 256
        %vm469 = vmand %vm467, %vm468
        %v470 = vld [vmem:[%s460 + $0x4] sm:$0x1]
        %v471 = vsel %vm469, %v387, %v470
        %472 = vst [vmem:[%s460 + $0x4] sm:$0x1] %v471
        %v473 = vld [vmem:[%s460 + $0x8] sm:$0xf]
        %v474 = vsel %vm463, %v394, %v473
        %475 = vst [vmem:[%s460 + $0x8] sm:$0xf] %v474
        %v476 = vld [vmem:[%s460 + $0xc] sm:$0x1]
        %v477 = vsel %vm469, %v395, %v476
        %478 = vst [vmem:[%s460 + $0xc] sm:$0x1] %v477
        %v479 = vld [vmem:[%s460 + $0x10] sm:$0xf]
        %v480 = vsel %vm463, %v402, %v479
        %481 = vst [vmem:[%s460 + $0x10] sm:$0xf] %v480
        %v482 = vld [vmem:[%s460 + $0x14] sm:$0x1]
        %v483 = vsel %vm469, %v403, %v482
        %484 = vst [vmem:[%s460 + $0x14] sm:$0x1] %v483
        %v485 = vld [vmem:[%s460 + $0x18] sm:$0xf]
        %v486 = vsel %vm463, %v410, %v485
        %487 = vst [vmem:[%s460 + $0x18] sm:$0xf] %v486
        %v488 = vld [vmem:[%s460 + $0x1c] sm:$0x1]
        %v489 = vsel %vm469, %v411, %v488
        %490 = vst [vmem:[%s460 + $0x1c] sm:$0x1] %v489
        %v491 = vld [vmem:[%s460 + $0x20] sm:$0xf]
        %v492 = vsel %vm463, %v418, %v491
        %493 = vst [vmem:[%s460 + $0x20] sm:$0xf] %v492
        %v494 = vld [vmem:[%s460 + $0x24] sm:$0x1]
        %v495 = vsel %vm469, %v419, %v494
        %496 = vst [vmem:[%s460 + $0x24] sm:$0x1] %v495
        %v497 = vld [vmem:[%s460 + $0x28] sm:$0xf]
        %v498 = vsel %vm463, %v426, %v497
        %499 = vst [vmem:[%s460 + $0x28] sm:$0xf] %v498
        %v500 = vld [vmem:[%s460 + $0x2c] sm:$0x1]
        %v501 = vsel %vm469, %v427, %v500
        %502 = vst [vmem:[%s460 + $0x2c] sm:$0x1] %v501
        %v503 = vld [vmem:[%s460 + $0x30] sm:$0xf]
        %v504 = vsel %vm463, %v434, %v503
        %505 = vst [vmem:[%s460 + $0x30] sm:$0xf] %v504
        %v506 = vld [vmem:[%s460 + $0x34] sm:$0x1]
        %v507 = vsel %vm469, %v435, %v506
        %508 = vst [vmem:[%s460 + $0x34] sm:$0x1] %v507
        %v509 = vld [vmem:[%s460 + $0x38] sm:$0xf]
        %v510 = vsel %vm463, %v442, %v509
        %511 = vst [vmem:[%s460 + $0x38] sm:$0xf] %v510
        %v512 = vld [vmem:[%s460 + $0x3c] sm:$0x1]
        %v513 = vsel %vm469, %v443, %v512
        %514 = vst [vmem:[%s460 + $0x3c] sm:$0x1] %v513
      $region40: #{basic_block_forward.5} parent=35 // pred_fallthru
        _
      %s515 = smul.u32 %s22, 8
      %s516 = smul.u32 %s515, 2
      %s517 = smul.addr %s516, 4
      %s518 = scalar_lea.vmem [#allocation2], %s517
      %v519 = vld [vmem:[%s518] sm:$0xf]
      %v520 = vld [vmem:[%s518 + $0x8] sm:$0xf]
      %v521 = vld [vmem:[%s518 + $0x10] sm:$0xf]
      %v522 = vld [vmem:[%s518 + $0x18] sm:$0xf]
      %v523 = vld [vmem:[%s518 + $0x20] sm:$0xf]
      %v524 = vld [vmem:[%s518 + $0x28] sm:$0xf]
      %v525 = vld [vmem:[%s518 + $0x30] sm:$0xf]
      %v526 = vld [vmem:[%s518 + $0x38] sm:$0xf]
      %v527 = vld [vmem:[%s1] sm:$0xf]
      %v528 = vld [vmem:[%s518 + $0x4] sm:$0x1]
      %v529 = vld [vmem:[%s518 + $0xc] sm:$0x1]
      %v530 = vld [vmem:[%s518 + $0x14] sm:$0x1]
      %v531 = vld [vmem:[%s518 + $0x1c] sm:$0x1]
      %v532 = vld [vmem:[%s518 + $0x24] sm:$0x1]
      %v533 = vld [vmem:[%s518 + $0x2c] sm:$0x1]
      %v534 = vld [vmem:[%s518 + $0x34] sm:$0x1]
      %v535 = vld [vmem:[%s518 + $0x3c] sm:$0x1]
      %vm536 = vsmask.f32 3328
      %vm537 = vsmask.f32 7440
      %vm538 = vmor %vm536, %vm537
      %v540 = vshrl.u32 %v519, 16
      %v542 = vrot.slane %v540, 4
      %v543 = vshll.u32 %v519, 16
      %v545 = vrot.slane %v543, 5
      %v546 = vor.u32 %v542, %v545
      %v547 = vrot.slane %v546, 4
      %v549 = vshll.u32 %v528, 16
      %v551 = vrot.slane %v549, 5
      %v552 = vsel %vm538, %v547, %v551
      %v554 = vshrl.u32 %v520, 16
      %v556 = vrot.slane %v554, 4
      %v557 = vshll.u32 %v520, 16
      %v559 = vrot.slane %v557, 5
      %v560 = vor.u32 %v556, %v559
      %v561 = vrot.slane %v560, 4
      %v563 = vshll.u32 %v529, 16
      %v565 = vrot.slane %v563, 5
      %v566 = vsel %vm538, %v561, %v565
      %v568 = vshrl.u32 %v521, 16
      %v570 = vrot.slane %v568, 4
      %v571 = vshll.u32 %v521, 16
      %v573 = vrot.slane %v571, 5
      %v574 = vor.u32 %v570, %v573
      %v575 = vrot.slane %v574, 4
      %v577 = vshll.u32 %v530, 16
      %v579 = vrot.slane %v577, 5
      %v580 = vsel %vm538, %v575, %v579
      %v582 = vshrl.u32 %v522, 16
      %v584 = vrot.slane %v582, 4
      %v585 = vshll.u32 %v522, 16
      %v587 = vrot.slane %v585, 5
      %v588 = vor.u32 %v584, %v587
      %v589 = vrot.slane %v588, 4
      %v591 = vshll.u32 %v531, 16
      %v593 = vrot.slane %v591, 5
      %v594 = vsel %vm538, %v589, %v593
      %v596 = vshrl.u32 %v523, 16
      %v598 = vrot.slane %v596, 4
      %v599 = vshll.u32 %v523, 16
      %v601 = vrot.slane %v599, 5
      %v602 = vor.u32 %v598, %v601
      %v603 = vrot.slane %v602, 4
      %v605 = vshll.u32 %v532, 16
      %v607 = vrot.slane %v605, 5
      %v608 = vsel %vm538, %v603, %v607
      %v610 = vshrl.u32 %v524, 16
      %v612 = vrot.slane %v610, 4
      %v613 = vshll.u32 %v524, 16
      %v615 = vrot.slane %v613, 5
      %v616 = vor.u32 %v612, %v615
      %v617 = vrot.slane %v616, 4
      %v619 = vshll.u32 %v533, 16
      %v621 = vrot.slane %v619, 5
      %v622 = vsel %vm538, %v617, %v621
      %v624 = vshrl.u32 %v525, 16
      %v626 = vrot.slane %v624, 4
      %v627 = vshll.u32 %v525, 16
      %v629 = vrot.slane %v627, 5
      %v630 = vor.u32 %v626, %v629
      %v631 = vrot.slane %v630, 4
      %v633 = vshll.u32 %v534, 16
      %v635 = vrot.slane %v633, 5
      %v636 = vsel %vm538, %v631, %v635
      %v638 = vshrl.u32 %v526, 16
      %v640 = vrot.slane %v638, 4
      %v641 = vshll.u32 %v526, 16
      %v643 = vrot.slane %v641, 5
      %v644 = vor.u32 %v640, %v643
      %v645 = vrot.slane %v644, 4
      %v647 = vshll.u32 %v535, 16
      %v649 = vrot.slane %v647, 5
      %v650 = vsel %vm538, %v645, %v649
      %s651 = scalar_lea.vmem %s1, 4
      %v652 = vld [vmem:[%s651] sm:$0xf]
      %v653 = vunpack.c.l.b16 %v552
      %v654 = vunpack.c.l.b16 %v566
      %v655 = vunpack.c.l.b16 %v580
      %v656 = vunpack.c.l.b16 %v594
      %v657 = vunpack.c.l.b16 %v608
      %v658 = vunpack.c.l.b16 %v622
      %v659 = vunpack.c.l.b16 %v636
      %v660 = vunpack.c.l.b16 %v650
      %v661 = vpack.c.b16 %v654, %v653
      %v662 = vpack.c.b16 %v656, %v655
      %v663 = vpack.c.b16 %v658, %v657
      %v664 = vpack.c.b16 %v660, %v659
      %vm665 = vcmask 64512
      %v667 = vsel %vm665, %v661, 0
      %v670 = vsel %vm665, %v662, 0
      %v673 = vsel %vm665, %v663, 0
      %v676 = vsel %vm665, %v664, 0
      %vm678 = vcmask 1043456
      %v680 = vsel %vm678, %v652, 0
      %682 = vmatprep.subr.bf16.mxu0 0
      %683 = vmatpush1.bf16.msra.mxu0 %v680
      %684 = vmatprep.subr.bf16.mxu0 0
      %685 = vmatpush1.bf16.msra.mxu0 0
      %686 = vmatprep.subr.bf16.mxu0 0
      %687 = vmatpush1.bf16.msra.mxu0 0
      %688 = vmatprep.subr.bf16.mxu0 0
      %689 = vmatpush1.bf16.msra.mxu0 0
      %690 = vmatprep.subr.bf16.mxu0 0
      %691 = vmatpush1.bf16.msra.mxu0 0
      %692 = vmatprep.subr.bf16.mxu0 0
      %693 = vmatpush1.bf16.msra.mxu0 0
      %694 = vmatprep.subr.bf16.mxu0 0
      %695 = vmatpush1.bf16.msra.mxu0 0
      %696 = vmatprep.subr.bf16.mxu0 0
      %697 = vmatpush1.bf16.msra.mxu0 0
      %698 = vmatprep.subr.bf16.mxu0 0
      %699 = vmatpush1.bf16.msra.mxu0 0
      %700 = vmatprep.subr.bf16.mxu0 0
      %701 = vmatpush1.bf16.msra.mxu0 0
      %702 = vmatprep.subr.bf16.mxu0 0
      %703 = vmatpush1.bf16.msra.mxu0 0
      %704 = vmatprep.subr.bf16.mxu0 0
      %705 = vmatpush1.bf16.msra.mxu0 0
      %706 = vmatprep.subr.bf16.mxu0 0
      %707 = vmatpush1.bf16.msra.mxu0 0
      %708 = vmatprep.subr.bf16.mxu0 0
      %709 = vmatpush1.bf16.msra.mxu0 0
      %710 = vmatprep.subr.bf16.mxu0 0
      %711 = vmatpush1.bf16.msra.mxu0 0
      %712 = vmatprep.subr.bf16.mxu0 0
      %713 = vmatpush1.bf16.msra.mxu0 0
      %714 = vmatprep.mubr.bf16.mxu0 0
      %715 = vmatmul.mubr.bf16.gmra.mrb[0].mxu0 %v667
      %v716 = vpop.f32.mrb[0].mxu0
      %v717 = vadd.f32 0.0, %v716
      %v718 = vpop.f32.mrb[0].mxu0
      %v719 = vpop.f32.mrb[0].mxu0
      %v720 = vadd.f32 0.0, %v719
      %v721 = vpop.f32.mrb[0].mxu0
      %722 = vmatprep.mubr.bf16.mxu0 0
      %723 = vmatmul.mubr.bf16.gmra.mrb[0].mxu0 %v670
      %v724 = vpop.f32.mrb[0].mxu0
      %v725 = vadd.f32 0.0, %v724
      %v726 = vpop.f32.mrb[0].mxu0
      %v727 = vpop.f32.mrb[0].mxu0
      %v728 = vadd.f32 0.0, %v727
      %v729 = vpop.f32.mrb[0].mxu0
      %730 = vmatprep.mubr.bf16.mxu0 0
      %731 = vmatmul.mubr.bf16.gmra.mrb[0].mxu0 %v673
      %v732 = vpop.f32.mrb[0].mxu0
      %v733 = vadd.f32 0.0, %v732
      %v734 = vpop.f32.mrb[0].mxu0
      %v735 = vpop.f32.mrb[0].mxu0
      %v736 = vadd.f32 0.0, %v735
      %v737 = vpop.f32.mrb[0].mxu0
      %738 = vmatprep.mubr.bf16.mxu0 0
      %739 = vmatmul.mubr.bf16.gmra.mrb[0].mxu0 %v676
      %v740 = vpop.f32.mrb[0].mxu0
      %v741 = vadd.f32 0.0, %v740
      %v742 = vpop.f32.mrb[0].mxu0
      %v743 = vpop.f32.mrb[0].mxu0
      %v744 = vadd.f32 0.0, %v743
      %v745 = vpop.f32.mrb[0].mxu0
      %746 = vdwg.mxu0
      %v755 = vunpack.c.l.b16 %v519
      %v756 = vunpack.c.l.b16 %v520
      %v757 = vunpack.c.l.b16 %v521
      %v758 = vunpack.c.l.b16 %v522
      %v759 = vunpack.c.l.b16 %v523
      %v760 = vunpack.c.l.b16 %v524
      %v761 = vunpack.c.l.b16 %v525
      %v762 = vunpack.c.l.b16 %v526
      %v763 = vpack.c.b16 %v756, %v755
      %v764 = vpack.c.b16 %v758, %v757
      %v765 = vpack.c.b16 %v760, %v759
      %v766 = vpack.c.b16 %v762, %v761
      %v768 = vsel %vm665, %v763, 0
      %v771 = vsel %vm665, %v764, 0
      %v774 = vsel %vm665, %v765, 0
      %v777 = vsel %vm665, %v766, 0
      %v780 = vsel %vm678, %v527, 0
      %782 = vmatprep.subr.bf16.mxu0 0
      %783 = vmatpush1.bf16.msra.mxu0 %v780
      %784 = vmatprep.subr.bf16.mxu0 0
      %785 = vmatpush1.bf16.msra.mxu0 0
      %786 = vmatprep.subr.bf16.mxu0 0
      %787 = vmatpush1.bf16.msra.mxu0 0
      %788 = vmatprep.subr.bf16.mxu0 0
      %789 = vmatpush1.bf16.msra.mxu0 0
      %790 = vmatprep.subr.bf16.mxu0 0
      %791 = vmatpush1.bf16.msra.mxu0 0
      %792 = vmatprep.subr.bf16.mxu0 0
      %793 = vmatpush1.bf16.msra.mxu0 0
      %794 = vmatprep.subr.bf16.mxu0 0
      %795 = vmatpush1.bf16.msra.mxu0 0
      %796 = vmatprep.subr.bf16.mxu0 0
      %797 = vmatpush1.bf16.msra.mxu0 0
      %798 = vmatprep.subr.bf16.mxu0 0
      %799 = vmatpush1.bf16.msra.mxu0 0
      %800 = vmatprep.subr.bf16.mxu0 0
      %801 = vmatpush1.bf16.msra.mxu0 0
      %802 = vmatprep.subr.bf16.mxu0 0
      %803 = vmatpush1.bf16.msra.mxu0 0
      %804 = vmatprep.subr.bf16.mxu0 0
      %805 = vmatpush1.bf16.msra.mxu0 0
      %806 = vmatprep.subr.bf16.mxu0 0
      %807 = vmatpush1.bf16.msra.mxu0 0
      %808 = vmatprep.subr.bf16.mxu0 0
      %809 = vmatpush1.bf16.msra.mxu0 0
      %810 = vmatprep.subr.bf16.mxu0 0
      %811 = vmatpush1.bf16.msra.mxu0 0
      %812 = vmatprep.subr.bf16.mxu0 0
      %813 = vmatpush1.bf16.msra.mxu0 0
      %814 = vmatprep.mubr.bf16.mxu0 0
      %815 = vmatmul.mubr.bf16.gmra.mrb[0].mxu0 %v768
      %v816 = vpop.f32.mrb[0].mxu0
      %v817 = vadd.f32 %v717, %v816
      %v818 = vpop.f32.mrb[0].mxu0
      %v819 = vpop.f32.mrb[0].mxu0
      %v820 = vadd.f32 %v720, %v819
      %v821 = vpop.f32.mrb[0].mxu0
      %822 = vmatprep.mubr.bf16.mxu0 0
      %823 = vmatmul.mubr.bf16.gmra.mrb[0].mxu0 %v771
      %v824 = vpop.f32.mrb[0].mxu0
      %v825 = vadd.f32 %v725, %v824
      %v826 = vpop.f32.mrb[0].mxu0
      %v827 = vpop.f32.mrb[0].mxu0
      %v828 = vadd.f32 %v728, %v827
      %v829 = vpop.f32.mrb[0].mxu0
      %830 = vmatprep.mubr.bf16.mxu0 0
      %831 = vmatmul.mubr.bf16.gmra.mrb[0].mxu0 %v774
      %v832 = vpop.f32.mrb[0].mxu0
      %v833 = vadd.f32 %v733, %v832
      %v834 = vpop.f32.mrb[0].mxu0
      %v835 = vpop.f32.mrb[0].mxu0
      %v836 = vadd.f32 %v736, %v835
      %v837 = vpop.f32.mrb[0].mxu0
      %838 = vmatprep.mubr.bf16.mxu0 0
      %839 = vmatmul.mubr.bf16.gmra.mrb[0].mxu0 %v777
      %v840 = vpop.f32.mrb[0].mxu0
      %v841 = vadd.f32 %v741, %v840
      %v842 = vpop.f32.mrb[0].mxu0
      %v843 = vpop.f32.mrb[0].mxu0
      %v844 = vadd.f32 %v744, %v843
      %v845 = vpop.f32.mrb[0].mxu0
      %846 = vdwg.mxu0
      %v847 = vld [vmem:[%s518] sm:$0xe]
      %v848 = vld [vmem:[%s518 + $0x8] sm:$0xe]
      %v849 = vld [vmem:[%s518 + $0x10] sm:$0xe]
      %v850 = vld [vmem:[%s518 + $0x18] sm:$0xe]
      %v851 = vld [vmem:[%s518 + $0x20] sm:$0xe]
      %v852 = vld [vmem:[%s518 + $0x28] sm:$0xe]
      %v853 = vld [vmem:[%s518 + $0x30] sm:$0xe]
      %v854 = vld [vmem:[%s518 + $0x38] sm:$0xe]
      %vm871 = vcmask 1042432
      %vm872 = vcmask 1046532
      %vm873 = vmor %vm871, %vm872
      %v874 = vrot.slane %v847, 5
      %v875 = vrot.slane %v874, 4
      %v876 = vrot.slane %v528, 5
      %v877 = vsel %vm873, %v875, %v876
      %v878 = vrot.slane %v848, 5
      %v879 = vrot.slane %v878, 4
      %v880 = vrot.slane %v529, 5
      %v881 = vsel %vm873, %v879, %v880
      %v882 = vrot.slane %v849, 5
      %v883 = vrot.slane %v882, 4
      %v884 = vrot.slane %v530, 5
      %v885 = vsel %vm873, %v883, %v884
      %v886 = vrot.slane %v850, 5
      %v887 = vrot.slane %v886, 4
      %v888 = vrot.slane %v531, 5
      %v889 = vsel %vm873, %v887, %v888
      %v890 = vrot.slane %v851, 5
      %v891 = vrot.slane %v890, 4
      %v892 = vrot.slane %v532, 5
      %v893 = vsel %vm873, %v891, %v892
      %v894 = vrot.slane %v852, 5
      %v895 = vrot.slane %v894, 4
      %v896 = vrot.slane %v533, 5
      %v897 = vsel %vm873, %v895, %v896
      %v898 = vrot.slane %v853, 5
      %v899 = vrot.slane %v898, 4
      %v900 = vrot.slane %v534, 5
      %v901 = vsel %vm873, %v899, %v900
      %v902 = vrot.slane %v854, 5
      %v903 = vrot.slane %v902, 4
      %v904 = vrot.slane %v535, 5
      %v905 = vsel %vm873, %v903, %v904
      %s906 = scalar_lea.vmem %s1, 8
      %v907 = vld [vmem:[%s906] sm:$0xf]
      %v908 = vunpack.c.l.b16 %v877
      %v909 = vunpack.c.l.b16 %v881
      %v910 = vunpack.c.l.b16 %v885
      %v911 = vunpack.c.l.b16 %v889
      %v912 = vunpack.c.l.b16 %v893
      %v913 = vunpack.c.l.b16 %v897
      %v914 = vunpack.c.l.b16 %v901
      %v915 = vunpack.c.l.b16 %v905
      %v916 = vpack.c.b16 %v909, %v908
      %v917 = vpack.c.b16 %v911, %v910
      %v918 = vpack.c.b16 %v913, %v912
      %v919 = vpack.c.b16 %v915, %v914
      %v921 = vsel %vm665, %v916, 0
      %v924 = vsel %vm665, %v917, 0
      %v927 = vsel %vm665, %v918, 0
      %v930 = vsel %vm665, %v919, 0
      %v933 = vsel %vm678, %v907, 0
      %935 = vmatprep.subr.bf16.mxu0 0
      %936 = vmatpush1.bf16.msra.mxu0 %v933
      %937 = vmatprep.subr.bf16.mxu0 0
      %938 = vmatpush1.bf16.msra.mxu0 0
      %939 = vmatprep.subr.bf16.mxu0 0
      %940 = vmatpush1.bf16.msra.mxu0 0
      %941 = vmatprep.subr.bf16.mxu0 0
      %942 = vmatpush1.bf16.msra.mxu0 0
      %943 = vmatprep.subr.bf16.mxu0 0
      %944 = vmatpush1.bf16.msra.mxu0 0
      %945 = vmatprep.subr.bf16.mxu0 0
      %946 = vmatpush1.bf16.msra.mxu0 0
      %947 = vmatprep.subr.bf16.mxu0 0
      %948 = vmatpush1.bf16.msra.mxu0 0
      %949 = vmatprep.subr.bf16.mxu0 0
      %950 = vmatpush1.bf16.msra.mxu0 0
      %951 = vmatprep.subr.bf16.mxu0 0
      %952 = vmatpush1.bf16.msra.mxu0 0
      %953 = vmatprep.subr.bf16.mxu0 0
      %954 = vmatpush1.bf16.msra.mxu0 0
      %955 = vmatprep.subr.bf16.mxu0 0
      %956 = vmatpush1.bf16.msra.mxu0 0
      %957 = vmatprep.subr.bf16.mxu0 0
      %958 = vmatpush1.bf16.msra.mxu0 0
      %959 = vmatprep.subr.bf16.mxu0 0
      %960 = vmatpush1.bf16.msra.mxu0 0
      %961 = vmatprep.subr.bf16.mxu0 0
      %962 = vmatpush1.bf16.msra.mxu0 0
      %963 = vmatprep.subr.bf16.mxu0 0
      %964 = vmatpush1.bf16.msra.mxu0 0
      %965 = vmatprep.subr.bf16.mxu0 0
      %966 = vmatpush1.bf16.msra.mxu0 0
      %967 = vmatprep.mubr.bf16.mxu0 0
      %968 = vmatmul.mubr.bf16.gmra.mrb[0].mxu0 %v921
      %v969 = vpop.f32.mrb[0].mxu0
      %v970 = vadd.f32 0.0, %v969
      %v971 = vpop.f32.mrb[0].mxu0
      %v972 = vpop.f32.mrb[0].mxu0
      %v973 = vadd.f32 0.0, %v972
      %v974 = vpop.f32.mrb[0].mxu0
      %975 = vmatprep.mubr.bf16.mxu0 0
      %976 = vmatmul.mubr.bf16.gmra.mrb[0].mxu0 %v924
      %v977 = vpop.f32.mrb[0].mxu0
      %v978 = vadd.f32 0.0, %v977
      %v979 = vpop.f32.mrb[0].mxu0
      %v980 = vpop.f32.mrb[0].mxu0
      %v981 = vadd.f32 0.0, %v980
      %v982 = vpop.f32.mrb[0].mxu0
      %983 = vmatprep.mubr.bf16.mxu0 0
      %984 = vmatmul.mubr.bf16.gmra.mrb[0].mxu0 %v927
      %v985 = vpop.f32.mrb[0].mxu0
      %v986 = vadd.f32 0.0, %v985
      %v987 = vpop.f32.mrb[0].mxu0
      %v988 = vpop.f32.mrb[0].mxu0
      %v989 = vadd.f32 0.0, %v988
      %v990 = vpop.f32.mrb[0].mxu0
      %991 = vmatprep.mubr.bf16.mxu0 0
      %992 = vmatmul.mubr.bf16.gmra.mrb[0].mxu0 %v930
      %v993 = vpop.f32.mrb[0].mxu0
      %v994 = vadd.f32 0.0, %v993
      %v995 = vpop.f32.mrb[0].mxu0
      %v996 = vpop.f32.mrb[0].mxu0
      %v997 = vadd.f32 0.0, %v996
      %v998 = vpop.f32.mrb[0].mxu0
      %999 = vdwg.mxu0
      %v1000 = vadd.f32 %v817, %v970
      %v1001 = vadd.f32 %v820, %v973
      %v1002 = vadd.f32 %v825, %v978
      %v1003 = vadd.f32 %v828, %v981
      %v1004 = vadd.f32 %v833, %v986
      %v1005 = vadd.f32 %v836, %v989
      %v1006 = vadd.f32 %v841, %v994
      %v1007 = vadd.f32 %v844, %v997
      %1008 = vst.msk [vmem:[#allocation3] sm:$0xff] %vm665, %v1000
      %1009 = vst.msk [vmem:[#allocation3 + $0x8] sm:$0xff] %vm665, %v1001
      %1010 = vst.msk [vmem:[#allocation3 + $0x10] sm:$0xff] %vm665, %v1002
      %1011 = vst.msk [vmem:[#allocation3 + $0x18] sm:$0xff] %vm665, %v1003
      %1012 = vst.msk [vmem:[#allocation3 + $0x20] sm:$0xff] %vm665, %v1004
      %1013 = vst.msk [vmem:[#allocation3 + $0x28] sm:$0xff] %vm665, %v1005
      %1014 = vst.msk [vmem:[#allocation3 + $0x30] sm:$0xff] %vm665, %v1006
      %1015 = vst.msk [vmem:[#allocation3 + $0x38] sm:$0xff] %vm665, %v1007
      %s1016 = sadd.s32 %s515, 1
      %s1017 = smul.u32 %s1016, 2
      %s1018 = smul.addr %s1017, 4
      %s1019 = scalar_lea.vmem [#allocation2], %s1018
      %v1020 = vld [vmem:[%s1019] sm:$0xf]
      %v1021 = vld [vmem:[%s1019 + $0x8] sm:$0xf]
      %v1022 = vld [vmem:[%s1019 + $0x10] sm:$0xf]
      %v1023 = vld [vmem:[%s1019 + $0x18] sm:$0xf]
      %v1024 = vld [vmem:[%s1019 + $0x20] sm:$0xf]
      %v1025 = vld [vmem:[%s1019 + $0x28] sm:$0xf]
      %v1026 = vld [vmem:[%s1019 + $0x30] sm:$0xf]
      %v1027 = vld [vmem:[%s1019 + $0x38] sm:$0xf]
      %s1028 = scalar_lea.vmem %s1, 12
      %v1029 = vld [vmem:[%s1028] sm:$0xf]
      %v1030 = vld [vmem:[%s1019 + $0x4] sm:$0x1]
      %v1031 = vld [vmem:[%s1019 + $0xc] sm:$0x1]
      %v1032 = vld [vmem:[%s1019 + $0x14] sm:$0x1]
      %v1033 = vld [vmem:[%s1019 + $0x1c] sm:$0x1]
      %v1034 = vld [vmem:[%s1019 + $0x24] sm:$0x1]
      %v1035 = vld [vmem:[%s1019 + $0x2c] sm:$0x1]
      %v1036 = vld [vmem:[%s1019 + $0x34] sm:$0x1]
      %v1037 = vld [vmem:[%s1019 + $0x3c] sm:$0x1]
      %v1039 = vshrl.u32 %v1020, 16
      %v1041 = vrot.slane %v1039, 4
      %v1042 = vshll.u32 %v1020, 16
      %v1044 = vrot.slane %v1042, 5
      %v1045 = vor.u32 %v1041, %v1044
      %v1046 = vrot.slane %v1045, 4
      %v1048 = vshll.u32 %v1030, 16
      %v1050 = vrot.slane %v1048, 5
      %v1051 = vsel %vm538, %v1046, %v1050
      %v1053 = vshrl.u32 %v1021, 16
      %v1055 = vrot.slane %v1053, 4
      %v1056 = vshll.u32 %v1021, 16
      %v1058 = vrot.slane %v1056, 5
      %v1059 = vor.u32 %v1055, %v1058
      %v1060 = vrot.slane %v1059, 4
      %v1062 = vshll.u32 %v1031, 16
      %v1064 = vrot.slane %v1062, 5
      %v1065 = vsel %vm538, %v1060, %v1064
      %v1067 = vshrl.u32 %v1022, 16
      %v1069 = vrot.slane %v1067, 4
      %v1070 = vshll.u32 %v1022, 16
      %v1072 = vrot.slane %v1070, 5
      %v1073 = vor.u32 %v1069, %v1072
      %v1074 = vrot.slane %v1073, 4
      %v1076 = vshll.u32 %v1032, 16
      %v1078 = vrot.slane %v1076, 5
      %v1079 = vsel %vm538, %v1074, %v1078
      %v1081 = vshrl.u32 %v1023, 16
      %v1083 = vrot.slane %v1081, 4
      %v1084 = vshll.u32 %v1023, 16
      %v1086 = vrot.slane %v1084, 5
      %v1087 = vor.u32 %v1083, %v1086
      %v1088 = vrot.slane %v1087, 4
      %v1090 = vshll.u32 %v1033, 16
      %v1092 = vrot.slane %v1090, 5
      %v1093 = vsel %vm538, %v1088, %v1092
      %v1095 = vshrl.u32 %v1024, 16
      %v1097 = vrot.slane %v1095, 4
      %v1098 = vshll.u32 %v1024, 16
      %v1100 = vrot.slane %v1098, 5
      %v1101 = vor.u32 %v1097, %v1100
      %v1102 = vrot.slane %v1101, 4
      %v1104 = vshll.u32 %v1034, 16
      %v1106 = vrot.slane %v1104, 5
      %v1107 = vsel %vm538, %v1102, %v1106
      %v1109 = vshrl.u32 %v1025, 16
      %v1111 = vrot.slane %v1109, 4
      %v1112 = vshll.u32 %v1025, 16
      %v1114 = vrot.slane %v1112, 5
      %v1115 = vor.u32 %v1111, %v1114
      %v1116 = vrot.slane %v1115, 4
      %v1118 = vshll.u32 %v1035, 16
      %v1120 = vrot.slane %v1118, 5
      %v1121 = vsel %vm538, %v1116, %v1120
      %v1123 = vshrl.u32 %v1026, 16
      %v1125 = vrot.slane %v1123, 4
      %v1126 = vshll.u32 %v1026, 16
      %v1128 = vrot.slane %v1126, 5
      %v1129 = vor.u32 %v1125, %v1128
      %v1130 = vrot.slane %v1129, 4
      %v1132 = vshll.u32 %v1036, 16
      %v1134 = vrot.slane %v1132, 5
      %v1135 = vsel %vm538, %v1130, %v1134
      %v1137 = vshrl.u32 %v1027, 16
      %v1139 = vrot.slane %v1137, 4
      %v1140 = vshll.u32 %v1027, 16
      %v1142 = vrot.slane %v1140, 5
      %v1143 = vor.u32 %v1139, %v1142
      %v1144 = vrot.slane %v1143, 4
      %v1146 = vshll.u32 %v1037, 16
      %v1148 = vrot.slane %v1146, 5
      %v1149 = vsel %vm538, %v1144, %v1148
      %s1150 = scalar_lea.vmem %s1, 16
      %v1151 = vld [vmem:[%s1150] sm:$0xf]
      %v1152 = vunpack.c.l.b16 %v1051
      %v1153 = vunpack.c.l.b16 %v1065
      %v1154 = vunpack.c.l.b16 %v1079
      %v1155 = vunpack.c.l.b16 %v1093
      %v1156 = vunpack.c.l.b16 %v1107
      %v1157 = vunpack.c.l.b16 %v1121
      %v1158 = vunpack.c.l.b16 %v1135
      %v1159 = vunpack.c.l.b16 %v1149
      %v1160 = vpack.c.b16 %v1153, %v1152
      %v1161 = vpack.c.b16 %v1155, %v1154
      %v1162 = vpack.c.b16 %v1157, %v1156
      %v1163 = vpack.c.b16 %v1159, %v1158
      %v1165 = vsel %vm665, %v1160, 0
      %v1168 = vsel %vm665, %v1161, 0
      %v1171 = vsel %vm665, %v1162, 0
      %v1174 = vsel %vm665, %v1163, 0
      %v1177 = vsel %vm678, %v1151, 0
      %1179 = vmatprep.subr.bf16.mxu0 0
      %1180 = vmatpush1.bf16.msra.mxu0 %v1177
      %1181 = vmatprep.subr.bf16.mxu0 0
      %1182 = vmatpush1.bf16.msra.mxu0 0
      %1183 = vmatprep.subr.bf16.mxu0 0
      %1184 = vmatpush1.bf16.msra.mxu0 0
      %1185 = vmatprep.subr.bf16.mxu0 0
      %1186 = vmatpush1.bf16.msra.mxu0 0
      %1187 = vmatprep.subr.bf16.mxu0 0
      %1188 = vmatpush1.bf16.msra.mxu0 0
      %1189 = vmatprep.subr.bf16.mxu0 0
      %1190 = vmatpush1.bf16.msra.mxu0 0
      %1191 = vmatprep.subr.bf16.mxu0 0
      %1192 = vmatpush1.bf16.msra.mxu0 0
      %1193 = vmatprep.subr.bf16.mxu0 0
      %1194 = vmatpush1.bf16.msra.mxu0 0
      %1195 = vmatprep.subr.bf16.mxu0 0
      %1196 = vmatpush1.bf16.msra.mxu0 0
      %1197 = vmatprep.subr.bf16.mxu0 0
      %1198 = vmatpush1.bf16.msra.mxu0 0
      %1199 = vmatprep.subr.bf16.mxu0 0
      %1200 = vmatpush1.bf16.msra.mxu0 0
      %1201 = vmatprep.subr.bf16.mxu0 0
      %1202 = vmatpush1.bf16.msra.mxu0 0
      %1203 = vmatprep.subr.bf16.mxu0 0
      %1204 = vmatpush1.bf16.msra.mxu0 0
      %1205 = vmatprep.subr.bf16.mxu0 0
      %1206 = vmatpush1.bf16.msra.mxu0 0
      %1207 = vmatprep.subr.bf16.mxu0 0
      %1208 = vmatpush1.bf16.msra.mxu0 0
      %1209 = vmatprep.subr.bf16.mxu0 0
      %1210 = vmatpush1.bf16.msra.mxu0 0
      %1211 = vmatprep.mubr.bf16.mxu0 0
      %1212 = vmatmul.mubr.bf16.gmra.mrb[0].mxu0 %v1165
      %v1213 = vpop.f32.mrb[0].mxu0
      %v1214 = vadd.f32 0.0, %v1213
      %v1215 = vpop.f32.mrb[0].mxu0
      %v1216 = vpop.f32.mrb[0].mxu0
      %v1217 = vadd.f32 0.0, %v1216
      %v1218 = vpop.f32.mrb[0].mxu0
      %1219 = vmatprep.mubr.bf16.mxu0 0
      %1220 = vmatmul.mubr.bf16.gmra.mrb[0].mxu0 %v1168
      %v1221 = vpop.f32.mrb[0].mxu0
      %v1222 = vadd.f32 0.0, %v1221
      %v1223 = vpop.f32.mrb[0].mxu0
      %v1224 = vpop.f32.mrb[0].mxu0
      %v1225 = vadd.f32 0.0, %v1224
      %v1226 = vpop.f32.mrb[0].mxu0
      %1227 = vmatprep.mubr.bf16.mxu0 0
      %1228 = vmatmul.mubr.bf16.gmra.mrb[0].mxu0 %v1171
      %v1229 = vpop.f32.mrb[0].mxu0
      %v1230 = vadd.f32 0.0, %v1229
      %v1231 = vpop.f32.mrb[0].mxu0
      %v1232 = vpop.f32.mrb[0].mxu0
      %v1233 = vadd.f32 0.0, %v1232
      %v1234 = vpop.f32.mrb[0].mxu0
      %1235 = vmatprep.mubr.bf16.mxu0 0
      %1236 = vmatmul.mubr.bf16.gmra.mrb[0].mxu0 %v1174
      %v1237 = vpop.f32.mrb[0].mxu0
      %v1238 = vadd.f32 0.0, %v1237
      %v1239 = vpop.f32.mrb[0].mxu0
      %v1240 = vpop.f32.mrb[0].mxu0
      %v1241 = vadd.f32 0.0, %v1240
      %v1242 = vpop.f32.mrb[0].mxu0
      %1243 = vdwg.mxu0
      %v1252 = vunpack.c.l.b16 %v1020
      %v1253 = vunpack.c.l.b16 %v1021
      %v1254 = vunpack.c.l.b16 %v1022
      %v1255 = vunpack.c.l.b16 %v1023
      %v1256 = vunpack.c.l.b16 %v1024
      %v1257 = vunpack.c.l.b16 %v1025
      %v1258 = vunpack.c.l.b16 %v1026
      %v1259 = vunpack.c.l.b16 %v1027
      %v1260 = vpack.c.b16 %v1253, %v1252
      %v1261 = vpack.c.b16 %v1255, %v1254
      %v1262 = vpack.c.b16 %v1257, %v1256
      %v1263 = vpack.c.b16 %v1259, %v1258
      %v1265 = vsel %vm665, %v1260, 0
      %v1268 = vsel %vm665, %v1261, 0
      %v1271 = vsel %vm665, %v1262, 0
      %v1274 = vsel %vm665, %v1263, 0
      %v1277 = vsel %vm678, %v1029, 0
      %1279 = vmatprep.subr.bf16.mxu0 0
      %1280 = vmatpush1.bf16.msra.mxu0 %v1277
      %1281 = vmatprep.subr.bf16.mxu0 0
      %1282 = vmatpush1.bf16.msra.mxu0 0
      %1283 = vmatprep.subr.bf16.mxu0 0
      %1284 = vmatpush1.bf16.msra.mxu0 0
      %1285 = vmatprep.subr.bf16.mxu0 0
      %1286 = vmatpush1.bf16.msra.mxu0 0
      %1287 = vmatprep.subr.bf16.mxu0 0
      %1288 = vmatpush1.bf16.msra.mxu0 0
      %1289 = vmatprep.subr.bf16.mxu0 0
      %1290 = vmatpush1.bf16.msra.mxu0 0
      %1291 = vmatprep.subr.bf16.mxu0 0
      %1292 = vmatpush1.bf16.msra.mxu0 0
      %1293 = vmatprep.subr.bf16.mxu0 0
      %1294 = vmatpush1.bf16.msra.mxu0 0
      %1295 = vmatprep.subr.bf16.mxu0 0
      %1296 = vmatpush1.bf16.msra.mxu0 0
      %1297 = vmatprep.subr.bf16.mxu0 0
      %1298 = vmatpush1.bf16.msra.mxu0 0
      %1299 = vmatprep.subr.bf16.mxu0 0
      %1300 = vmatpush1.bf16.msra.mxu0 0
      %1301 = vmatprep.subr.bf16.mxu0 0
      %1302 = vmatpush1.bf16.msra.mxu0 0
      %1303 = vmatprep.subr.bf16.mxu0 0
      %1304 = vmatpush1.bf16.msra.mxu0 0
      %1305 = vmatprep.subr.bf16.mxu0 0
      %1306 = vmatpush1.bf16.msra.mxu0 0
      %1307 = vmatprep.subr.bf16.mxu0 0
      %1308 = vmatpush1.bf16.msra.mxu0 0
      %1309 = vmatprep.subr.bf16.mxu0 0
      %1310 = vmatpush1.bf16.msra.mxu0 0
      %1311 = vmatprep.mubr.bf16.mxu0 0
      %1312 = vmatmul.mubr.bf16.gmra.mrb[0].mxu0 %v1265
      %v1313 = vpop.f32.mrb[0].mxu0
      %v1314 = vadd.f32 %v1214, %v1313
      %v1315 = vpop.f32.mrb[0].mxu0
      %v1316 = vpop.f32.mrb[0].mxu0
      %v1317 = vadd.f32 %v1217, %v1316
      %v1318 = vpop.f32.mrb[0].mxu0
      %1319 = vmatprep.mubr.bf16.mxu0 0
      %1320 = vmatmul.mubr.bf16.gmra.mrb[0].mxu0 %v1268
      %v1321 = vpop.f32.mrb[0].mxu0
      %v1322 = vadd.f32 %v1222, %v1321
      %v1323 = vpop.f32.mrb[0].mxu0
      %v1324 = vpop.f32.mrb[0].mxu0
      %v1325 = vadd.f32 %v1225, %v1324
      %v1326 = vpop.f32.mrb[0].mxu0
      %1327 = vmatprep.mubr.bf16.mxu0 0
      %1328 = vmatmul.mubr.bf16.gmra.mrb[0].mxu0 %v1271
      %v1329 = vpop.f32.mrb[0].mxu0
      %v1330 = vadd.f32 %v1230, %v1329
      %v1331 = vpop.f32.mrb[0].mxu0
      %v1332 = vpop.f32.mrb[0].mxu0
      %v1333 = vadd.f32 %v1233, %v1332
      %v1334 = vpop.f32.mrb[0].mxu0
      %1335 = vmatprep.mubr.bf16.mxu0 0
      %1336 = vmatmul.mubr.bf16.gmra.mrb[0].mxu0 %v1274
      %v1337 = vpop.f32.mrb[0].mxu0
      %v1338 = vadd.f32 %v1238, %v1337
      %v1339 = vpop.f32.mrb[0].mxu0
      %v1340 = vpop.f32.mrb[0].mxu0
      %v1341 = vadd.f32 %v1241, %v1340
      %v1342 = vpop.f32.mrb[0].mxu0
      %1343 = vdwg.mxu0
      %v1344 = vld [vmem:[%s1019] sm:$0xe]
      %v1345 = vld [vmem:[%s1019 + $0x8] sm:$0xe]
      %v1346 = vld [vmem:[%s1019 + $0x10] sm:$0xe]
      %v1347 = vld [vmem:[%s1019 + $0x18] sm:$0xe]
      %v1348 = vld [vmem:[%s1019 + $0x20] sm:$0xe]
      %v1349 = vld [vmem:[%s1019 + $0x28] sm:$0xe]
      %v1350 = vld [vmem:[%s1019 + $0x30] sm:$0xe]
      %v1351 = vld [vmem:[%s1019 + $0x38] sm:$0xe]
      %v1368 = vrot.slane %v1344, 5
      %v1369 = vrot.slane %v1368, 4
      %v1370 = vrot.slane %v1030, 5
      %v1371 = vsel %vm873, %v1369, %v1370
      %v1372 = vrot.slane %v1345, 5
      %v1373 = vrot.slane %v1372, 4
      %v1374 = vrot.slane %v1031, 5
      %v1375 = vsel %vm873, %v1373, %v1374
      %v1376 = vrot.slane %v1346, 5
      %v1377 = vrot.slane %v1376, 4
      %v1378 = vrot.slane %v1032, 5
      %v1379 = vsel %vm873, %v1377, %v1378
      %v1380 = vrot.slane %v1347, 5
      %v1381 = vrot.slane %v1380, 4
      %v1382 = vrot.slane %v1033, 5
      %v1383 = vsel %vm873, %v1381, %v1382
      %v1384 = vrot.slane %v1348, 5
      %v1385 = vrot.slane %v1384, 4
      %v1386 = vrot.slane %v1034, 5
      %v1387 = vsel %vm873, %v1385, %v1386
      %v1388 = vrot.slane %v1349, 5
      %v1389 = vrot.slane %v1388, 4
      %v1390 = vrot.slane %v1035, 5
      %v1391 = vsel %vm873, %v1389, %v1390
      %v1392 = vrot.slane %v1350, 5
      %v1393 = vrot.slane %v1392, 4
      %v1394 = vrot.slane %v1036, 5
      %v1395 = vsel %vm873, %v1393, %v1394
      %v1396 = vrot.slane %v1351, 5
      %v1397 = vrot.slane %v1396, 4
      %v1398 = vrot.slane %v1037, 5
      %v1399 = vsel %vm873, %v1397, %v1398
      %s1400 = scalar_lea.vmem %s1, 20
      %v1401 = vld [vmem:[%s1400] sm:$0xf]
      %v1402 = vunpack.c.l.b16 %v1371
      %v1403 = vunpack.c.l.b16 %v1375
      %v1404 = vunpack.c.l.b16 %v1379
      %v1405 = vunpack.c.l.b16 %v1383
      %v1406 = vunpack.c.l.b16 %v1387
      %v1407 = vunpack.c.l.b16 %v1391
      %v1408 = vunpack.c.l.b16 %v1395
      %v1409 = vunpack.c.l.b16 %v1399
      %v1410 = vpack.c.b16 %v1403, %v1402
      %v1411 = vpack.c.b16 %v1405, %v1404
      %v1412 = vpack.c.b16 %v1407, %v1406
      %v1413 = vpack.c.b16 %v1409, %v1408
      %v1415 = vsel %vm665, %v1410, 0
      %v1418 = vsel %vm665, %v1411, 0
      %v1421 = vsel %vm665, %v1412, 0
      %v1424 = vsel %vm665, %v1413, 0
      %v1427 = vsel %vm678, %v1401, 0
      %1429 = vmatprep.subr.bf16.mxu0 0
      %1430 = vmatpush1.bf16.msra.mxu0 %v1427
      %1431 = vmatprep.subr.bf16.mxu0 0
      %1432 = vmatpush1.bf16.msra.mxu0 0
      %1433 = vmatprep.subr.bf16.mxu0 0
      %1434 = vmatpush1.bf16.msra.mxu0 0
      %1435 = vmatprep.subr.bf16.mxu0 0
      %1436 = vmatpush1.bf16.msra.mxu0 0
      %1437 = vmatprep.subr.bf16.mxu0 0
      %1438 = vmatpush1.bf16.msra.mxu0 0
      %1439 = vmatprep.subr.bf16.mxu0 0
      %1440 = vmatpush1.bf16.msra.mxu0 0
      %1441 = vmatprep.subr.bf16.mxu0 0
      %1442 = vmatpush1.bf16.msra.mxu0 0
      %1443 = vmatprep.subr.bf16.mxu0 0
      %1444 = vmatpush1.bf16.msra.mxu0 0
      %1445 = vmatprep.subr.bf16.mxu0 0
      %1446 = vmatpush1.bf16.msra.mxu0 0
      %1447 = vmatprep.subr.bf16.mxu0 0
      %1448 = vmatpush1.bf16.msra.mxu0 0
      %1449 = vmatprep.subr.bf16.mxu0 0
      %1450 = vmatpush1.bf16.msra.mxu0 0
      %1451 = vmatprep.subr.bf16.mxu0 0
      %1452 = vmatpush1.bf16.msra.mxu0 0
      %1453 = vmatprep.subr.bf16.mxu0 0
      %1454 = vmatpush1.bf16.msra.mxu0 0
      %1455 = vmatprep.subr.bf16.mxu0 0
      %1456 = vmatpush1.bf16.msra.mxu0 0
      %1457 = vmatprep.subr.bf16.mxu0 0
      %1458 = vmatpush1.bf16.msra.mxu0 0
      %1459 = vmatprep.subr.bf16.mxu0 0
      %1460 = vmatpush1.bf16.msra.mxu0 0
      %1461 = vmatprep.mubr.bf16.mxu0 0
      %1462 = vmatmul.mubr.bf16.gmra.mrb[0].mxu0 %v1415
      %v1463 = vpop.f32.mrb[0].mxu0
      %v1464 = vadd.f32 0.0, %v1463
      %v1465 = vpop.f32.mrb[0].mxu0
      %v1466 = vpop.f32.mrb[0].mxu0
      %v1467 = vadd.f32 0.0, %v1466
      %v1468 = vpop.f32.mrb[0].mxu0
      %1469 = vmatprep.mubr.bf16.mxu0 0
      %1470 = vmatmul.mubr.bf16.gmra.mrb[0].mxu0 %v1418
      %v1471 = vpop.f32.mrb[0].mxu0
      %v1472 = vadd.f32 0.0, %v1471
      %v1473 = vpop.f32.mrb[0].mxu0
      %v1474 = vpop.f32.mrb[0].mxu0
      %v1475 = vadd.f32 0.0, %v1474
      %v1476 = vpop.f32.mrb[0].mxu0
      %1477 = vmatprep.mubr.bf16.mxu0 0
      %1478 = vmatmul.mubr.bf16.gmra.mrb[0].mxu0 %v1421
      %v1479 = vpop.f32.mrb[0].mxu0
      %v1480 = vadd.f32 0.0, %v1479
      %v1481 = vpop.f32.mrb[0].mxu0
      %v1482 = vpop.f32.mrb[0].mxu0
      %v1483 = vadd.f32 0.0, %v1482
      %v1484 = vpop.f32.mrb[0].mxu0
      %1485 = vmatprep.mubr.bf16.mxu0 0
      %1486 = vmatmul.mubr.bf16.gmra.mrb[0].mxu0 %v1424
      %v1487 = vpop.f32.mrb[0].mxu0
      %v1488 = vadd.f32 0.0, %v1487
      %v1489 = vpop.f32.mrb[0].mxu0
      %v1490 = vpop.f32.mrb[0].mxu0
      %v1491 = vadd.f32 0.0, %v1490
      %v1492 = vpop.f32.mrb[0].mxu0
      %1493 = vdwg.mxu0
      %v1494 = vadd.f32 %v1314, %v1464
      %v1495 = vadd.f32 %v1317, %v1467
      %v1496 = vadd.f32 %v1322, %v1472
      %v1497 = vadd.f32 %v1325, %v1475
      %v1498 = vadd.f32 %v1330, %v1480
      %v1499 = vadd.f32 %v1333, %v1483
      %v1500 = vadd.f32 %v1338, %v1488
      %v1501 = vadd.f32 %v1341, %v1491
      %v1502 = vld [vmem:[#allocation3] sm:$0xff]
      %v1503 = vld [vmem:[#allocation3 + $0x8] sm:$0xff]
      %v1504 = vld [vmem:[#allocation3 + $0x10] sm:$0xff]
      %v1505 = vld [vmem:[#allocation3 + $0x18] sm:$0xff]
      %v1506 = vld [vmem:[#allocation3 + $0x20] sm:$0xff]
      %v1507 = vld [vmem:[#allocation3 + $0x28] sm:$0xff]
      %v1508 = vld [vmem:[#allocation3 + $0x30] sm:$0xff]
      %v1509 = vld [vmem:[#allocation3 + $0x38] sm:$0xff]
      %v1510 = vadd.f32 %v1502, %v1494
      %v1511 = vadd.f32 %v1503, %v1495
      %v1512 = vadd.f32 %v1504, %v1496
      %v1513 = vadd.f32 %v1505, %v1497
      %v1514 = vadd.f32 %v1506, %v1498
      %v1515 = vadd.f32 %v1507, %v1499
      %v1516 = vadd.f32 %v1508, %v1500
      %v1517 = vadd.f32 %v1509, %v1501
      %1518 = vst.msk [vmem:[#allocation3] sm:$0xff] %vm665, %v1510
      %1519 = vst.msk [vmem:[#allocation3 + $0x8] sm:$0xff] %vm665, %v1511
      %1520 = vst.msk [vmem:[#allocation3 + $0x10] sm:$0xff] %vm665, %v1512
      %1521 = vst.msk [vmem:[#allocation3 + $0x18] sm:$0xff] %vm665, %v1513
      %1522 = vst.msk [vmem:[#allocation3 + $0x20] sm:$0xff] %vm665, %v1514
      %1523 = vst.msk [vmem:[#allocation3 + $0x28] sm:$0xff] %vm665, %v1515
      %1524 = vst.msk [vmem:[#allocation3 + $0x30] sm:$0xff] %vm665, %v1516
      %1525 = vst.msk [vmem:[#allocation3 + $0x38] sm:$0xff] %vm665, %v1517
      %s1526 = sadd.s32 %s515, 2
      %s1527 = smul.u32 %s1526, 2
      %s1528 = smul.addr %s1527, 4
      %s1529 = scalar_lea.vmem [#allocation2], %s1528
      %v1530 = vld [vmem:[%s1529] sm:$0xf]
      %v1531 = vld [vmem:[%s1529 + $0x8] sm:$0xf]
      %v1532 = vld [vmem:[%s1529 + $0x10] sm:$0xf]
      %v1533 = vld [vmem:[%s1529 + $0x18] sm:$0xf]
      %v1534 = vld [vmem:[%s1529 + $0x20] sm:$0xf]
      %v1535 = vld [vmem:[%s1529 + $0x28] sm:$0xf]
      %v1536 = vld [vmem:[%s1529 + $0x30] sm:$0xf]
      %v1537 = vld [vmem:[%s1529 + $0x38] sm:$0xf]
      %s1538 = scalar_lea.vmem %s1, 24
      %v1539 = vld [vmem:[%s1538] sm:$0xf]
      %v1540 = vld [vmem:[%s1529 + $0x4] sm:$0x1]
      %v1541 = vld [vmem:[%s1529 + $0xc] sm:$0x1]
      %v1542 = vld [vmem:[%s1529 + $0x14] sm:$0x1]
      %v1543 = vld [vmem:[%s1529 + $0x1c] sm:$0x1]
      %v1544 = vld [vmem:[%s1529 + $0x24] sm:$0x1]
      %v1545 = vld [vmem:[%s1529 + $0x2c] sm:$0x1]
      %v1546 = vld [vmem:[%s1529 + $0x34] sm:$0x1]
      %v1547 = vld [vmem:[%s1529 + $0x3c] sm:$0x1]
      %v1549 = vshrl.u32 %v1530, 16
      %v1551 = vrot.slane %v1549, 4
      %v1552 = vshll.u32 %v1530, 16
      %v1554 = vrot.slane %v1552, 5
      %v1555 = vor.u32 %v1551, %v1554
      %v1556 = vrot.slane %v1555, 4
      %v1558 = vshll.u32 %v1540, 16
      %v1560 = vrot.slane %v1558, 5
      %v1561 = vsel %vm538, %v1556, %v1560
      %v1563 = vshrl.u32 %v1531, 16
      %v1565 = vrot.slane %v1563, 4
      %v1566 = vshll.u32 %v1531, 16
      %v1568 = vrot.slane %v1566, 5
      %v1569 = vor.u32 %v1565, %v1568
      %v1570 = vrot.slane %v1569, 4
      %v1572 = vshll.u32 %v1541, 16
      %v1574 = vrot.slane %v1572, 5
      %v1575 = vsel %vm538, %v1570, %v1574
      %v1577 = vshrl.u32 %v1532, 16
      %v1579 = vrot.slane %v1577, 4
      %v1580 = vshll.u32 %v1532, 16
      %v1582 = vrot.slane %v1580, 5
      %v1583 = vor.u32 %v1579, %v1582
      %v1584 = vrot.slane %v1583, 4
      %v1586 = vshll.u32 %v1542, 16
      %v1588 = vrot.slane %v1586, 5
      %v1589 = vsel %vm538, %v1584, %v1588
      %v1591 = vshrl.u32 %v1533, 16
      %v1593 = vrot.slane %v1591, 4
      %v1594 = vshll.u32 %v1533, 16
      %v1596 = vrot.slane %v1594, 5
      %v1597 = vor.u32 %v1593, %v1596
      %v1598 = vrot.slane %v1597, 4
      %v1600 = vshll.u32 %v1543, 16
      %v1602 = vrot.slane %v1600, 5
      %v1603 = vsel %vm538, %v1598, %v1602
      %v1605 = vshrl.u32 %v1534, 16
      %v1607 = vrot.slane %v1605, 4
      %v1608 = vshll.u32 %v1534, 16
      %v1610 = vrot.slane %v1608, 5
      %v1611 = vor.u32 %v1607, %v1610
      %v1612 = vrot.slane %v1611, 4
      %v1614 = vshll.u32 %v1544, 16
      %v1616 = vrot.slane %v1614, 5
      %v1617 = vsel %vm538, %v1612, %v1616
      %v1619 = vshrl.u32 %v1535, 16
      %v1621 = vrot.slane %v1619, 4
      %v1622 = vshll.u32 %v1535, 16
      %v1624 = vrot.slane %v1622, 5
      %v1625 = vor.u32 %v1621, %v1624
      %v1626 = vrot.slane %v1625, 4
      %v1628 = vshll.u32 %v1545, 16
      %v1630 = vrot.slane %v1628, 5
      %v1631 = vsel %vm538, %v1626, %v1630
      %v1633 = vshrl.u32 %v1536, 16
      %v1635 = vrot.slane %v1633, 4
      %v1636 = vshll.u32 %v1536, 16
      %v1638 = vrot.slane %v1636, 5
      %v1639 = vor.u32 %v1635, %v1638
      %v1640 = vrot.slane %v1639, 4
      %v1642 = vshll.u32 %v1546, 16
      %v1644 = vrot.slane %v1642, 5
      %v1645 = vsel %vm538, %v1640, %v1644
      %v1647 = vshrl.u32 %v1537, 16
      %v1649 = vrot.slane %v1647, 4
      %v1650 = vshll.u32 %v1537, 16
      %v1652 = vrot.slane %v1650, 5
      %v1653 = vor.u32 %v1649, %v1652
      %v1654 = vrot.slane %v1653, 4
      %v1656 = vshll.u32 %v1547, 16
      %v1658 = vrot.slane %v1656, 5
      %v1659 = vsel %vm538, %v1654, %v1658
      %s1660 = scalar_lea.vmem %s1, 28
      %v1661 = vld [vmem:[%s1660] sm:$0xf]
      %v1662 = vunpack.c.l.b16 %v1561
      %v1663 = vunpack.c.l.b16 %v1575
      %v1664 = vunpack.c.l.b16 %v1589
      %v1665 = vunpack.c.l.b16 %v1603
      %v1666 = vunpack.c.l.b16 %v1617
      %v1667 = vunpack.c.l.b16 %v1631
      %v1668 = vunpack.c.l.b16 %v1645
      %v1669 = vunpack.c.l.b16 %v1659
      %v1670 = vpack.c.b16 %v1663, %v1662
      %v1671 = vpack.c.b16 %v1665, %v1664
      %v1672 = vpack.c.b16 %v1667, %v1666
      %v1673 = vpack.c.b16 %v1669, %v1668
      %v1675 = vsel %vm665, %v1670, 0
      %v1678 = vsel %vm665, %v1671, 0
      %v1681 = vsel %vm665, %v1672, 0
      %v1684 = vsel %vm665, %v1673, 0
      %v1687 = vsel %vm678, %v1661, 0
      %1689 = vmatprep.subr.bf16.mxu0 0
      %1690 = vmatpush1.bf16.msra.mxu0 %v1687
      %1691 = vmatprep.subr.bf16.mxu0 0
      %1692 = vmatpush1.bf16.msra.mxu0 0
      %1693 = vmatprep.subr.bf16.mxu0 0
      %1694 = vmatpush1.bf16.msra.mxu0 0
      %1695 = vmatprep.subr.bf16.mxu0 0
      %1696 = vmatpush1.bf16.msra.mxu0 0
      %1697 = vmatprep.subr.bf16.mxu0 0
      %1698 = vmatpush1.bf16.msra.mxu0 0
      %1699 = vmatprep.subr.bf16.mxu0 0
      %1700 = vmatpush1.bf16.msra.mxu0 0
      %1701 = vmatprep.subr.bf16.mxu0 0
      %1702 = vmatpush1.bf16.msra.mxu0 0
      %1703 = vmatprep.subr.bf16.mxu0 0
      %1704 = vmatpush1.bf16.msra.mxu0 0
      %1705 = vmatprep.subr.bf16.mxu0 0
      %1706 = vmatpush1.bf16.msra.mxu0 0
      %1707 = vmatprep.subr.bf16.mxu0 0
      %1708 = vmatpush1.bf16.msra.mxu0 0
      %1709 = vmatprep.subr.bf16.mxu0 0
      %1710 = vmatpush1.bf16.msra.mxu0 0
      %1711 = vmatprep.subr.bf16.mxu0 0
      %1712 = vmatpush1.bf16.msra.mxu0 0
      %1713 = vmatprep.subr.bf16.mxu0 0
      %1714 = vmatpush1.bf16.msra.mxu0 0
      %1715 = vmatprep.subr.bf16.mxu0 0
      %1716 = vmatpush1.bf16.msra.mxu0 0
      %1717 = vmatprep.subr.bf16.mxu0 0
      %1718 = vmatpush1.bf16.msra.mxu0 0
      %1719 = vmatprep.subr.bf16.mxu0 0
      %1720 = vmatpush1.bf16.msra.mxu0 0
      %1721 = vmatprep.mubr.bf16.mxu0 0
      %1722 = vmatmul.mubr.bf16.gmra.mrb[0].mxu0 %v1675
      %v1723 = vpop.f32.mrb[0].mxu0
      %v1724 = vadd.f32 0.0, %v1723
      %v1725 = vpop.f32.mrb[0].mxu0
      %v1726 = vpop.f32.mrb[0].mxu0
      %v1727 = vadd.f32 0.0, %v1726
      %v1728 = vpop.f32.mrb[0].mxu0
      %1729 = vmatprep.mubr.bf16.mxu0 0
      %1730 = vmatmul.mubr.bf16.gmra.mrb[0].mxu0 %v1678
      %v1731 = vpop.f32.mrb[0].mxu0
      %v1732 = vadd.f32 0.0, %v1731
      %v1733 = vpop.f32.mrb[0].mxu0
      %v1734 = vpop.f32.mrb[0].mxu0
      %v1735 = vadd.f32 0.0, %v1734
      %v1736 = vpop.f32.mrb[0].mxu0
      %1737 = vmatprep.mubr.bf16.mxu0 0
      %1738 = vmatmul.mubr.bf16.gmra.mrb[0].mxu0 %v1681
      %v1739 = vpop.f32.mrb[0].mxu0
      %v1740 = vadd.f32 0.0, %v1739
      %v1741 = vpop.f32.mrb[0].mxu0
      %v1742 = vpop.f32.mrb[0].mxu0
      %v1743 = vadd.f32 0.0, %v1742
      %v1744 = vpop.f32.mrb[0].mxu0
      %1745 = vmatprep.mubr.bf16.mxu0 0
      %1746 = vmatmul.mubr.bf16.gmra.mrb[0].mxu0 %v1684
      %v1747 = vpop.f32.mrb[0].mxu0
      %v1748 = vadd.f32 0.0, %v1747
      %v1749 = vpop.f32.mrb[0].mxu0
      %v1750 = vpop.f32.mrb[0].mxu0
      %v1751 = vadd.f32 0.0, %v1750
      %v1752 = vpop.f32.mrb[0].mxu0
      %1753 = vdwg.mxu0
      %v1762 = vunpack.c.l.b16 %v1530
      %v1763 = vunpack.c.l.b16 %v1531
      %v1764 = vunpack.c.l.b16 %v1532
      %v1765 = vunpack.c.l.b16 %v1533
      %v1766 = vunpack.c.l.b16 %v1534
      %v1767 = vunpack.c.l.b16 %v1535
      %v1768 = vunpack.c.l.b16 %v1536
      %v1769 = vunpack.c.l.b16 %v1537
      %v1770 = vpack.c.b16 %v1763, %v1762
      %v1771 = vpack.c.b16 %v1765, %v1764
      %v1772 = vpack.c.b16 %v1767, %v1766
      %v1773 = vpack.c.b16 %v1769, %v1768
      %v1775 = vsel %vm665, %v1770, 0
      %v1778 = vsel %vm665, %v1771, 0
      %v1781 = vsel %vm665, %v1772, 0
      %v1784 = vsel %vm665, %v1773, 0
      %v1787 = vsel %vm678, %v1539, 0
      %1789 = vmatprep.subr.bf16.mxu0 0
      %1790 = vmatpush1.bf16.msra.mxu0 %v1787
      %1791 = vmatprep.subr.bf16.mxu0 0
      %1792 = vmatpush1.bf16.msra.mxu0 0
      %1793 = vmatprep.subr.bf16.mxu0 0
      %1794 = vmatpush1.bf16.msra.mxu0 0
      %1795 = vmatprep.subr.bf16.mxu0 0
      %1796 = vmatpush1.bf16.msra.mxu0 0
      %1797 = vmatprep.subr.bf16.mxu0 0
      %1798 = vmatpush1.bf16.msra.mxu0 0
      %1799 = vmatprep.subr.bf16.mxu0 0
      %1800 = vmatpush1.bf16.msra.mxu0 0
      %1801 = vmatprep.subr.bf16.mxu0 0
      %1802 = vmatpush1.bf16.msra.mxu0 0
      %1803 = vmatprep.subr.bf16.mxu0 0
      %1804 = vmatpush1.bf16.msra.mxu0 0
      %1805 = vmatprep.subr.bf16.mxu0 0
      %1806 = vmatpush1.bf16.msra.mxu0 0
      %1807 = vmatprep.subr.bf16.mxu0 0
      %1808 = vmatpush1.bf16.msra.mxu0 0
      %1809 = vmatprep.subr.bf16.mxu0 0
      %1810 = vmatpush1.bf16.msra.mxu0 0
      %1811 = vmatprep.subr.bf16.mxu0 0
      %1812 = vmatpush1.bf16.msra.mxu0 0
      %1813 = vmatprep.subr.bf16.mxu0 0
      %1814 = vmatpush1.bf16.msra.mxu0 0
      %1815 = vmatprep.subr.bf16.mxu0 0
      %1816 = vmatpush1.bf16.msra.mxu0 0
      %1817 = vmatprep.subr.bf16.mxu0 0
      %1818 = vmatpush1.bf16.msra.mxu0 0
      %1819 = vmatprep.subr.bf16.mxu0 0
      %1820 = vmatpush1.bf16.msra.mxu0 0
      %1821 = vmatprep.mubr.bf16.mxu0 0
      %1822 = vmatmul.mubr.bf16.gmra.mrb[0].mxu0 %v1775
      %v1823 = vpop.f32.mrb[0].mxu0
      %v1824 = vadd.f32 %v1724, %v1823
      %v1825 = vpop.f32.mrb[0].mxu0
      %v1826 = vpop.f32.mrb[0].mxu0
      %v1827 = vadd.f32 %v1727, %v1826
      %v1828 = vpop.f32.mrb[0].mxu0
      %1829 = vmatprep.mubr.bf16.mxu0 0
      %1830 = vmatmul.mubr.bf16.gmra.mrb[0].mxu0 %v1778
      %v1831 = vpop.f32.mrb[0].mxu0
      %v1832 = vadd.f32 %v1732, %v1831
      %v1833 = vpop.f32.mrb[0].mxu0
      %v1834 = vpop.f32.mrb[0].mxu0
      %v1835 = vadd.f32 %v1735, %v1834
      %v1836 = vpop.f32.mrb[0].mxu0
      %1837 = vmatprep.mubr.bf16.mxu0 0
      %1838 = vmatmul.mubr.bf16.gmra.mrb[0].mxu0 %v1781
      %v1839 = vpop.f32.mrb[0].mxu0
      %v1840 = vadd.f32 %v1740, %v1839
      %v1841 = vpop.f32.mrb[0].mxu0
      %v1842 = vpop.f32.mrb[0].mxu0
      %v1843 = vadd.f32 %v1743, %v1842
      %v1844 = vpop.f32.mrb[0].mxu0
      %1845 = vmatprep.mubr.bf16.mxu0 0
      %1846 = vmatmul.mubr.bf16.gmra.mrb[0].mxu0 %v1784
      %v1847 = vpop.f32.mrb[0].mxu0
      %v1848 = vadd.f32 %v1748, %v1847
      %v1849 = vpop.f32.mrb[0].mxu0
      %v1850 = vpop.f32.mrb[0].mxu0
      %v1851 = vadd.f32 %v1751, %v1850
      %v1852 = vpop.f32.mrb[0].mxu0
      %1853 = vdwg.mxu0
      %v1854 = vld [vmem:[%s1529] sm:$0xe]
      %v1855 = vld [vmem:[%s1529 + $0x8] sm:$0xe]
      %v1856 = vld [vmem:[%s1529 + $0x10] sm:$0xe]
      %v1857 = vld [vmem:[%s1529 + $0x18] sm:$0xe]
      %v1858 = vld [vmem:[%s1529 + $0x20] sm:$0xe]
      %v1859 = vld [vmem:[%s1529 + $0x28] sm:$0xe]
      %v1860 = vld [vmem:[%s1529 + $0x30] sm:$0xe]
      %v1861 = vld [vmem:[%s1529 + $0x38] sm:$0xe]
      %v1878 = vrot.slane %v1854, 5
      %v1879 = vrot.slane %v1878, 4
      %v1880 = vrot.slane %v1540, 5
      %v1881 = vsel %vm873, %v1879, %v1880
      %v1882 = vrot.slane %v1855, 5
      %v1883 = vrot.slane %v1882, 4
      %v1884 = vrot.slane %v1541, 5
      %v1885 = vsel %vm873, %v1883, %v1884
      %v1886 = vrot.slane %v1856, 5
      %v1887 = vrot.slane %v1886, 4
      %v1888 = vrot.slane %v1542, 5
      %v1889 = vsel %vm873, %v1887, %v1888
      %v1890 = vrot.slane %v1857, 5
      %v1891 = vrot.slane %v1890, 4
      %v1892 = vrot.slane %v1543, 5
      %v1893 = vsel %vm873, %v1891, %v1892
      %v1894 = vrot.slane %v1858, 5
      %v1895 = vrot.slane %v1894, 4
      %v1896 = vrot.slane %v1544, 5
      %v1897 = vsel %vm873, %v1895, %v1896
      %v1898 = vrot.slane %v1859, 5
      %v1899 = vrot.slane %v1898, 4
      %v1900 = vrot.slane %v1545, 5
      %v1901 = vsel %vm873, %v1899, %v1900
      %v1902 = vrot.slane %v1860, 5
      %v1903 = vrot.slane %v1902, 4
      %v1904 = vrot.slane %v1546, 5
      %v1905 = vsel %vm873, %v1903, %v1904
      %v1906 = vrot.slane %v1861, 5
      %v1907 = vrot.slane %v1906, 4
      %v1908 = vrot.slane %v1547, 5
      %v1909 = vsel %vm873, %v1907, %v1908
      %s1910 = scalar_lea.vmem %s1, 32
      %v1911 = vld [vmem:[%s1910] sm:$0xf]
      %v1912 = vunpack.c.l.b16 %v1881
      %v1913 = vunpack.c.l.b16 %v1885
      %v1914 = vunpack.c.l.b16 %v1889
      %v1915 = vunpack.c.l.b16 %v1893
      %v1916 = vunpack.c.l.b16 %v1897
      %v1917 = vunpack.c.l.b16 %v1901
      %v1918 = vunpack.c.l.b16 %v1905
      %v1919 = vunpack.c.l.b16 %v1909
      %v1920 = vpack.c.b16 %v1913, %v1912
      %v1921 = vpack.c.b16 %v1915, %v1914
      %v1922 = vpack.c.b16 %v1917, %v1916
      %v1923 = vpack.c.b16 %v1919, %v1918
      %v1925 = vsel %vm665, %v1920, 0
      %v1928 = vsel %vm665, %v1921, 0
      %v1931 = vsel %vm665, %v1922, 0
      %v1934 = vsel %vm665, %v1923, 0
      %v1937 = vsel %vm678, %v1911, 0
      %1939 = vmatprep.subr.bf16.mxu0 0
      %1940 = vmatpush1.bf16.msra.mxu0 %v1937
      %1941 = vmatprep.subr.bf16.mxu0 0
      %1942 = vmatpush1.bf16.msra.mxu0 0
      %1943 = vmatprep.subr.bf16.mxu0 0
      %1944 = vmatpush1.bf16.msra.mxu0 0
      %1945 = vmatprep.subr.bf16.mxu0 0
      %1946 = vmatpush1.bf16.msra.mxu0 0
      %1947 = vmatprep.subr.bf16.mxu0 0
      %1948 = vmatpush1.bf16.msra.mxu0 0
      %1949 = vmatprep.subr.bf16.mxu0 0
      %1950 = vmatpush1.bf16.msra.mxu0 0
      %1951 = vmatprep.subr.bf16.mxu0 0
      %1952 = vmatpush1.bf16.msra.mxu0 0
      %1953 = vmatprep.subr.bf16.mxu0 0
      %1954 = vmatpush1.bf16.msra.mxu0 0
      %1955 = vmatprep.subr.bf16.mxu0 0
      %1956 = vmatpush1.bf16.msra.mxu0 0
      %1957 = vmatprep.subr.bf16.mxu0 0
      %1958 = vmatpush1.bf16.msra.mxu0 0
      %1959 = vmatprep.subr.bf16.mxu0 0
      %1960 = vmatpush1.bf16.msra.mxu0 0
      %1961 = vmatprep.subr.bf16.mxu0 0
      %1962 = vmatpush1.bf16.msra.mxu0 0
      %1963 = vmatprep.subr.bf16.mxu0 0
      %1964 = vmatpush1.bf16.msra.mxu0 0
      %1965 = vmatprep.subr.bf16.mxu0 0
      %1966 = vmatpush1.bf16.msra.mxu0 0
      %1967 = vmatprep.subr.bf16.mxu0 0
      %1968 = vmatpush1.bf16.msra.mxu0 0
      %1969 = vmatprep.subr.bf16.mxu0 0
      %1970 = vmatpush1.bf16.msra.mxu0 0
      %1971 = vmatprep.mubr.bf16.mxu0 0
      %1972 = vmatmul.mubr.bf16.gmra.mrb[0].mxu0 %v1925
      %v1973 = vpop.f32.mrb[0].mxu0
      %v1974 = vadd.f32 0.0, %v1973
      %v1975 = vpop.f32.mrb[0].mxu0
      %v1976 = vpop.f32.mrb[0].mxu0
      %v1977 = vadd.f32 0.0, %v1976
      %v1978 = vpop.f32.mrb[0].mxu0
      %1979 = vmatprep.mubr.bf16.mxu0 0
      %1980 = vmatmul.mubr.bf16.gmra.mrb[0].mxu0 %v1928
      %v1981 = vpop.f32.mrb[0].mxu0
      %v1982 = vadd.f32 0.0, %v1981
      %v1983 = vpop.f32.mrb[0].mxu0
      %v1984 = vpop.f32.mrb[0].mxu0
      %v1985 = vadd.f32 0.0, %v1984
      %v1986 = vpop.f32.mrb[0].mxu0
      %1987 = vmatprep.mubr.bf16.mxu0 0
      %1988 = vmatmul.mubr.bf16.gmra.mrb[0].mxu0 %v1931
      %v1989 = vpop.f32.mrb[0].mxu0
      %v1990 = vadd.f32 0.0, %v1989
      %v1991 = vpop.f32.mrb[0].mxu0
      %v1992 = vpop.f32.mrb[0].mxu0
      %v1993 = vadd.f32 0.0, %v1992
      %v1994 = vpop.f32.mrb[0].mxu0
      %1995 = vmatprep.mubr.bf16.mxu0 0
      %1996 = vmatmul.mubr.bf16.gmra.mrb[0].mxu0 %v1934
      %v1997 = vpop.f32.mrb[0].mxu0
      %v1998 = vadd.f32 0.0, %v1997
      %v1999 = vpop.f32.mrb[0].mxu0
      %v2000 = vpop.f32.mrb[0].mxu0
      %v2001 = vadd.f32 0.0, %v2000
      %v2002 = vpop.f32.mrb[0].mxu0
      %2003 = vdwg.mxu0
      %v2004 = vadd.f32 %v1824, %v1974
      %v2005 = vadd.f32 %v1827, %v1977
      %v2006 = vadd.f32 %v1832, %v1982
      %v2007 = vadd.f32 %v1835, %v1985
      %v2008 = vadd.f32 %v1840, %v1990
      %v2009 = vadd.f32 %v1843, %v1993
      %v2010 = vadd.f32 %v1848, %v1998
      %v2011 = vadd.f32 %v1851, %v2001
      %v2012 = vld [vmem:[#allocation3] sm:$0xff]
      %v2013 = vld [vmem:[#allocation3 + $0x8] sm:$0xff]
      %v2014 = vld [vmem:[#allocation3 + $0x10] sm:$0xff]
      %v2015 = vld [vmem:[#allocation3 + $0x18] sm:$0xff]
      %v2016 = vld [vmem:[#allocation3 + $0x20] sm:$0xff]
      %v2017 = vld [vmem:[#allocation3 + $0x28] sm:$0xff]
      %v2018 = vld [vmem:[#allocation3 + $0x30] sm:$0xff]
      %v2019 = vld [vmem:[#allocation3 + $0x38] sm:$0xff]
      %v2020 = vadd.f32 %v2012, %v2004
      %v2021 = vadd.f32 %v2013, %v2005
      %v2022 = vadd.f32 %v2014, %v2006
      %v2023 = vadd.f32 %v2015, %v2007
      %v2024 = vadd.f32 %v2016, %v2008
      %v2025 = vadd.f32 %v2017, %v2009
      %v2026 = vadd.f32 %v2018, %v2010
      %v2027 = vadd.f32 %v2019, %v2011
      %v2028 = vpack.c.bf16 %v2020, %v2020
      %v2029 = vpack.c.bf16 %v2021, %v2021
      %v2030 = vpack.c.bf16 %v2022, %v2022
      %v2031 = vpack.c.bf16 %v2023, %v2023
      %v2032 = vpack.c.bf16 %v2024, %v2024
      %v2033 = vpack.c.bf16 %v2025, %v2025
      %v2034 = vpack.c.bf16 %v2026, %v2026
      %v2035 = vpack.c.bf16 %v2027, %v2027
      %vm2036 = vcmask 60416
      %2037 = vst.msk [vmem:[%s258] sm:$0xf] %vm2036, %v2028
      %2038 = vst.msk [vmem:[%s258 + $0x4] sm:$0xf] %vm2036, %v2029
      %2039 = vst.msk [vmem:[%s258 + $0x8] sm:$0xf] %vm2036, %v2030
      %2040 = vst.msk [vmem:[%s258 + $0xc] sm:$0xf] %vm2036, %v2031
      %2041 = vst.msk [vmem:[%s258 + $0x10] sm:$0xf] %vm2036, %v2032
      %2042 = vst.msk [vmem:[%s258 + $0x14] sm:$0xf] %vm2036, %v2033
      %2043 = vst.msk [vmem:[%s258 + $0x18] sm:$0xf] %vm2036, %v2034
      %2044 = vst.msk [vmem:[%s258 + $0x1c] sm:$0xf] %vm2036, %v2035
      %v2045 = vsel %vm665, %v2020, 0.0
      %v2046 = vsel %vm665, %v2021, 0.0
      %v2047 = vadd.f32 %v2045, %v2046
      %v2048 = vsel %vm665, %v2022, 0.0
      %v2049 = vadd.f32 %v2047, %v2048
      %v2050 = vsel %vm665, %v2023, 0.0
      %v2051 = vadd.f32 %v2049, %v2050
      %v2052 = vsel %vm665, %v2024, 0.0
      %v2053 = vadd.f32 %v2051, %v2052
      %v2054 = vsel %vm665, %v2025, 0.0
      %v2055 = vadd.f32 %v2053, %v2054
      %v2056 = vsel %vm665, %v2026, 0.0
      %v2057 = vadd.f32 %v2055, %v2056
      %v2058 = vsel %vm665, %v2027, 0.0
      %v2059 = vadd.f32 %v2057, %v2058
      %v2060 = vrot.slane %v2059, 4
      %v2061 = vadd.f32 %v2059, %v2060
      %v2062 = vrot.slane %v2061, 2
      %v2063 = vadd.f32 %v2061, %v2062
      %v2064 = vrot.slane %v2063, 1
      %v2065 = vadd.f32 %v2063, %v2064
      %vm2066 = vcmask 57344
      %2067 = vst.msk [vmem:[%s266] sm:$0x1] %vm2066, %v2065
      %v2068 = vmul.f32 %v2020, %v2020
      %v2069 = vmul.f32 %v2021, %v2021
      %v2070 = vmul.f32 %v2022, %v2022
      %v2071 = vmul.f32 %v2023, %v2023
      %v2072 = vmul.f32 %v2024, %v2024
      %v2073 = vmul.f32 %v2025, %v2025
      %v2074 = vmul.f32 %v2026, %v2026
      %v2075 = vmul.f32 %v2027, %v2027
      %v2076 = vsel %vm665, %v2068, 0.0
      %v2077 = vsel %vm665, %v2069, 0.0
      %v2078 = vadd.f32 %v2076, %v2077
      %v2079 = vsel %vm665, %v2070, 0.0
      %v2080 = vadd.f32 %v2078, %v2079
      %v2081 = vsel %vm665, %v2071, 0.0
      %v2082 = vadd.f32 %v2080, %v2081
      %v2083 = vsel %vm665, %v2072, 0.0
      %v2084 = vadd.f32 %v2082, %v2083
      %v2085 = vsel %vm665, %v2073, 0.0
      %v2086 = vadd.f32 %v2084, %v2085
      %v2087 = vsel %vm665, %v2074, 0.0
      %v2088 = vadd.f32 %v2086, %v2087
      %v2089 = vsel %vm665, %v2075, 0.0
      %v2090 = vadd.f32 %v2088, %v2089
      %v2091 = vrot.slane %v2090, 4
      %v2092 = vadd.f32 %v2090, %v2091
      %v2093 = vrot.slane %v2092, 2
      %v2094 = vadd.f32 %v2092, %v2093
      %v2095 = vrot.slane %v2094, 1
      %v2096 = vadd.f32 %v2094, %v2095
      %2097 = vst.msk [vmem:[%s266 + $0x1] sm:$0x1] %vm2066, %v2096
      %s2098 = smul.u32 8, %s22
      %p2099 = scmp.lt.s32.totalorder %s21, 1
      %s2100 = scalar_select %p2099, %s21, 1
      %p2101 = scmp.lt.s32.totalorder %s2098, 7
      %s2102 = scalar_select %p2101, %s2098, 7
      %s2103 = smul.addr %s2100, 8
      %s2104 = sadd.s32 %s2102, %s2103
      %s2105 = smul.addr %s2104, 4
      %s2106 = scalar_lea.vmem %s4, %s2105
      %p2107 = scmp.lt.s32.totalorder %s21, 1
      %s2108 = scalar_select %p2107, %s21, 1
      %p2109 = scmp.lt.s32.totalorder %s22, 0
      %s2110 = scalar_select %p2109, %s22, 0
      %s2111 = sadd.s32 %s2110, %s2108
      %s2112 = smul.addr %s2111, 2
      %s2113 = scalar_lea.vmem %s5, %s2112
      // Predicated region
      $region41: #{basic_block_forward.5} parent=35 // pred_check
        %p2114 = pneg %p138
      $region42: #{basic_block_forward.5} parent=35 // pred_check_branch
        %2116 = sbr.rel (%p2114) target = $region44
      $region43: #{basic_block_forward.5} parent=35 // pred_region
        %s2117 = smul.u32 8, %s22
      $region44: #{basic_block_forward.5} parent=35 // pred_fallthru
        _
      // Predicated region
      $region45: #{basic_block_forward.5} parent=35 // pred_check
        %p2118 = pneg %p166
      $region46: #{basic_block_forward.5} parent=35 // pred_check_branch
        %2120 = sbr.rel (%p2118) target = $region48
      $region47: #{basic_block_forward.5} parent=35 // pred_region
        _
      $region48: #{basic_block_forward.5} parent=35 // pred_fallthru
        _
    $region36: #{basic_block_forward.5} parent=5 // pred_fallthru
      _
    %p2121 = scmp.le.s32.totalorder 2, %s12
    // Predicated region
    $region49: #{basic_block_forward.5} parent=5 // pred_check
      %p2122 = pneg %p2121
    $region50: #{basic_block_forward.5} parent=5 // pred_check_branch
      %2124 = sbr.rel (%p2122) target = $region52
    $region51: #{basic_block_forward.5} parent=5 // pred_region
      %s2125 = ssub.s32 %s12, 2
      // Predicated region
      $region53: #{basic_block_forward.5} parent=51 // pred_check
        %p2126 = pneg %p144
      $region54: #{basic_block_forward.5} parent=51 // pred_check_branch
        %2128 = sbr.rel (%p2126) target = $region56
      $region55: #{basic_block_forward.5} parent=51 // pred_region
        %s2129 = smul.u32 8, %s24
        %p2130 = scmp.lt.s32.totalorder %s23, 1
        %s2131 = scalar_select %p2130, %s23, 1
        %p2132 = scmp.lt.s32.totalorder %s2129, 7
        %s2133 = scalar_select %p2132, %s2129, 7
        %s2134 = smul.addr %s2131, 8
        %s2135 = sadd.s32 %s2133, %s2134
        %s2136 = smul.addr %s2135, 4
        %s2137 = scalar_lea.vmem %s4, %s2136
      $region56: #{basic_block_forward.5} parent=51 // pred_fallthru
        _
      // Predicated region
      $region57: #{basic_block_forward.5} parent=51 // pred_check
        %p2138 = pneg %p172
      $region58: #{basic_block_forward.5} parent=51 // pred_check_branch
        %2140 = sbr.rel (%p2138) target = $region60
      $region59: #{basic_block_forward.5} parent=51 // pred_region
        %p2141 = scmp.lt.s32.totalorder %s23, 1
        %s2142 = scalar_select %p2141, %s23, 1
        %p2143 = scmp.lt.s32.totalorder %s24, 0
        %s2144 = scalar_select %p2143, %s24, 0
        %s2145 = sadd.s32 %s2144, %s2142
        %s2146 = smul.addr %s2145, 2
        %s2147 = scalar_lea.vmem %s5, %s2146
      $region60: #{basic_block_forward.5} parent=51 // pred_fallthru
        _
    $region52: #{basic_block_forward.5} parent=5 // pred_fallthru
      _
  $region6: #{basic_block_forward.5} parent=0 // loop_footer
    %s16 = sadd.s32 1, %s12
  $region7: #{basic_block_forward.5} parent=0 // loop_footer_branch
    %11 = sbr.rel target = $region3
  $region8: #{basic_block_forward.5} parent=0 // loop_exit
    _

</llo_original>
